<compile_context>
chip_gen: v6e
topology: v6e:2x2x1
jax: 0.10.0
libtpu: 0.0.40
codegen_flags: <defaults>
</compile_context>

<pallas_src>
import functools
import math

import jax
import jax.numpy as jnp
from jax.experimental import pallas as pl
from jax.experimental.pallas import tpu as pltpu


def _attention_kernel(x_ref, ctx_ref, wq_ref, wkv_ref, wo_ref, bo_ref, o_ref,
                      q_scr, m_scr, l_scr, acc_scr, *, num_heads, head_dim):
    # x_ref:   (N, Dq)         ctx_ref: (Mb, Dc)      [one batch element / key tile]
    # wq_ref:  (Dq, inner)     wkv_ref: (Dc, 2*inner) [Wk | Wv]
    # wo_ref:  (inner, Dq)     bo_ref:  (1, Dq)
    # o_ref:   (N, Dq)
    # q_scr:   (H, N, d) compute dtype     acc_scr: (H, N, d) f32
    # m_scr/l_scr: (H, N, 1) f32
    N, Dq = x_ref.shape
    Mb, Dc = ctx_ref.shape
    inner = num_heads * head_dim
    cdt = x_ref.dtype  # compute dtype for MXU inputs (bf16 in the test)

    km = pl.program_id(1)

    @pl.when(km == 0)
    def _():
        # Q projection once per batch element (scale already folded into Wq),
        # stored per-head so no per-key-tile relayout is needed.
        q = jnp.dot(x_ref[...], wq_ref[...],
                    preferred_element_type=jnp.float32)          # (N, inner)
        qh = jnp.swapaxes(q.reshape(N, num_heads, head_dim), 0, 1)  # (H, N, d)
        q_scr[...] = qh.astype(cdt)
        m_scr[...] = jnp.full(m_scr.shape, -jnp.inf, dtype=jnp.float32)
        l_scr[...] = jnp.zeros(l_scr.shape, dtype=jnp.float32)
        acc_scr[...] = jnp.zeros(acc_scr.shape, dtype=jnp.float32)

    # Fused K/V projection for the current key tile.
    # NOTE: the lane slices below are cheapest when inner % 128 == 0; for other
    # widths they are still correct but trigger a lane relayout.
    kv = jnp.dot(ctx_ref[...], wkv_ref[...],
                 preferred_element_type=jnp.float32)             # (Mb, 2*inner)
    k = kv[:, :inner].astype(cdt)
    v = kv[:, inner:].astype(cdt)
    kh = jnp.swapaxes(k.reshape(Mb, num_heads, head_dim), 0, 1)  # (H, Mb, d)
    vh = jnp.swapaxes(v.reshape(Mb, num_heads, head_dim), 0, 1)  # (H, Mb, d)

    # All heads in one batched matmul; f32 softmax math (v5e has no bf16 VPU/EUP).
    s = jnp.einsum('hnd,hmd->hnm', q_scr[...], kh,
                   preferred_element_type=jnp.float32)           # (H, N, Mb)
    m_prev = m_scr[...]
    m_new = jnp.maximum(m_prev, jnp.max(s, axis=-1, keepdims=True))
    alpha = jnp.exp(m_prev - m_new)
    p = jnp.exp(s - m_new)                                       # unnormalized probs
    l_scr[...] = alpha * l_scr[...] + jnp.sum(p, axis=-1, keepdims=True)
    acc_scr[...] = alpha * acc_scr[...] + jnp.einsum(
        'hnm,hmd->hnd', p.astype(cdt), vh,
        preferred_element_type=jnp.float32)                      # (H, N, d)
    m_scr[...] = m_new

    @pl.when(km == pl.num_programs(1) - 1)
    def _():
        # Normalize after PV (H*N*d elements, not H*N*M); EUP reciprocal.
        attn = acc_scr[...] * pl.reciprocal(l_scr[...], approx=True)   # (H, N, d) f32
        attn = jnp.swapaxes(attn, 0, 1).reshape(N, inner)               # (N, inner)
        # Output projection + bias: single lane-dense matmul.
        y = jnp.dot(attn.astype(cdt), wo_ref[...],
                    preferred_element_type=jnp.float32)
        y = y + bo_ref[...].astype(jnp.float32)
        o_ref[...] = y.astype(o_ref.dtype)


def attention_forward(x, ctx, wq, wk, wv, wo, bo, *, num_heads, block_m=None):
    """x: (B, N, Dq), ctx: (B, M, Dc) or None; weights pre-transposed to (in, out)."""
    if ctx is None:
        ctx = x
    B, N, Dq = x.shape
    Bc, M, Dc = ctx.shape
    assert Bc == B
    inner = wq.shape[1]
    assert inner % num_heads == 0
    head_dim = inner // num_heads
    scale = float(head_dim) ** (-0.5)

    # Key-tile size: the per-generation VMEM knob (scores are H*N*block_m f32).
    if block_m is None:
        block_m = min(M, 512)
    assert M % block_m == 0, "key length must divide block_m (no masking path)"
    n_km = M // block_m

    # Fold the attention scale into Wq (free; removes a vmul per score element).
    wq_scaled = (wq.astype(jnp.float32) * scale).astype(wq.dtype)
    # Fuse K and V projection weights into one wide matmul operand.
    wkv = jnp.concatenate([wk, wv], axis=1)        # (Dc, 2*inner)
    bo2 = bo.reshape(1, -1)

    kernel = functools.partial(_attention_kernel,
                               num_heads=num_heads, head_dim=head_dim)

    # --- VMEM budget: actual tile footprint + headroom -----------------------
    bpe_a = x.dtype.itemsize
    bpe_w = wq.dtype.itemsize
    f32 = 4
    lane = 128
    d_pad = max(head_dim, lane)                    # lane padding of per-head layout
    est = (
        # double-buffered activation / output blocks
        2 * (N * Dq + block_m * Dc + N * Dq) * bpe_a
        # weights (constant block index but double-buffered by default)
        # NOTE: single-buffering these (pipeline_mode=pl.Buffered(1)) and tiling
        # wkv's out-dim are further VMEM savings for production model widths.
        + 2 * (Dq * inner + Dc * 2 * inner + inner * Dq + lane) * bpe_w
        # persistent scratch: q (cdt) + acc (f32) + m/l (f32, lane padded)
        + num_heads * N * d_pad * (bpe_a + f32)
        + 2 * num_heads * N * lane * f32
        # in-flight intermediates: scores + exp(p) + fused kv projection result
        + 2 * num_heads * N * block_m * f32
        + block_m * 2 * inner * f32
    )
    vmem_limit = int(min(64 * 1024 * 1024, max(32 * 1024 * 1024, 2 * est)))

    return pl.pallas_call(
        kernel,
        out_shape=jax.ShapeDtypeStruct((B, N, Dq), x.dtype),
        grid_spec=pltpu.PrefetchScalarGridSpec(
            num_scalar_prefetch=0,
            grid=(B, n_km),                         # batch: parallel, key: reduction
            in_specs=[
                pl.BlockSpec((None, N, Dq), lambda b, km: (b, 0, 0)),    # x
                pl.BlockSpec((None, block_m, Dc), lambda b, km: (b, km, 0)),  # ctx
                pl.BlockSpec((Dq, inner), lambda b, km: (0, 0)),         # Wq^T * scale
                pl.BlockSpec((Dc, 2 * inner), lambda b, km: (0, 0)),     # [Wk^T | Wv^T]
                pl.BlockSpec((inner, Dq), lambda b, km: (0, 0)),         # Wo^T
                pl.BlockSpec((1, Dq), lambda b, km: (0, 0)),             # bias
            ],
            out_specs=pl.BlockSpec((None, N, Dq), lambda b, km: (b, 0, 0)),
            scratch_shapes=[
                pltpu.VMEM((num_heads, N, head_dim), x.dtype),    # cached Q (per head)
                pltpu.VMEM((num_heads, N, 1), jnp.float32),       # running max
                pltpu.VMEM((num_heads, N, 1), jnp.float32),       # running denom
                pltpu.VMEM((num_heads, N, head_dim), jnp.float32),  # running acc
            ],
        ),
        compiler_params=pltpu.CompilerParams(
            dimension_semantics=("parallel", "arbitrary"),
            vmem_limit_bytes=vmem_limit,
        ),
    )(x, ctx, wq_scaled, wkv, wo, bo2)


def _reference(x, ctx, wq, wk, wv, wo, bo, num_heads):
    B, N, _ = x.shape
    inner = wq.shape[1]
    d = inner // num_heads
    q = x @ wq
    k = ctx @ wk
    v = ctx @ wv

    def split(t):
        b, n, _ = t.shape
        return t.reshape(b, n, num_heads, d).transpose(0, 2, 1, 3)

    q, k, v = split(q), split(k), split(v)
    sim = jnp.einsum('bhid,bhjd->bhij', q, k) * (d ** -0.5)
    sim = jax.nn.softmax(sim, axis=-1)
    out = jnp.einsum('bhij,bhjd->bhid', sim, v)
    out = out.transpose(0, 2, 1, 3).reshape(B, N, inner)
    return out @ wo + bo


if __name__ == "__main__":
    # Small module-consistent config; feature dims are multiples of 128 so the
    # output store is lane-dense: query_dim = ctx_dim = inner_dim = 128, 8 heads.
    B, N, D = 2, 16, 128
    num_heads = 8

    key = jax.random.PRNGKey(0)
    kx, kq, kk, kv, kw, kb = jax.random.split(key, 6)

    x_f32 = 0.1 * jax.random.normal(kx, (B, N, D), dtype=jnp.float32)
    # torch.nn.init.uniform_(-1, 1); stored transposed as (in, out).
    wq = jax.random.uniform(kq, (D, D), minval=-1.0, maxval=1.0, dtype=jnp.float32)
    wk = jax.random.uniform(kk, (D, D), minval=-1.0, maxval=1.0, dtype=jnp.float32)
    wv = jax.random.uniform(kv, (D, D), minval=-1.0, maxval=1.0, dtype=jnp.float32)
    wo = jax.random.uniform(kw, (D, D), minval=-1.0, maxval=1.0, dtype=jnp.float32)
    bo = jax.random.uniform(kb, (D,), minval=-1.0, maxval=1.0, dtype=jnp.float32)

    # Feed bf16 activations/weights (f32 accumulation + f32 softmax in-kernel).
    cdt = jnp.bfloat16
    x = x_f32.astype(cdt)
    ctx = x  # self-attention (forward with ctx=None)
    wq_b, wk_b, wv_b, wo_b = (w.astype(cdt) for w in (wq, wk, wv, wo))
    bo_b = bo.astype(cdt)

    # block_m=8 exercises the multi-tile flash accumulation path (2 key tiles).
    out = attention_forward(x, ctx, wq_b, wk_b, wv_b, wo_b, bo_b,
                            num_heads=num_heads, block_m=8)
    out = jax.block_until_ready(out)
    assert out.shape == (B, N, D)

    # Reference: same bf16-cast values, upcast to f32 -> only kernel arithmetic
    # (bf16 MXU inputs + approx EUP reciprocal + bf16 output store) differs.
    f32 = jnp.float32
    ref = _reference(x.astype(f32), ctx.astype(f32), wq_b.astype(f32),
                     wk_b.astype(f32), wv_b.astype(f32), wo_b.astype(f32),
                     bo_b.astype(f32), num_heads)

    max_err = float(jnp.max(jnp.abs(out.astype(f32) - ref)))
    ref_scale = float(jnp.max(jnp.abs(ref)))
    assert max_err <= 5e-2 * ref_scale + 1e-2, (max_err, ref_scale)

    print("KERNEL_OK")
</pallas_src>

<mosaic_0001>
module attributes {stable_mosaic.version = 11 : i64} {
  func.func @_attention_kernel(%arg0: i32, %arg1: i32, %arg2: memref<1x16x128xbf16, #tpu.memory_space<vmem>>, %arg3: memref<1x8x128xbf16, #tpu.memory_space<vmem>>, %arg4: memref<128x128xbf16, #tpu.memory_space<vmem>>, %arg5: memref<128x256xbf16, #tpu.memory_space<vmem>>, %arg6: memref<128x128xbf16, #tpu.memory_space<vmem>>, %arg7: memref<1x128xbf16, #tpu.memory_space<vmem>>, %arg8: memref<1x16x128xbf16, #tpu.memory_space<vmem>>, %arg9: memref<8x16x16xbf16, #tpu.memory_space<vmem>>, %arg10: memref<8x16x1xf32, #tpu.memory_space<vmem>>, %arg11: memref<8x16x1xf32, #tpu.memory_space<vmem>>, %arg12: memref<8x16x16xf32, #tpu.memory_space<vmem>>) attributes {dimension_semantics = [#tpu.dimension_semantics<parallel>, #tpu.dimension_semantics<arbitrary>], iteration_bounds = array<i64: 2, 2>, scalar_prefetch = 0 : i64, scratch_operands = 4 : i64, tpu.core_type = #tpu.core_type<tc>, window_params = [{transform_indices = @transform_0, window_bounds = array<i64: 1, 16, 128>}, {transform_indices = @transform_1, window_bounds = array<i64: 1, 8, 128>}, {pipeline_mode = #tpu.pipeline_mode<synchronous>, transform_indices = @transform_2, window_bounds = array<i64: 128, 128>}, {pipeline_mode = #tpu.pipeline_mode<synchronous>, transform_indices = @transform_3, window_bounds = array<i64: 128, 256>}, {pipeline_mode = #tpu.pipeline_mode<synchronous>, transform_indices = @transform_4, window_bounds = array<i64: 128, 128>}, {pipeline_mode = #tpu.pipeline_mode<synchronous>, transform_indices = @transform_5, window_bounds = array<i64: 1, 128>}, {transform_indices = @transform_6, window_bounds = array<i64: 1, 16, 128>}]} {
    %c0_i32 = arith.constant 0 : i32
    %0 = arith.cmpi eq, %arg1, %c0_i32 : i32
    %1 = arith.extui %0 : i1 to i32
    %c0_i32_0 = arith.constant 0 : i32
    %2 = arith.cmpi ne, %1, %c0_i32_0 : i32
    scf.if %2 {
      %c0_31 = arith.constant 0 : index
      %c0_32 = arith.constant 0 : index
      %c0_33 = arith.constant 0 : index
      %43 = vector.load %arg2[%c0_31, %c0_32, %c0_33] : memref<1x16x128xbf16, #tpu.memory_space<vmem>>, vector<1x16x128xbf16>
      %44 = vector.shape_cast %43 : vector<1x16x128xbf16> to vector<16x128xbf16>
      %c0_34 = arith.constant 0 : index
      %c0_35 = arith.constant 0 : index
      %45 = vector.load %arg4[%c0_34, %c0_35] : memref<128x128xbf16, #tpu.memory_space<vmem>>, vector<128x128xbf16>
      %cst_36 = arith.constant dense<0.000000e+00> : vector<16x128xf32>
      %46 = tpu.matmul %44, %45, %cst_36 {dimension_numbers = #tpu.dot_dimension_numbers<[1], [0], [0], [1], [0, 0, 1, 1], [], []>} : vector<16x128xbf16>, vector<128x128xbf16>, vector<16x128xf32> -> vector<16x128xf32>
      %47 = vector.shape_cast %46 : vector<16x128xf32> to vector<16x8x16xf32>
      %48 = tpu.transpose %47, [1, 0, 2] : vector<16x8x16xf32> -> vector<8x16x16xf32>
      %49 = arith.truncf %48 : vector<8x16x16xf32> to vector<8x16x16xbf16>
      %c0_37 = arith.constant 0 : index
      %c0_38 = arith.constant 0 : index
      %c0_39 = arith.constant 0 : index
      %50 = vector.load %arg9[%c0_37, %c0_38, %c0_39] : memref<8x16x16xbf16, #tpu.memory_space<vmem>>, vector<8x16x16xbf16>
      tpu.vector_store %arg9[%c0_37, %c0_38, %c0_39], %49 {strides = array<i32>} : memref<8x16x16xbf16, #tpu.memory_space<vmem>>, vector<8x16x16xbf16>,
      %cst_40 = arith.constant 0xFF800000 : f32
      %51 = vector.broadcast %cst_40 : f32 to vector<8x16x1xf32>
      %c0_41 = arith.constant 0 : index
      %c0_42 = arith.constant 0 : index
      %c0_43 = arith.constant 0 : index
      %52 = vector.load %arg10[%c0_41, %c0_42, %c0_43] : memref<8x16x1xf32, #tpu.memory_space<vmem>>, vector<8x16x1xf32>
      tpu.vector_store %arg10[%c0_41, %c0_42, %c0_43], %51 {strides = array<i32>} : memref<8x16x1xf32, #tpu.memory_space<vmem>>, vector<8x16x1xf32>,
      %cst_44 = arith.constant 0.000000e+00 : f32
      %53 = vector.broadcast %cst_44 : f32 to vector<8x16x1xf32>
      %c0_45 = arith.constant 0 : index
      %c0_46 = arith.constant 0 : index
      %c0_47 = arith.constant 0 : index
      %54 = vector.load %arg11[%c0_45, %c0_46, %c0_47] : memref<8x16x1xf32, #tpu.memory_space<vmem>>, vector<8x16x1xf32>
      tpu.vector_store %arg11[%c0_45, %c0_46, %c0_47], %53 {strides = array<i32>} : memref<8x16x1xf32, #tpu.memory_space<vmem>>, vector<8x16x1xf32>,
      %cst_48 = arith.constant 0.000000e+00 : f32
      %55 = vector.broadcast %cst_48 : f32 to vector<8x16x16xf32>
      %c0_49 = arith.constant 0 : index
      %c0_50 = arith.constant 0 : index
      %c0_51 = arith.constant 0 : index
      %56 = vector.load %arg12[%c0_49, %c0_50, %c0_51] : memref<8x16x16xf32, #tpu.memory_space<vmem>>, vector<8x16x16xf32>
      tpu.vector_store %arg12[%c0_49, %c0_50, %c0_51], %55 {strides = array<i32>} : memref<8x16x16xf32, #tpu.memory_space<vmem>>, vector<8x16x16xf32>,
    } else {
    }
    %c0 = arith.constant 0 : index
    %c0_1 = arith.constant 0 : index
    %c0_2 = arith.constant 0 : index
    %3 = vector.load %arg3[%c0, %c0_1, %c0_2] : memref<1x8x128xbf16, #tpu.memory_space<vmem>>, vector<1x8x128xbf16>
    %4 = vector.shape_cast %3 : vector<1x8x128xbf16> to vector<8x128xbf16>
    %c0_3 = arith.constant 0 : index
    %c0_4 = arith.constant 0 : index
    %5 = vector.load %arg5[%c0_3, %c0_4] : memref<128x256xbf16, #tpu.memory_space<vmem>>, vector<128x256xbf16>
    %cst = arith.constant dense<0.000000e+00> : vector<8x256xf32>
    %6 = tpu.matmul %4, %5, %cst {dimension_numbers = #tpu.dot_dimension_numbers<[1], [0], [0], [1], [0, 0, 1, 1], [], []>} : vector<8x128xbf16>, vector<128x256xbf16>, vector<8x256xf32> -> vector<8x256xf32>
    %7 = vector.extract_strided_slice %6 {offsets = [0, 0], sizes = [8, 128], strides = [1, 1]} : vector<8x256xf32> to vector<8x128xf32>
    %8 = arith.truncf %7 : vector<8x128xf32> to vector<8x128xbf16>
    %9 = vector.extract_strided_slice %6 {offsets = [0, 128], sizes = [8, 128], strides = [1, 1]} : vector<8x256xf32> to vector<8x128xf32>
    %10 = arith.truncf %9 : vector<8x128xf32> to vector<8x128xbf16>
    %11 = vector.shape_cast %8 : vector<8x128xbf16> to vector<8x8x16xbf16>
    %12 = tpu.transpose %11, [1, 0, 2] : vector<8x8x16xbf16> -> vector<8x8x16xbf16>
    %13 = vector.shape_cast %10 : vector<8x128xbf16> to vector<8x8x16xbf16>
    %14 = tpu.transpose %13, [1, 0, 2] : vector<8x8x16xbf16> -> vector<8x8x16xbf16>
    %c0_5 = arith.constant 0 : index
    %c0_6 = arith.constant 0 : index
    %c0_7 = arith.constant 0 : index
    %15 = vector.load %arg9[%c0_5, %c0_6, %c0_7] : memref<8x16x16xbf16, #tpu.memory_space<vmem>>, vector<8x16x16xbf16>
    "tpu.trace_start"() <{level = 10 : i32, message = "hnd,hmd->hnm"}> : () -> ()
    %cst_8 = arith.constant dense<0.000000e+00> : vector<8x16x8xf32>
    %16 = tpu.matmul %15, %12, %cst_8 {dimension_numbers = #tpu.dot_dimension_numbers<[2], [2], [1], [1], [0, 0, 0, 1, 1, 1], [0], [0]>} : vector<8x16x16xbf16>, vector<8x8x16xbf16>, vector<8x16x8xf32> -> vector<8x16x8xf32>
    "tpu.trace_stop"() : () -> ()
    %c0_9 = arith.constant 0 : index
    %c0_10 = arith.constant 0 : index
    %c0_11 = arith.constant 0 : index
    %17 = vector.load %arg10[%c0_9, %c0_10, %c0_11] : memref<8x16x1xf32, #tpu.memory_space<vmem>>, vector<8x16x1xf32>
    %cst_12 = arith.constant dense<0xFF800000> : vector<8x16xf32>
    %18 = vector.multi_reduction <maximumf>, %16, %cst_12 [2] : vector<8x16x8xf32> to vector<8x16xf32>
    %19 = vector.shape_cast %18 : vector<8x16xf32> to vector<8x16x1xf32>
    %20 = arith.maximumf %17, %19 : vector<8x16x1xf32>
    %21 = arith.subf %17, %20 : vector<8x16x1xf32>
    %22 = math.exp %21 : vector<8x16x1xf32>
    %23 = vector.broadcast %20 : vector<8x16x1xf32> to vector<8x16x8xf32>
    %24 = arith.subf %16, %23 : vector<8x16x8xf32>
    %25 = math.exp %24 : vector<8x16x8xf32>
    %c0_13 = arith.constant 0 : index
    %c0_14 = arith.constant 0 : index
    %c0_15 = arith.constant 0 : index
    %26 = vector.load %arg11[%c0_13, %c0_14, %c0_15] : memref<8x16x1xf32, #tpu.memory_space<vmem>>, vector<8x16x1xf32>
    %27 = arith.mulf %22, %26 : vector<8x16x1xf32>
    %cst_16 = arith.constant dense<0.000000e+00> : vector<8x16xf32>
    %28 = vector.multi_reduction <add>, %25, %cst_16 [2] : vector<8x16x8xf32> to vector<8x16xf32>
    %29 = vector.shape_cast %28 : vector<8x16xf32> to vector<8x16x1xf32>
    %30 = arith.addf %27, %29 : vector<8x16x1xf32>
    %c0_17 = arith.constant 0 : index
    %c0_18 = arith.constant 0 : index
    %c0_19 = arith.constant 0 : index
    %31 = vector.load %arg11[%c0_17, %c0_18, %c0_19] : memref<8x16x1xf32, #tpu.memory_space<vmem>>, vector<8x16x1xf32>
    tpu.vector_store %arg11[%c0_17, %c0_18, %c0_19], %30 {strides = array<i32>} : memref<8x16x1xf32, #tpu.memory_space<vmem>>, vector<8x16x1xf32>,
    %c0_20 = arith.constant 0 : index
    %c0_21 = arith.constant 0 : index
    %c0_22 = arith.constant 0 : index
    %32 = vector.load %arg12[%c0_20, %c0_21, %c0_22] : memref<8x16x16xf32, #tpu.memory_space<vmem>>, vector<8x16x16xf32>
    %33 = vector.broadcast %22 : vector<8x16x1xf32> to vector<8x16x16xf32>
    %34 = arith.mulf %33, %32 : vector<8x16x16xf32>
    %35 = arith.truncf %25 : vector<8x16x8xf32> to vector<8x16x8xbf16>
    "tpu.trace_start"() <{level = 10 : i32, message = "hnm,hmd->hnd"}> : () -> ()
    %cst_23 = arith.constant dense<0.000000e+00> : vector<8x16x16xf32>
    %36 = tpu.matmul %35, %14, %cst_23 {dimension_numbers = #tpu.dot_dimension_numbers<[2], [1], [1], [2], [0, 0, 0, 1, 1, 2], [0], [0]>} : vector<8x16x8xbf16>, vector<8x8x16xbf16>, vector<8x16x16xf32> -> vector<8x16x16xf32>
    "tpu.trace_stop"() : () -> ()
    %37 = arith.addf %34, %36 : vector<8x16x16xf32>
    %c0_24 = arith.constant 0 : index
    %c0_25 = arith.constant 0 : index
    %c0_26 = arith.constant 0 : index
    %38 = vector.load %arg12[%c0_24, %c0_25, %c0_26] : memref<8x16x16xf32, #tpu.memory_space<vmem>>, vector<8x16x16xf32>
    tpu.vector_store %arg12[%c0_24, %c0_25, %c0_26], %37 {strides = array<i32>} : memref<8x16x16xf32, #tpu.memory_space<vmem>>, vector<8x16x16xf32>,
    %c0_27 = arith.constant 0 : index
    %c0_28 = arith.constant 0 : index
    %c0_29 = arith.constant 0 : index
    %39 = vector.load %arg10[%c0_27, %c0_28, %c0_29] : memref<8x16x1xf32, #tpu.memory_space<vmem>>, vector<8x16x1xf32>
    tpu.vector_store %arg10[%c0_27, %c0_28, %c0_29], %20 {strides = array<i32>} : memref<8x16x1xf32, #tpu.memory_space<vmem>>, vector<8x16x1xf32>,
    %c1_i32 = arith.constant 1 : i32
    %40 = arith.cmpi eq, %arg1, %c1_i32 : i32
    %41 = arith.extui %40 : i1 to i32
    %c0_i32_30 = arith.constant 0 : i32
    %42 = arith.cmpi ne, %41, %c0_i32_30 : i32
    scf.if %42 {
      %c0_31 = arith.constant 0 : index
      %c0_32 = arith.constant 0 : index
      %c0_33 = arith.constant 0 : index
      %43 = vector.load %arg12[%c0_31, %c0_32, %c0_33] : memref<8x16x16xf32, #tpu.memory_space<vmem>>, vector<8x16x16xf32>
      %c0_34 = arith.constant 0 : index
      %c0_35 = arith.constant 0 : index
      %c0_36 = arith.constant 0 : index
      %44 = vector.load %arg11[%c0_34, %c0_35, %c0_36] : memref<8x16x1xf32, #tpu.memory_space<vmem>>, vector<8x16x1xf32>
      %45 = tpu.reciprocal %44 {approx = true} : vector<8x16x1xf32> -> vector<8x16x1xf32>
      %46 = vector.broadcast %45 : vector<8x16x1xf32> to vector<8x16x16xf32>
      %47 = arith.mulf %43, %46 : vector<8x16x16xf32>
      %48 = tpu.transpose %47, [1, 0, 2] : vector<8x16x16xf32> -> vector<16x8x16xf32>
      %49 = vector.shape_cast %48 : vector<16x8x16xf32> to vector<16x128xf32>
      %50 = arith.truncf %49 : vector<16x128xf32> to vector<16x128xbf16>
      %c0_37 = arith.constant 0 : index
      %c0_38 = arith.constant 0 : index
      %51 = vector.load %arg6[%c0_37, %c0_38] : memref<128x128xbf16, #tpu.memory_space<vmem>>, vector<128x128xbf16>
      %cst_39 = arith.constant dense<0.000000e+00> : vector<16x128xf32>
      %52 = tpu.matmul %50, %51, %cst_39 {dimension_numbers = #tpu.dot_dimension_numbers<[1], [0], [0], [1], [0, 0, 1, 1], [], []>} : vector<16x128xbf16>, vector<128x128xbf16>, vector<16x128xf32> -> vector<16x128xf32>
      %c0_40 = arith.constant 0 : index
      %c0_41 = arith.constant 0 : index
      %53 = vector.load %arg7[%c0_40, %c0_41] : memref<1x128xbf16, #tpu.memory_space<vmem>>, vector<1x128xbf16>
      %54 = arith.extf %53 : vector<1x128xbf16> to vector<1x128xf32>
      %55 = vector.broadcast %54 : vector<1x128xf32> to vector<16x128xf32>
      %56 = arith.addf %52, %55 : vector<16x128xf32>
      %57 = arith.truncf %56 : vector<16x128xf32> to vector<16x128xbf16>
      %c0_42 = arith.constant 0 : index
      %c0_43 = arith.constant 0 : index
      %c0_44 = arith.constant 0 : index
      %58 = vector.load %arg8[%c0_42, %c0_43, %c0_44] : memref<1x16x128xbf16, #tpu.memory_space<vmem>>, vector<1x16x128xbf16>
      %59 = vector.shape_cast %58 : vector<1x16x128xbf16> to vector<16x128xbf16>
      %60 = vector.shape_cast %57 : vector<16x128xbf16> to vector<1x16x128xbf16>
      tpu.vector_store %arg8[%c0_42, %c0_43, %c0_44], %60 {strides = array<i32>} : memref<1x16x128xbf16, #tpu.memory_space<vmem>>, vector<1x16x128xbf16>,
    } else {
    }
    return
  }
  func.func @transform_0(%arg0: i32, %arg1: i32) -> (i32, i32, i32) {
    %c0_i32 = arith.constant 0 : i32
    %c0_i32_0 = arith.constant 0 : i32
    %c0_i32_1 = arith.constant 0 : i32
    return %arg0, %c0_i32, %c0_i32_0 : i32, i32, i32
  }
  func.func @transform_1(%arg0: i32, %arg1: i32) -> (i32, i32, i32) {
    %c0_i32 = arith.constant 0 : i32
    %c0_i32_0 = arith.constant 0 : i32
    return %arg0, %arg1, %c0_i32 : i32, i32, i32
  }
  func.func @transform_2(%arg0: i32, %arg1: i32) -> (i32, i32) {
    %c0_i32 = arith.constant 0 : i32
    %c0_i32_0 = arith.constant 0 : i32
    %c0_i32_1 = arith.constant 0 : i32
    return %c0_i32, %c0_i32_0 : i32, i32
  }
  func.func @transform_3(%arg0: i32, %arg1: i32) -> (i32, i32) {
    %c0_i32 = arith.constant 0 : i32
    %c0_i32_0 = arith.constant 0 : i32
    %c0_i32_1 = arith.constant 0 : i32
    return %c0_i32, %c0_i32_0 : i32, i32
  }
  func.func @transform_4(%arg0: i32, %arg1: i32) -> (i32, i32) {
    %c0_i32 = arith.constant 0 : i32
    %c0_i32_0 = arith.constant 0 : i32
    %c0_i32_1 = arith.constant 0 : i32
    return %c0_i32, %c0_i32_0 : i32, i32
  }
  func.func @transform_5(%arg0: i32, %arg1: i32) -> (i32, i32) {
    %c0_i32 = arith.constant 0 : i32
    %c0_i32_0 = arith.constant 0 : i32
    %c0_i32_1 = arith.constant 0 : i32
    return %c0_i32, %c0_i32_0 : i32, i32
  }
  func.func @transform_6(%arg0: i32, %arg1: i32) -> (i32, i32, i32) {
    %c0_i32 = arith.constant 0 : i32
    %c0_i32_0 = arith.constant 0 : i32
    %c0_i32_1 = arith.constant 0 : i32
    return %arg0, %c0_i32, %c0_i32_0 : i32, i32, i32
  }
}

</mosaic_0001>

<llo_original>
// kernel: tpu_custom_call.1
$region0: #{tpu_custom_call.1}
  #allocation0 [shape = 'u32[]', space=smem, size = 0x4, offset = 0x4, fixed_abs, tag = 'smem constant byte address 0x4 - core index']
  #allocation1 [shape = 'u32[144,128]{1,0:T(1,128)}', space=vmem, size = 0x12000, scoped, tag = 'internal scratch']
  #allocation2 [shape = 'bf16[8,16,16]{2,1,0:T(8,128)(2,1)}', space=vmem, size = 0x8000, scoped, tag = 'scratch operand']
  #allocation3 [shape = 'f32[8,16,1]{2,1,0:T(8,128)}', space=vmem, size = 0x10000, scoped, tag = 'scratch operand']
  #allocation4 [shape = 'f32[8,16,1]{2,1,0:T(8,128)}', space=vmem, size = 0x10000, scoped, tag = 'scratch operand']
  #allocation5 [shape = 'f32[8,16,16]{2,1,0:T(8,128)}', space=vmem, size = 0x10000, scoped, tag = 'scratch operand']
  %s0 = inlined_call_operand.hbm [shape: bf16[2,16,128], index: 0, kind: input, shape index: {}]
  %s1 = inlined_call_operand.hbm [shape: bf16[2,16,128], index: 1, kind: input, shape index: {}]
  %s2 = inlined_call_operand.hbm [shape: bf16[128,128], index: 2, kind: input, shape index: {}]
  %s3 = inlined_call_operand.hbm [shape: bf16[128,256], index: 3, kind: input, shape index: {}]
  %s4 = inlined_call_operand.hbm [shape: bf16[128,128], index: 4, kind: input, shape index: {}]
  %s5 = inlined_call_operand.vmem [shape: bf16[1,128], index: 5, kind: input, shape index: {}]
  %s6 = inlined_call_operand.hbm [shape: bf16[2,16,128], index: 6, kind: output, shape index: {}]
  %s7 = sld [smem:[#allocation0]]
  $region85: #{tpu_custom_call.1} parent=0
    _
  %s9 = ssub.s32 1, %s7
  %s10 = scalar_select 0, %s9, %s7
  $region1: #{tpu_custom_call.1} parent=0
    #allocation6 [shape = 'u8[8192]{0}', space=vmem, size = 0x2000, scoped, tag = 'input window, operand 0']
    #allocation7 [shape = 's32[2]{0}', space=sflag, size = 0x8, scoped, tag = 'scoped memory for tpu_custom_call.1']
    #allocation8 [shape = 's32[2]{0}', space=sflag, size = 0x8, scoped, tag = 'scoped memory for tpu_custom_call.1']
    #allocation9 [shape = 'u8[4096]{0}', space=vmem, size = 0x1000, scoped, tag = 'input window, operand 1']
    #allocation10 [shape = 's32[2]{0}', space=sflag, size = 0x8, scoped, tag = 'scoped memory for tpu_custom_call.1']
    #allocation11 [shape = 'u8[32768]{0}', space=vmem, size = 0x8000, scoped, tag = 'input window, operand 2, single buffered']
    #allocation12 [shape = 'u8[65536]{0}', space=vmem, size = 0x10000, scoped, tag = 'input window, operand 3, single buffered']
    #allocation13 [shape = 's32[1]{0}', space=sflag, size = 0x4, scoped, tag = 'scoped memory for tpu_custom_call.1']
    #allocation14 [shape = 'u8[32768]{0}', space=vmem, size = 0x8000, scoped, tag = 'input window, operand 4, single buffered']
    #allocation15 [shape = 'u8[8192]{0}', space=vmem, size = 0x2000, scoped, tag = 'output window, operand 0']
    %11 = vsyncpa [#allocation7], 0
    %s12 = scalar_lea.sflag [#allocation7], 1
    %13 = vsyncpa %s12, 0
    %14 = vsyncpa [#allocation10], 0
    %s15 = scalar_lea.sflag [#allocation10], 1
    %16 = vsyncpa %s15, 0
    %17 = vsyncpa [#allocation13], 0
    %18 = vsyncpa [#allocation8], 0
    %s19 = scalar_lea.sflag [#allocation8], 1
    %20 = vsyncpa %s19, 0
    loop: start=0, step=1, limit=6
    $region2: #{tpu_custom_call.1} parent=1 // loop_pre_header
      _
    $region3: #{tpu_custom_call.1} parent=1 // loop_header
      %s22 = sphi 0, %s26
      %p23 = scmp.ge.s32.totalorder %s22, 6
      %s29 = sphi 0, %s41
      %s30 = sphi 0, %s37
      %s31 = sphi 0, %s29
      %s32 = sphi 0, %s30
      %s33 = sphi 0, %s31
      %s34 = sphi 0, %s32
      %s44 = sphi 0, %s46
      %s47 = sphi 0, %s44
      %s48 = sphi 0, %s47
      %s64 = sphi 0, %s48
      %s72 = sphi 0, %s74
      %s75 = sphi 0, %s72
      %s76 = sphi 0, %s75
      %s92 = sphi 0, %s76
      %s96 = sphi 0, %s96
      %s98 = sphi 0, %s96
      %s99 = sphi 0, %s98
      %s113 = sphi 0, %s99
      %s117 = sphi 0, %s117
      %s119 = sphi 0, %s117
      %s120 = sphi 0, %s119
      %s134 = sphi 0, %s120
      %s138 = sphi 0, %s138
      %s140 = sphi 0, %s138
      %s141 = sphi 0, %s140
      %s155 = sphi 0, %s141
      %s159 = sphi 0, %s159
      %s161 = sphi 0, %s159
      %s162 = sphi 0, %s161
      %s176 = sphi 0, %s162
      %s182 = sphi 0, %s184
      %s185 = sphi 0, %s182
      %s186 = sphi 0, %s185
      %s202 = sphi 0, %s186
    $region4: #{tpu_custom_call.1} parent=1 // loop_header_branch
      %25 = sbr.rel (%p23) target = $region8
    $region5: #{tpu_custom_call.1} parent=1 // loop_body
      %s27 = ssub.s32 %s22, 1
      %s28 = ssub.s32 %s22, 2
      %s35 = sadd.s32 1, %s30
      %p36 = scmp.ge.s32.totalorder %s35, 2
      %s37 = scalar_select %p36, 0, %s35
      %s38 = sadd.s32 1, %s29
      %s39 = scalar_select %p36, %s38, %s29
      %p40 = scmp.ge.s32.totalorder %s39, 2
      %s41 = scalar_select %p40, 0, %s39
      %s42 = ssub.s32 %s29, %s41
      %p43 = scmp.eq.s32.totalorder %s42, 0
      %s45 = sadd.s32 %s44, 1
      %s46 = scalar_select %p43, %s44, %s45
      %p49 = pneg %p43
      %p50 = scmp.eq.s32.totalorder %s22, 3
      %p51 = por %p49, %p50
      %p52 = scmp.ne.s32.totalorder %s44, %s47
      %p53 = scmp.eq.s32.totalorder %s22, 0
      %p54 = por %p52, %p53
      %p55 = scmp.ne.s32.totalorder %s44, %s47
      %p56 = scmp.eq.s32.totalorder %s27, 3
      %p57 = por %p55, %p56
      %p58 = scmp.ne.s32.totalorder %s47, %s48
      %p59 = scmp.eq.s32.totalorder %s27, 0
      %p60 = por %p58, %p59
      %p61 = scmp.ne.s32.totalorder %s47, %s48
      %p62 = scmp.eq.s32.totalorder %s28, 3
      %p63 = por %p61, %p62
      %p65 = scmp.ne.s32.totalorder %s48, %s64
      %p66 = scmp.eq.s32.totalorder %s28, 0
      %p67 = por %p65, %p66
      %s68 = ssub.s32 %s29, %s41
      %s69 = ssub.s32 %s30, %s37
      %s70 = sor.u32 %s68, %s69
      %p71 = scmp.eq.s32.totalorder %s70, 0
      %s73 = sadd.s32 %s72, 1
      %s74 = scalar_select %p71, %s72, %s73
      %p77 = pneg %p71
      %p78 = scmp.eq.s32.totalorder %s22, 3
      %p79 = por %p77, %p78
      %p80 = scmp.ne.s32.totalorder %s72, %s75
      %p81 = scmp.eq.s32.totalorder %s22, 0
      %p82 = por %p80, %p81
      %p83 = scmp.ne.s32.totalorder %s72, %s75
      %p84 = scmp.eq.s32.totalorder %s27, 3
      %p85 = por %p83, %p84
      %p86 = scmp.ne.s32.totalorder %s75, %s76
      %p87 = scmp.eq.s32.totalorder %s27, 0
      %p88 = por %p86, %p87
      %p89 = scmp.ne.s32.totalorder %s75, %s76
      %p90 = scmp.eq.s32.totalorder %s28, 3
      %p91 = por %p89, %p90
      %p93 = scmp.ne.s32.totalorder %s76, %s92
      %p94 = scmp.eq.s32.totalorder %s28, 0
      %p95 = por %p93, %p94
      %s97 = sadd.s32 %s96, 1
      %p100 = scmp.eq.s32.totalorder %s22, 3
      %p101 = scmp.ne.s32.totalorder %s96, %s98
      %p102 = scmp.eq.s32.totalorder %s22, 0
      %p103 = por %p101, %p102
      %p104 = scmp.ne.s32.totalorder %s96, %s98
      %p105 = scmp.eq.s32.totalorder %s27, 3
      %p106 = por %p104, %p105
      %p107 = scmp.ne.s32.totalorder %s98, %s99
      %p108 = scmp.eq.s32.totalorder %s27, 0
      %p109 = por %p107, %p108
      %p110 = scmp.ne.s32.totalorder %s98, %s99
      %p111 = scmp.eq.s32.totalorder %s28, 3
      %p112 = por %p110, %p111
      %p114 = scmp.ne.s32.totalorder %s99, %s113
      %p115 = scmp.eq.s32.totalorder %s28, 0
      %p116 = por %p114, %p115
      %s118 = sadd.s32 %s117, 1
      %p121 = scmp.eq.s32.totalorder %s22, 3
      %p122 = scmp.ne.s32.totalorder %s117, %s119
      %p123 = scmp.eq.s32.totalorder %s22, 0
      %p124 = por %p122, %p123
      %p125 = scmp.ne.s32.totalorder %s117, %s119
      %p126 = scmp.eq.s32.totalorder %s27, 3
      %p127 = por %p125, %p126
      %p128 = scmp.ne.s32.totalorder %s119, %s120
      %p129 = scmp.eq.s32.totalorder %s27, 0
      %p130 = por %p128, %p129
      %p131 = scmp.ne.s32.totalorder %s119, %s120
      %p132 = scmp.eq.s32.totalorder %s28, 3
      %p133 = por %p131, %p132
      %p135 = scmp.ne.s32.totalorder %s120, %s134
      %p136 = scmp.eq.s32.totalorder %s28, 0
      %p137 = por %p135, %p136
      %s139 = sadd.s32 %s138, 1
      %p142 = scmp.eq.s32.totalorder %s22, 3
      %p143 = scmp.ne.s32.totalorder %s138, %s140
      %p144 = scmp.eq.s32.totalorder %s22, 0
      %p145 = por %p143, %p144
      %p146 = scmp.ne.s32.totalorder %s138, %s140
      %p147 = scmp.eq.s32.totalorder %s27, 3
      %p148 = por %p146, %p147
      %p149 = scmp.ne.s32.totalorder %s140, %s141
      %p150 = scmp.eq.s32.totalorder %s27, 0
      %p151 = por %p149, %p150
      %p152 = scmp.ne.s32.totalorder %s140, %s141
      %p153 = scmp.eq.s32.totalorder %s28, 3
      %p154 = por %p152, %p153
      %p156 = scmp.ne.s32.totalorder %s141, %s155
      %p157 = scmp.eq.s32.totalorder %s28, 0
      %p158 = por %p156, %p157
      %s160 = sadd.s32 %s159, 1
      %p163 = scmp.eq.s32.totalorder %s22, 3
      %p164 = scmp.ne.s32.totalorder %s159, %s161
      %p165 = scmp.eq.s32.totalorder %s22, 0
      %p166 = por %p164, %p165
      %p167 = scmp.ne.s32.totalorder %s159, %s161
      %p168 = scmp.eq.s32.totalorder %s27, 3
      %p169 = por %p167, %p168
      %p170 = scmp.ne.s32.totalorder %s161, %s162
      %p171 = scmp.eq.s32.totalorder %s27, 0
      %p172 = por %p170, %p171
      %p173 = scmp.ne.s32.totalorder %s161, %s162
      %p174 = scmp.eq.s32.totalorder %s28, 3
      %p175 = por %p173, %p174
      %p177 = scmp.ne.s32.totalorder %s162, %s176
      %p178 = scmp.eq.s32.totalorder %s28, 0
      %p179 = por %p177, %p178
      %s180 = ssub.s32 %s29, %s41
      %p181 = scmp.eq.s32.totalorder %s180, 0
      %s183 = sadd.s32 %s182, 1
      %s184 = scalar_select %p181, %s182, %s183
      %p187 = pneg %p181
      %p188 = scmp.eq.s32.totalorder %s22, 3
      %p189 = por %p187, %p188
      %p190 = scmp.ne.s32.totalorder %s182, %s185
      %p191 = scmp.eq.s32.totalorder %s22, 0
      %p192 = por %p190, %p191
      %p193 = scmp.ne.s32.totalorder %s182, %s185
      %p194 = scmp.eq.s32.totalorder %s27, 3
      %p195 = por %p193, %p194
      %p196 = scmp.ne.s32.totalorder %s185, %s186
      %p197 = scmp.eq.s32.totalorder %s27, 0
      %p198 = por %p196, %p197
      %p199 = scmp.ne.s32.totalorder %s185, %s186
      %p200 = scmp.eq.s32.totalorder %s28, 3
      %p201 = por %p199, %p200
      %p203 = scmp.ne.s32.totalorder %s186, %s202
      %p204 = scmp.eq.s32.totalorder %s28, 0
      %p205 = por %p203, %p204
      %p206 = scmp.le.s32.totalorder 1, %s22
      %p207 = scmp.lt.s32.totalorder %s22, 5
      %p208 = pnand %p206, %p207
      %p209 = pneg %p208
      // Predicated region
      $region9: #{tpu_custom_call.1} parent=5 // pred_check
        _
      $region10: #{tpu_custom_call.1} parent=5 // pred_check_branch
        %211 = sbr.rel (%p208) target = $region12
      $region11: #{tpu_custom_call.1} parent=5 // pred_region
        %s212 = ssub.s32 %s22, 1
        // Predicated region
        $region13: #{tpu_custom_call.1} parent=11 // pred_check
          %p213 = pneg %p109
        $region14: #{tpu_custom_call.1} parent=11 // pred_check_branch
          %215 = sbr.rel (%p213) target = $region16
        $region15: #{tpu_custom_call.1} parent=11 // pred_region
          %s217 = ssub.s32 1024, 1024
          %218 = vsyncadd [#allocation10], %s217
          %s219 = sshll.u32 [#allocation11], 4
          %s220 = int_to_ptr.vmem [resolvable:$true] %s219
          %225 = dma.hbm_to_vmem [thread:$0]  %s2, 1024, %s220, [#allocation10], 64, 64, 4
        $region16: #{tpu_custom_call.1} parent=11 // pred_fallthru
          _
        // Predicated region
        $region17: #{tpu_custom_call.1} parent=11 // pred_check
          %p226 = pneg %p130
        $region18: #{tpu_custom_call.1} parent=11 // pred_check_branch
          %228 = sbr.rel (%p226) target = $region20
        $region19: #{tpu_custom_call.1} parent=11 // pred_region
          %s230 = ssub.s32 2048, 2048
          %231 = vsyncadd [#allocation13], %s230
          %s232 = sshll.u32 [#allocation12], 4
          %s233 = int_to_ptr.vmem [resolvable:$true] %s232
          %238 = dma.hbm_to_vmem [thread:$0]  %s3, 2048, %s233, [#allocation13], 128, 128, 8
        $region20: #{tpu_custom_call.1} parent=11 // pred_fallthru
          _
        // Predicated region
        $region21: #{tpu_custom_call.1} parent=11 // pred_check
          %p239 = pneg %p151
        $region22: #{tpu_custom_call.1} parent=11 // pred_check_branch
          %241 = sbr.rel (%p239) target = $region24
        $region23: #{tpu_custom_call.1} parent=11 // pred_region
          %s243 = ssub.s32 1024, 1024
          %244 = vsyncadd [#allocation13], %s243
          %s245 = sshll.u32 [#allocation14], 4
          %s246 = int_to_ptr.vmem [resolvable:$true] %s245
          %251 = dma.hbm_to_vmem [thread:$0]  %s4, 1024, %s246, [#allocation13], 64, 64, 4
        $region24: #{tpu_custom_call.1} parent=11 // pred_fallthru
          _
        // Predicated region
        $region25: #{tpu_custom_call.1} parent=11 // pred_check
          %p252 = pneg %p172
        $region26: #{tpu_custom_call.1} parent=11 // pred_check_branch
          %254 = sbr.rel (%p252) target = $region28
        $region27: #{tpu_custom_call.1} parent=11 // pred_region
          _
        $region28: #{tpu_custom_call.1} parent=11 // pred_fallthru
          _
      $region12: #{tpu_custom_call.1} parent=5 // pred_fallthru
        _
      %p255 = scmp.lt.s32.totalorder %s22, 4
      // Predicated region
      $region29: #{tpu_custom_call.1} parent=5 // pred_check
        %p256 = pneg %p255
      $region30: #{tpu_custom_call.1} parent=5 // pred_check_branch
        %258 = sbr.rel (%p256) target = $region32
      $region31: #{tpu_custom_call.1} parent=5 // pred_region
        // Predicated region
        $region33: #{tpu_custom_call.1} parent=31 // pred_check
          %p259 = pneg %p54
        $region34: #{tpu_custom_call.1} parent=31 // pred_check_branch
          %261 = sbr.rel (%p259) target = $region36
        $region35: #{tpu_custom_call.1} parent=31 // pred_region
          %s262 = sand.u32 %s44, 1
          %s263 = scalar_lea.sflag [#allocation7], %s262
          %s264 = sand.u32 %s44, 1
          %s265 = smul.addr %s264, 8
          %s266 = scalar_lea.vmem [#allocation6], %s265
          %s268 = ssub.s32 128, 128
          %269 = vsyncadd %s263, %s268
          %s270 = smul.addr %s29, 2
          %s271 = smul.addr %s270, 64
          %s272 = scalar_lea.hbm %s0, %s271
          %s273 = sshll.u32 %s266, 4
          %s274 = int_to_ptr.vmem [resolvable:$true] %s273
          %279 = dma.hbm_to_vmem [thread:$0]  %s272, 128, %s274, %s263, 64, 64, 4
        $region36: #{tpu_custom_call.1} parent=31 // pred_fallthru
          _
        // Predicated region
        $region37: #{tpu_custom_call.1} parent=31 // pred_check
          %p280 = pneg %p82
        $region38: #{tpu_custom_call.1} parent=31 // pred_check_branch
          %282 = sbr.rel (%p280) target = $region40
        $region39: #{tpu_custom_call.1} parent=31 // pred_region
          %s283 = sand.u32 %s22, 1
          %s284 = scalar_lea.sflag [#allocation10], %s283
          %s285 = sand.u32 %s72, 1
          %s286 = smul.addr %s285, 4
          %s287 = scalar_lea.vmem [#allocation9], %s286
          %s289 = ssub.s32 64, 64
          %290 = vsyncadd %s284, %s289
          %s291 = smul.addr %s29, 2
          %s292 = sadd.s32 %s30, %s291
          %s293 = smul.addr %s292, 64
          %s294 = scalar_lea.hbm %s1, %s293
          %s296 = sshll.u32 %s287, 4
          %s297 = int_to_ptr.vmem [resolvable:$true] %s296
          %299 = dma.hbm_to_vmem [thread:$0]  %s294, 64, %s297, %s284
        $region40: #{tpu_custom_call.1} parent=31 // pred_fallthru
          _
      $region32: #{tpu_custom_call.1} parent=5 // pred_fallthru
        _
      %p300 = scmp.le.s32.totalorder 1, %s22
      %p301 = scmp.lt.s32.totalorder %s22, 5
      %p302 = pnand %p300, %p301
      %p303 = pneg %p302
      // Predicated region
      $region41: #{tpu_custom_call.1} parent=5 // pred_check
        _
      $region42: #{tpu_custom_call.1} parent=5 // pred_check_branch
        %305 = sbr.rel (%p302) target = $region44
      $region43: #{tpu_custom_call.1} parent=5 // pred_region
        %s306 = ssub.s32 %s22, 1
        %s307 = sand.u32 %s47, 1
        %s308 = scalar_lea.sflag [#allocation7], %s307
        %s309 = sand.u32 %s47, 1
        %s310 = smul.addr %s309, 8
        %s311 = scalar_lea.vmem [#allocation6], %s310
        // Predicated region
        $region45: #{tpu_custom_call.1} parent=43 // pred_check
          %p312 = pneg %p60
        $region46: #{tpu_custom_call.1} parent=43 // pred_check_branch
          %314 = sbr.rel (%p312) target = $region48
        $region47: #{tpu_custom_call.1} parent=43 // pred_region
          %315 = dma.done %s308, 128
        $region48: #{tpu_custom_call.1} parent=43 // pred_fallthru
          _
        %s316 = sand.u32 %s27, 1
        %s317 = scalar_lea.sflag [#allocation10], %s316
        %s318 = sand.u32 %s75, 1
        %s319 = smul.addr %s318, 4
        %s320 = scalar_lea.vmem [#allocation9], %s319
        // Predicated region
        $region49: #{tpu_custom_call.1} parent=43 // pred_check
          %p321 = pneg %p88
        $region50: #{tpu_custom_call.1} parent=43 // pred_check_branch
          %323 = sbr.rel (%p321) target = $region52
        $region51: #{tpu_custom_call.1} parent=43 // pred_region
          %324 = dma.done %s317, 64
        $region52: #{tpu_custom_call.1} parent=43 // pred_fallthru
          _
        // Predicated region
        $region53: #{tpu_custom_call.1} parent=43 // pred_check
          %p325 = pneg %p109
        $region54: #{tpu_custom_call.1} parent=43 // pred_check_branch
          %327 = sbr.rel (%p325) target = $region56
        $region55: #{tpu_custom_call.1} parent=43 // pred_region
          %328 = dma.done [#allocation10], 1024
        $region56: #{tpu_custom_call.1} parent=43 // pred_fallthru
          _
        // Predicated region
        $region57: #{tpu_custom_call.1} parent=43 // pred_check
          %p329 = pneg %p130
        $region58: #{tpu_custom_call.1} parent=43 // pred_check_branch
          %331 = sbr.rel (%p329) target = $region60
        $region59: #{tpu_custom_call.1} parent=43 // pred_region
          %332 = dma.done [#allocation13], 2048
        $region60: #{tpu_custom_call.1} parent=43 // pred_fallthru
          _
        // Predicated region
        $region61: #{tpu_custom_call.1} parent=43 // pred_check
          %p333 = pneg %p151
        $region62: #{tpu_custom_call.1} parent=43 // pred_check_branch
          %335 = sbr.rel (%p333) target = $region64
        $region63: #{tpu_custom_call.1} parent=43 // pred_region
          %336 = dma.done [#allocation13], 1024
        $region64: #{tpu_custom_call.1} parent=43 // pred_fallthru
          _
        %s337 = sand.u32 %s47, 1
        %s338 = scalar_lea.sflag [#allocation7], %s337
        %s339 = sand.u32 %s47, 1
        %s340 = smul.addr %s339, 8
        %s341 = scalar_lea.vmem [#allocation6], %s340
        %p342 = pneg %p60
        %p343 = pneg %p57
        %s344 = sand.u32 %s27, 1
        %s345 = scalar_lea.sflag [#allocation10], %s344
        %s346 = sand.u32 %s75, 1
        %s347 = smul.addr %s346, 4
        %s348 = scalar_lea.vmem [#allocation9], %s347
        %p349 = pneg %p88
        %p350 = pneg %p85
        %p351 = pneg %p109
        %p352 = pneg %p106
        %p353 = pneg %p130
        %p354 = pneg %p127
        %p355 = pneg %p151
        %p356 = pneg %p148
        %p357 = pneg %p172
        %p358 = pneg %p169
        %p359 = pneg %p198
        %p360 = pneg %p195
        %s361 = sand.u32 %s185, 1
        %s362 = scalar_lea.sflag [#allocation8], %s361
        %s363 = sand.u32 %s185, 1
        %s364 = smul.addr %s363, 8
        %s365 = scalar_lea.vmem [#allocation15], %s364
        %p367 = scmp.eq.s32.totalorder %s32, 0
        // Predicated region
        $region65: #{tpu_custom_call.1} parent=43 // pred_check
          %p368 = pneg %p367
        $region66: #{tpu_custom_call.1} parent=43 // pred_check_branch
          %370 = sbr.rel (%p368) target = $region68
        $region67: #{tpu_custom_call.1} parent=43 // pred_region
          %v371 = vld [vmem:[%s311] sm:$0xf]
          %v372 = vld [vmem:[%s311 + $0x4] sm:$0xf]
          %v373 = vld [vmem:[#allocation11] sm:$0xf]
          %v374 = vld [vmem:[#allocation11 + $0x4] sm:$0xf]
          %v375 = vld [vmem:[#allocation11 + $0x8] sm:$0xf]
          %v376 = vld [vmem:[#allocation11 + $0xc] sm:$0xf]
          %v377 = vld [vmem:[#allocation11 + $0x10] sm:$0xf]
          %v378 = vld [vmem:[#allocation11 + $0x14] sm:$0xf]
          %v379 = vld [vmem:[#allocation11 + $0x18] sm:$0xf]
          %v380 = vld [vmem:[#allocation11 + $0x1c] sm:$0xf]
          %v381 = vld [vmem:[#allocation11 + $0x20] sm:$0xf]
          %v382 = vld [vmem:[#allocation11 + $0x24] sm:$0xf]
          %v383 = vld [vmem:[#allocation11 + $0x28] sm:$0xf]
          %v384 = vld [vmem:[#allocation11 + $0x2c] sm:$0xf]
          %v385 = vld [vmem:[#allocation11 + $0x30] sm:$0xf]
          %v386 = vld [vmem:[#allocation11 + $0x34] sm:$0xf]
          %v387 = vld [vmem:[#allocation11 + $0x38] sm:$0xf]
          %v388 = vld [vmem:[#allocation11 + $0x3c] sm:$0xf]
          %v391 = vunpack.c.l.b16 %v371
          %v392 = vunpack.c.l.b16 %v372
          %v393 = vpack.c.b16 %v392, %v391
          %v411 = vunpack.c.l.b16 %v373
          %v412 = vunpack.c.l.b16 %v374
          %v413 = vunpack.c.l.b16 %v375
          %v414 = vunpack.c.l.b16 %v376
          %v415 = vunpack.c.l.b16 %v377
          %v416 = vunpack.c.l.b16 %v378
          %v417 = vunpack.c.l.b16 %v379
          %v418 = vunpack.c.l.b16 %v380
          %v419 = vunpack.c.l.b16 %v381
          %v420 = vunpack.c.l.b16 %v382
          %v421 = vunpack.c.l.b16 %v383
          %v422 = vunpack.c.l.b16 %v384
          %v423 = vunpack.c.l.b16 %v385
          %v424 = vunpack.c.l.b16 %v386
          %v425 = vunpack.c.l.b16 %v387
          %v426 = vunpack.c.l.b16 %v388
          %v427 = vpack.c.b16 %v412, %v411
          %v428 = vpack.c.b16 %v414, %v413
          %v429 = vpack.c.b16 %v416, %v415
          %v430 = vpack.c.b16 %v418, %v417
          %v431 = vpack.c.b16 %v420, %v419
          %v432 = vpack.c.b16 %v422, %v421
          %v433 = vpack.c.b16 %v424, %v423
          %v434 = vpack.c.b16 %v426, %v425
          %443 = vmatprep.subr.bf16.mxu0 0
          %444 = vmatpush1.bf16.msra.mxu0 %v434
          %445 = vmatprep.subr.bf16.mxu0 0
          %446 = vmatpush1.bf16.msra.mxu0 %v433
          %447 = vmatprep.subr.bf16.mxu0 0
          %448 = vmatpush1.bf16.msra.mxu0 %v432
          %449 = vmatprep.subr.bf16.mxu0 0
          %450 = vmatpush1.bf16.msra.mxu0 %v431
          %451 = vmatprep.subr.bf16.mxu0 0
          %452 = vmatpush1.bf16.msra.mxu0 %v430
          %453 = vmatprep.subr.bf16.mxu0 0
          %454 = vmatpush1.bf16.msra.mxu0 %v429
          %455 = vmatprep.subr.bf16.mxu0 0
          %456 = vmatpush1.bf16.msra.mxu0 %v428
          %457 = vmatprep.subr.bf16.mxu0 0
          %458 = vmatpush1.bf16.msra.mxu0 %v427
          %459 = vmatprep.subr.bf16.mxu0 0
          %460 = vmatpush2.bf16.msra.mxu0 0
          %461 = vmatprep.subr.bf16.mxu0 0
          %462 = vmatpush2.bf16.msra.mxu0 0
          %463 = vmatprep.subr.bf16.mxu0 0
          %464 = vmatpush2.bf16.msra.mxu0 0
          %465 = vmatprep.subr.bf16.mxu0 0
          %466 = vmatpush2.bf16.msra.mxu0 0
          %467 = vmatprep.subr.bf16.mxu0 0
          %468 = vmatpush2.bf16.msra.mxu0 0
          %469 = vmatprep.subr.bf16.mxu0 0
          %470 = vmatpush2.bf16.msra.mxu0 0
          %471 = vmatprep.subr.bf16.mxu0 0
          %472 = vmatpush2.bf16.msra.mxu0 0
          %473 = vmatprep.subr.bf16.mxu0 0
          %474 = vmatpush2.bf16.msra.mxu0 0
          %475 = vmatprep.mubr.bf16.mxu0 0
          %476 = vmatmul.mubr.bf16.gmra.mxu0 %v393
          %v477 = vpop.f32.mrf.mxu0
          %v478 = vadd.f32 0.0, %v477
          %v479 = vpop.f32.mrf.mxu0
          %v480 = vpop.f32.mrf.mxu0
          %v481 = vadd.f32 0.0, %v480
          %v482 = vpop.f32.mrf.mxu0
          %483 = vdwg.mxu0
          %486 = vrot.lane.b32.xlu0 %v478, 112
          %v487 = vpop.permute.xlu0 %486
          %488 = vrot.lane.b32.xlu0 %v481, 112
          %v489 = vpop.permute.xlu0 %488
          %492 = vrot.lane.b32.xlu0 %v478, 96
          %v493 = vpop.permute.xlu0 %492
          %494 = vrot.lane.b32.xlu0 %v481, 96
          %v495 = vpop.permute.xlu0 %494
          %498 = vrot.lane.b32.xlu0 %v478, 80
          %v499 = vpop.permute.xlu0 %498
          %500 = vrot.lane.b32.xlu0 %v481, 80
          %v501 = vpop.permute.xlu0 %500
          %504 = vrot.lane.b32.xlu0 %v478, 64
          %v505 = vpop.permute.xlu0 %504
          %506 = vrot.lane.b32.xlu0 %v481, 64
          %v507 = vpop.permute.xlu0 %506
          %510 = vrot.lane.b32.xlu0 %v478, 48
          %v511 = vpop.permute.xlu0 %510
          %512 = vrot.lane.b32.xlu0 %v481, 48
          %v513 = vpop.permute.xlu0 %512
          %516 = vrot.lane.b32.xlu0 %v478, 32
          %v517 = vpop.permute.xlu0 %516
          %518 = vrot.lane.b32.xlu0 %v481, 32
          %v519 = vpop.permute.xlu0 %518
          %522 = vrot.lane.b32.xlu0 %v478, 16
          %v523 = vpop.permute.xlu0 %522
          %524 = vrot.lane.b32.xlu0 %v481, 16
          %v525 = vpop.permute.xlu0 %524
          %v528 = vcombine.low %v478, %v493
          %v529 = vcombine.high %v478, %v493
          %v531 = vunpack.c.l.s4 1983009808
          %v532 = vunpack.c.0.s8 %v531
          %v533 = vlaneseq
          %v534 = vshrl.u32 %v533, 7
          %v535 = vsub.s32 %v532, %v534
          %v536 = vrot.slane %v528, %v535
          %v538 = vunpack.c.l.s4 1983009808
          %v539 = vunpack.c.0.s8 %v538
          %v540 = vlaneseq
          %v541 = vshrl.u32 %v540, 7
          %v542 = vsub.s32 %v539, %v541
          %v543 = vrot.slane %v529, %v542
          %v544 = vcombine.low %v487, %v499
          %v545 = vcombine.high %v487, %v499
          %v547 = vunpack.c.l.s4 1983009808
          %v548 = vunpack.c.0.s8 %v547
          %v549 = vlaneseq
          %v550 = vshrl.u32 %v549, 7
          %v551 = vsub.s32 %v548, %v550
          %v552 = vrot.slane %v544, %v551
          %v554 = vunpack.c.l.s4 1983009808
          %v555 = vunpack.c.0.s8 %v554
          %v556 = vlaneseq
          %v557 = vshrl.u32 %v556, 7
          %v558 = vsub.s32 %v555, %v557
          %v559 = vrot.slane %v545, %v558
          %v560 = vcombine.low %v505, %v517
          %v561 = vcombine.high %v505, %v517
          %v563 = vunpack.c.l.s4 1983009808
          %v564 = vunpack.c.0.s8 %v563
          %v565 = vlaneseq
          %v566 = vshrl.u32 %v565, 7
          %v567 = vsub.s32 %v564, %v566
          %v568 = vrot.slane %v560, %v567
          %v570 = vunpack.c.l.s4 1983009808
          %v571 = vunpack.c.0.s8 %v570
          %v572 = vlaneseq
          %v573 = vshrl.u32 %v572, 7
          %v574 = vsub.s32 %v571, %v573
          %v575 = vrot.slane %v561, %v574
          %v576 = vcombine.low %v511, %v523
          %v577 = vcombine.high %v511, %v523
          %v579 = vunpack.c.l.s4 1983009808
          %v580 = vunpack.c.0.s8 %v579
          %v581 = vlaneseq
          %v582 = vshrl.u32 %v581, 7
          %v583 = vsub.s32 %v580, %v582
          %v584 = vrot.slane %v576, %v583
          %v586 = vunpack.c.l.s4 1983009808
          %v587 = vunpack.c.0.s8 %v586
          %v588 = vlaneseq
          %v589 = vshrl.u32 %v588, 7
          %v590 = vsub.s32 %v587, %v589
          %v591 = vrot.slane %v577, %v590
          %v592 = vcombine.low %v536, %v552
          %v593 = vcombine.high %v536, %v552
          %v595 = vunpack.c.l.s4 1934713408
          %v596 = vunpack.c.0.s8 %v595
          %v597 = vlaneseq
          %v598 = vshrl.u32 %v597, 7
          %v599 = vsub.s32 %v596, %v598
          %v600 = vrot.slane %v592, %v599
          %v602 = vunpack.c.l.s4 1934713408
          %v603 = vunpack.c.0.s8 %v602
          %v604 = vlaneseq
          %v605 = vshrl.u32 %v604, 7
          %v606 = vsub.s32 %v603, %v605
          %v607 = vrot.slane %v593, %v606
          %v608 = vcombine.low %v543, %v559
          %v609 = vcombine.high %v543, %v559
          %v611 = vunpack.c.l.s4 1934713408
          %v612 = vunpack.c.0.s8 %v611
          %v613 = vlaneseq
          %v614 = vshrl.u32 %v613, 7
          %v615 = vsub.s32 %v612, %v614
          %v616 = vrot.slane %v608, %v615
          %v618 = vunpack.c.l.s4 1934713408
          %v619 = vunpack.c.0.s8 %v618
          %v620 = vlaneseq
          %v621 = vshrl.u32 %v620, 7
          %v622 = vsub.s32 %v619, %v621
          %v623 = vrot.slane %v609, %v622
          %v624 = vcombine.low %v568, %v584
          %v625 = vcombine.high %v568, %v584
          %v627 = vunpack.c.l.s4 1934713408
          %v628 = vunpack.c.0.s8 %v627
          %v629 = vlaneseq
          %v630 = vshrl.u32 %v629, 7
          %v631 = vsub.s32 %v628, %v630
          %v632 = vrot.slane %v624, %v631
          %v634 = vunpack.c.l.s4 1934713408
          %v635 = vunpack.c.0.s8 %v634
          %v636 = vlaneseq
          %v637 = vshrl.u32 %v636, 7
          %v638 = vsub.s32 %v635, %v637
          %v639 = vrot.slane %v625, %v638
          %v640 = vcombine.low %v575, %v591
          %v641 = vcombine.high %v575, %v591
          %v643 = vunpack.c.l.s4 1934713408
          %v644 = vunpack.c.0.s8 %v643
          %v645 = vlaneseq
          %v646 = vshrl.u32 %v645, 7
          %v647 = vsub.s32 %v644, %v646
          %v648 = vrot.slane %v640, %v647
          %v650 = vunpack.c.l.s4 1934713408
          %v651 = vunpack.c.0.s8 %v650
          %v652 = vlaneseq
          %v653 = vshrl.u32 %v652, 7
          %v654 = vsub.s32 %v651, %v653
          %v655 = vrot.slane %v641, %v654
          %v656 = vcombine.low %v600, %v632
          %v657 = vcombine.high %v600, %v632
          %v658 = vcombine.low %v607, %v639
          %v659 = vcombine.high %v607, %v639
          %v660 = vcombine.low %v616, %v648
          %v661 = vcombine.high %v616, %v648
          %v662 = vcombine.low %v623, %v655
          %v663 = vcombine.high %v623, %v655
          %v664 = vcombine.low %v481, %v495
          %v665 = vcombine.high %v481, %v495
          %v667 = vunpack.c.l.s4 1983009808
          %v668 = vunpack.c.0.s8 %v667
          %v669 = vlaneseq
          %v670 = vshrl.u32 %v669, 7
          %v671 = vsub.s32 %v668, %v670
          %v672 = vrot.slane %v664, %v671
          %v674 = vunpack.c.l.s4 1983009808
          %v675 = vunpack.c.0.s8 %v674
          %v676 = vlaneseq
          %v677 = vshrl.u32 %v676, 7
          %v678 = vsub.s32 %v675, %v677
          %v679 = vrot.slane %v665, %v678
          %v680 = vcombine.low %v489, %v501
          %v681 = vcombine.high %v489, %v501
          %v683 = vunpack.c.l.s4 1983009808
          %v684 = vunpack.c.0.s8 %v683
          %v685 = vlaneseq
          %v686 = vshrl.u32 %v685, 7
          %v687 = vsub.s32 %v684, %v686
          %v688 = vrot.slane %v680, %v687
          %v690 = vunpack.c.l.s4 1983009808
          %v691 = vunpack.c.0.s8 %v690
          %v692 = vlaneseq
          %v693 = vshrl.u32 %v692, 7
          %v694 = vsub.s32 %v691, %v693
          %v695 = vrot.slane %v681, %v694
          %v696 = vcombine.low %v507, %v519
          %v697 = vcombine.high %v507, %v519
          %v699 = vunpack.c.l.s4 1983009808
          %v700 = vunpack.c.0.s8 %v699
          %v701 = vlaneseq
          %v702 = vshrl.u32 %v701, 7
          %v703 = vsub.s32 %v700, %v702
          %v704 = vrot.slane %v696, %v703
          %v706 = vunpack.c.l.s4 1983009808
          %v707 = vunpack.c.0.s8 %v706
          %v708 = vlaneseq
          %v709 = vshrl.u32 %v708, 7
          %v710 = vsub.s32 %v707, %v709
          %v711 = vrot.slane %v697, %v710
          %v712 = vcombine.low %v513, %v525
          %v713 = vcombine.high %v513, %v525
          %v715 = vunpack.c.l.s4 1983009808
          %v716 = vunpack.c.0.s8 %v715
          %v717 = vlaneseq
          %v718 = vshrl.u32 %v717, 7
          %v719 = vsub.s32 %v716, %v718
          %v720 = vrot.slane %v712, %v719
          %v722 = vunpack.c.l.s4 1983009808
          %v723 = vunpack.c.0.s8 %v722
          %v724 = vlaneseq
          %v725 = vshrl.u32 %v724, 7
          %v726 = vsub.s32 %v723, %v725
          %v727 = vrot.slane %v713, %v726
          %v728 = vcombine.low %v672, %v688
          %v729 = vcombine.high %v672, %v688
          %v731 = vunpack.c.l.s4 1934713408
          %v732 = vunpack.c.0.s8 %v731
          %v733 = vlaneseq
          %v734 = vshrl.u32 %v733, 7
          %v735 = vsub.s32 %v732, %v734
          %v736 = vrot.slane %v728, %v735
          %v738 = vunpack.c.l.s4 1934713408
          %v739 = vunpack.c.0.s8 %v738
          %v740 = vlaneseq
          %v741 = vshrl.u32 %v740, 7
          %v742 = vsub.s32 %v739, %v741
          %v743 = vrot.slane %v729, %v742
          %v744 = vcombine.low %v679, %v695
          %v745 = vcombine.high %v679, %v695
          %v747 = vunpack.c.l.s4 1934713408
          %v748 = vunpack.c.0.s8 %v747
          %v749 = vlaneseq
          %v750 = vshrl.u32 %v749, 7
          %v751 = vsub.s32 %v748, %v750
          %v752 = vrot.slane %v744, %v751
          %v754 = vunpack.c.l.s4 1934713408
          %v755 = vunpack.c.0.s8 %v754
          %v756 = vlaneseq
          %v757 = vshrl.u32 %v756, 7
          %v758 = vsub.s32 %v755, %v757
          %v759 = vrot.slane %v745, %v758
          %v760 = vcombine.low %v704, %v720
          %v761 = vcombine.high %v704, %v720
          %v763 = vunpack.c.l.s4 1934713408
          %v764 = vunpack.c.0.s8 %v763
          %v765 = vlaneseq
          %v766 = vshrl.u32 %v765, 7
          %v767 = vsub.s32 %v764, %v766
          %v768 = vrot.slane %v760, %v767
          %v770 = vunpack.c.l.s4 1934713408
          %v771 = vunpack.c.0.s8 %v770
          %v772 = vlaneseq
          %v773 = vshrl.u32 %v772, 7
          %v774 = vsub.s32 %v771, %v773
          %v775 = vrot.slane %v761, %v774
          %v776 = vcombine.low %v711, %v727
          %v777 = vcombine.high %v711, %v727
          %v779 = vunpack.c.l.s4 1934713408
          %v780 = vunpack.c.0.s8 %v779
          %v781 = vlaneseq
          %v782 = vshrl.u32 %v781, 7
          %v783 = vsub.s32 %v780, %v782
          %v784 = vrot.slane %v776, %v783
          %v786 = vunpack.c.l.s4 1934713408
          %v787 = vunpack.c.0.s8 %v786
          %v788 = vlaneseq
          %v789 = vshrl.u32 %v788, 7
          %v790 = vsub.s32 %v787, %v789
          %v791 = vrot.slane %v777, %v790
          %v792 = vcombine.low %v736, %v768
          %v793 = vcombine.high %v736, %v768
          %v794 = vcombine.low %v743, %v775
          %v795 = vcombine.high %v743, %v775
          %v796 = vcombine.low %v752, %v784
          %v797 = vcombine.high %v752, %v784
          %v798 = vcombine.low %v759, %v791
          %v799 = vcombine.high %v759, %v791
          %v800 = vcombine.low %v656, %v658
          %v801 = vcombine.high %v656, %v658
          %v803 = vunpack.c.l.s4 1983009808
          %v804 = vunpack.c.0.s8 %v803
          %v805 = vlaneseq
          %v806 = vshrl.u32 %v805, 7
          %v807 = vsub.s32 %v804, %v806
          %v808 = vrot.slane %v800, %v807
          %v810 = vunpack.c.l.s4 1983009808
          %v811 = vunpack.c.0.s8 %v810
          %v812 = vlaneseq
          %v813 = vshrl.u32 %v812, 7
          %v814 = vsub.s32 %v811, %v813
          %v815 = vrot.slane %v801, %v814
          %v816 = vcombine.low %v657, %v659
          %v817 = vcombine.high %v657, %v659
          %v819 = vunpack.c.l.s4 1983009808
          %v820 = vunpack.c.0.s8 %v819
          %v821 = vlaneseq
          %v822 = vshrl.u32 %v821, 7
          %v823 = vsub.s32 %v820, %v822
          %v824 = vrot.slane %v816, %v823
          %v826 = vunpack.c.l.s4 1983009808
          %v827 = vunpack.c.0.s8 %v826
          %v828 = vlaneseq
          %v829 = vshrl.u32 %v828, 7
          %v830 = vsub.s32 %v827, %v829
          %v831 = vrot.slane %v817, %v830
          %v832 = vcombine.low %v660, %v662
          %v833 = vcombine.high %v660, %v662
          %v835 = vunpack.c.l.s4 1983009808
          %v836 = vunpack.c.0.s8 %v835
          %v837 = vlaneseq
          %v838 = vshrl.u32 %v837, 7
          %v839 = vsub.s32 %v836, %v838
          %v840 = vrot.slane %v832, %v839
          %v842 = vunpack.c.l.s4 1983009808
          %v843 = vunpack.c.0.s8 %v842
          %v844 = vlaneseq
          %v845 = vshrl.u32 %v844, 7
          %v846 = vsub.s32 %v843, %v845
          %v847 = vrot.slane %v833, %v846
          %v848 = vcombine.low %v661, %v663
          %v849 = vcombine.high %v661, %v663
          %v851 = vunpack.c.l.s4 1983009808
          %v852 = vunpack.c.0.s8 %v851
          %v853 = vlaneseq
          %v854 = vshrl.u32 %v853, 7
          %v855 = vsub.s32 %v852, %v854
          %v856 = vrot.slane %v848, %v855
          %v858 = vunpack.c.l.s4 1983009808
          %v859 = vunpack.c.0.s8 %v858
          %v860 = vlaneseq
          %v861 = vshrl.u32 %v860, 7
          %v862 = vsub.s32 %v859, %v861
          %v863 = vrot.slane %v849, %v862
          %v864 = vcombine.low %v808, %v824
          %v865 = vcombine.high %v808, %v824
          %v867 = vunpack.c.l.s4 1934713408
          %v868 = vunpack.c.0.s8 %v867
          %v869 = vlaneseq
          %v870 = vshrl.u32 %v869, 7
          %v871 = vsub.s32 %v868, %v870
          %v872 = vrot.slane %v864, %v871
          %v874 = vunpack.c.l.s4 1934713408
          %v875 = vunpack.c.0.s8 %v874
          %v876 = vlaneseq
          %v877 = vshrl.u32 %v876, 7
          %v878 = vsub.s32 %v875, %v877
          %v879 = vrot.slane %v865, %v878
          %v880 = vcombine.low %v815, %v831
          %v881 = vcombine.high %v815, %v831
          %v883 = vunpack.c.l.s4 1934713408
          %v884 = vunpack.c.0.s8 %v883
          %v885 = vlaneseq
          %v886 = vshrl.u32 %v885, 7
          %v887 = vsub.s32 %v884, %v886
          %v888 = vrot.slane %v880, %v887
          %v890 = vunpack.c.l.s4 1934713408
          %v891 = vunpack.c.0.s8 %v890
          %v892 = vlaneseq
          %v893 = vshrl.u32 %v892, 7
          %v894 = vsub.s32 %v891, %v893
          %v895 = vrot.slane %v881, %v894
          %v896 = vcombine.low %v840, %v856
          %v897 = vcombine.high %v840, %v856
          %v899 = vunpack.c.l.s4 1934713408
          %v900 = vunpack.c.0.s8 %v899
          %v901 = vlaneseq
          %v902 = vshrl.u32 %v901, 7
          %v903 = vsub.s32 %v900, %v902
          %v904 = vrot.slane %v896, %v903
          %v906 = vunpack.c.l.s4 1934713408
          %v907 = vunpack.c.0.s8 %v906
          %v908 = vlaneseq
          %v909 = vshrl.u32 %v908, 7
          %v910 = vsub.s32 %v907, %v909
          %v911 = vrot.slane %v897, %v910
          %v912 = vcombine.low %v847, %v863
          %v913 = vcombine.high %v847, %v863
          %v915 = vunpack.c.l.s4 1934713408
          %v916 = vunpack.c.0.s8 %v915
          %v917 = vlaneseq
          %v918 = vshrl.u32 %v917, 7
          %v919 = vsub.s32 %v916, %v918
          %v920 = vrot.slane %v912, %v919
          %v922 = vunpack.c.l.s4 1934713408
          %v923 = vunpack.c.0.s8 %v922
          %v924 = vlaneseq
          %v925 = vshrl.u32 %v924, 7
          %v926 = vsub.s32 %v923, %v925
          %v927 = vrot.slane %v913, %v926
          %v928 = vcombine.low %v872, %v904
          %v929 = vcombine.high %v872, %v904
          %v930 = vcombine.low %v879, %v911
          %v931 = vcombine.high %v879, %v911
          %v932 = vcombine.low %v888, %v920
          %v933 = vcombine.high %v888, %v920
          %v934 = vcombine.low %v895, %v927
          %v935 = vcombine.high %v895, %v927
          %v936 = vcombine.low %v792, %v794
          %v937 = vcombine.high %v792, %v794
          %v939 = vunpack.c.l.s4 1983009808
          %v940 = vunpack.c.0.s8 %v939
          %v941 = vlaneseq
          %v942 = vshrl.u32 %v941, 7
          %v943 = vsub.s32 %v940, %v942
          %v944 = vrot.slane %v936, %v943
          %v946 = vunpack.c.l.s4 1983009808
          %v947 = vunpack.c.0.s8 %v946
          %v948 = vlaneseq
          %v949 = vshrl.u32 %v948, 7
          %v950 = vsub.s32 %v947, %v949
          %v951 = vrot.slane %v937, %v950
          %v952 = vcombine.low %v793, %v795
          %v953 = vcombine.high %v793, %v795
          %v955 = vunpack.c.l.s4 1983009808
          %v956 = vunpack.c.0.s8 %v955
          %v957 = vlaneseq
          %v958 = vshrl.u32 %v957, 7
          %v959 = vsub.s32 %v956, %v958
          %v960 = vrot.slane %v952, %v959
          %v962 = vunpack.c.l.s4 1983009808
          %v963 = vunpack.c.0.s8 %v962
          %v964 = vlaneseq
          %v965 = vshrl.u32 %v964, 7
          %v966 = vsub.s32 %v963, %v965
          %v967 = vrot.slane %v953, %v966
          %v968 = vcombine.low %v796, %v798
          %v969 = vcombine.high %v796, %v798
          %v971 = vunpack.c.l.s4 1983009808
          %v972 = vunpack.c.0.s8 %v971
          %v973 = vlaneseq
          %v974 = vshrl.u32 %v973, 7
          %v975 = vsub.s32 %v972, %v974
          %v976 = vrot.slane %v968, %v975
          %v978 = vunpack.c.l.s4 1983009808
          %v979 = vunpack.c.0.s8 %v978
          %v980 = vlaneseq
          %v981 = vshrl.u32 %v980, 7
          %v982 = vsub.s32 %v979, %v981
          %v983 = vrot.slane %v969, %v982
          %v984 = vcombine.low %v797, %v799
          %v985 = vcombine.high %v797, %v799
          %v987 = vunpack.c.l.s4 1983009808
          %v988 = vunpack.c.0.s8 %v987
          %v989 = vlaneseq
          %v990 = vshrl.u32 %v989, 7
          %v991 = vsub.s32 %v988, %v990
          %v992 = vrot.slane %v984, %v991
          %v994 = vunpack.c.l.s4 1983009808
          %v995 = vunpack.c.0.s8 %v994
          %v996 = vlaneseq
          %v997 = vshrl.u32 %v996, 7
          %v998 = vsub.s32 %v995, %v997
          %v999 = vrot.slane %v985, %v998
          %v1000 = vcombine.low %v944, %v960
          %v1001 = vcombine.high %v944, %v960
          %v1003 = vunpack.c.l.s4 1934713408
          %v1004 = vunpack.c.0.s8 %v1003
          %v1005 = vlaneseq
          %v1006 = vshrl.u32 %v1005, 7
          %v1007 = vsub.s32 %v1004, %v1006
          %v1008 = vrot.slane %v1000, %v1007
          %v1010 = vunpack.c.l.s4 1934713408
          %v1011 = vunpack.c.0.s8 %v1010
          %v1012 = vlaneseq
          %v1013 = vshrl.u32 %v1012, 7
          %v1014 = vsub.s32 %v1011, %v1013
          %v1015 = vrot.slane %v1001, %v1014
          %v1016 = vcombine.low %v951, %v967
          %v1017 = vcombine.high %v951, %v967
          %v1019 = vunpack.c.l.s4 1934713408
          %v1020 = vunpack.c.0.s8 %v1019
          %v1021 = vlaneseq
          %v1022 = vshrl.u32 %v1021, 7
          %v1023 = vsub.s32 %v1020, %v1022
          %v1024 = vrot.slane %v1016, %v1023
          %v1026 = vunpack.c.l.s4 1934713408
          %v1027 = vunpack.c.0.s8 %v1026
          %v1028 = vlaneseq
          %v1029 = vshrl.u32 %v1028, 7
          %v1030 = vsub.s32 %v1027, %v1029
          %v1031 = vrot.slane %v1017, %v1030
          %v1032 = vcombine.low %v976, %v992
          %v1033 = vcombine.high %v976, %v992
          %v1035 = vunpack.c.l.s4 1934713408
          %v1036 = vunpack.c.0.s8 %v1035
          %v1037 = vlaneseq
          %v1038 = vshrl.u32 %v1037, 7
          %v1039 = vsub.s32 %v1036, %v1038
          %v1040 = vrot.slane %v1032, %v1039
          %v1042 = vunpack.c.l.s4 1934713408
          %v1043 = vunpack.c.0.s8 %v1042
          %v1044 = vlaneseq
          %v1045 = vshrl.u32 %v1044, 7
          %v1046 = vsub.s32 %v1043, %v1045
          %v1047 = vrot.slane %v1033, %v1046
          %v1048 = vcombine.low %v983, %v999
          %v1049 = vcombine.high %v983, %v999
          %v1051 = vunpack.c.l.s4 1934713408
          %v1052 = vunpack.c.0.s8 %v1051
          %v1053 = vlaneseq
          %v1054 = vshrl.u32 %v1053, 7
          %v1055 = vsub.s32 %v1052, %v1054
          %v1056 = vrot.slane %v1048, %v1055
          %v1058 = vunpack.c.l.s4 1934713408
          %v1059 = vunpack.c.0.s8 %v1058
          %v1060 = vlaneseq
          %v1061 = vshrl.u32 %v1060, 7
          %v1062 = vsub.s32 %v1059, %v1061
          %v1063 = vrot.slane %v1049, %v1062
          %v1064 = vcombine.low %v1008, %v1040
          %v1065 = vcombine.high %v1008, %v1040
          %v1066 = vcombine.low %v1015, %v1047
          %v1067 = vcombine.high %v1015, %v1047
          %v1068 = vcombine.low %v1024, %v1056
          %v1069 = vcombine.high %v1024, %v1056
          %v1070 = vcombine.low %v1031, %v1063
          %v1071 = vcombine.high %v1031, %v1063
          %v1072 = vpack.c.bf16 %v1064, %v928
          %v1073 = vpack.c.bf16 %v1065, %v929
          %v1074 = vpack.c.bf16 %v1066, %v930
          %v1075 = vpack.c.bf16 %v1067, %v931
          %v1076 = vpack.c.bf16 %v1068, %v932
          %v1077 = vpack.c.bf16 %v1069, %v933
          %v1078 = vpack.c.bf16 %v1070, %v934
          %v1079 = vpack.c.bf16 %v1071, %v935
          %v1088 = vunpack.c.l.b16 %v1072
          %v1089 = vunpack.c.h.b16 %v1072
          %v1090 = vunpack.c.l.b16 %v1073
          %v1091 = vunpack.c.h.b16 %v1073
          %v1092 = vunpack.c.l.b16 %v1074
          %v1093 = vunpack.c.h.b16 %v1074
          %v1094 = vunpack.c.l.b16 %v1075
          %v1095 = vunpack.c.h.b16 %v1075
          %v1096 = vunpack.c.l.b16 %v1076
          %v1097 = vunpack.c.h.b16 %v1076
          %v1098 = vunpack.c.l.b16 %v1077
          %v1099 = vunpack.c.h.b16 %v1077
          %v1100 = vunpack.c.l.b16 %v1078
          %v1101 = vunpack.c.h.b16 %v1078
          %v1102 = vunpack.c.l.b16 %v1079
          %v1103 = vunpack.c.h.b16 %v1079
          %v1104 = vpack.c.b16 %v1088, %v1088
          %v1105 = vpack.c.b16 %v1089, %v1089
          %v1106 = vpack.c.b16 %v1090, %v1090
          %v1107 = vpack.c.b16 %v1091, %v1091
          %v1108 = vpack.c.b16 %v1092, %v1092
          %v1109 = vpack.c.b16 %v1093, %v1093
          %v1110 = vpack.c.b16 %v1094, %v1094
          %v1111 = vpack.c.b16 %v1095, %v1095
          %v1112 = vpack.c.b16 %v1096, %v1096
          %v1113 = vpack.c.b16 %v1097, %v1097
          %v1114 = vpack.c.b16 %v1098, %v1098
          %v1115 = vpack.c.b16 %v1099, %v1099
          %v1116 = vpack.c.b16 %v1100, %v1100
          %v1117 = vpack.c.b16 %v1101, %v1101
          %v1118 = vpack.c.b16 %v1102, %v1102
          %v1119 = vpack.c.b16 %v1103, %v1103
          %vm1136 = vcmask 125952
          %1137 = vst.msk [vmem:[#allocation2] sm:$0xf] %vm1136, %v1104
          %1138 = vst.msk [vmem:[#allocation2 + $0x4] sm:$0xf] %vm1136, %v1105
          %1139 = vst.msk [vmem:[#allocation2 + $0x8] sm:$0xf] %vm1136, %v1106
          %1140 = vst.msk [vmem:[#allocation2 + $0xc] sm:$0xf] %vm1136, %v1107
          %1141 = vst.msk [vmem:[#allocation2 + $0x10] sm:$0xf] %vm1136, %v1108
          %1142 = vst.msk [vmem:[#allocation2 + $0x14] sm:$0xf] %vm1136, %v1109
          %1143 = vst.msk [vmem:[#allocation2 + $0x18] sm:$0xf] %vm1136, %v1110
          %1144 = vst.msk [vmem:[#allocation2 + $0x1c] sm:$0xf] %vm1136, %v1111
          %1145 = vst.msk [vmem:[#allocation2 + $0x20] sm:$0xf] %vm1136, %v1112
          %1146 = vst.msk [vmem:[#allocation2 + $0x24] sm:$0xf] %vm1136, %v1113
          %1147 = vst.msk [vmem:[#allocation2 + $0x28] sm:$0xf] %vm1136, %v1114
          %1148 = vst.msk [vmem:[#allocation2 + $0x2c] sm:$0xf] %vm1136, %v1115
          %1149 = vst.msk [vmem:[#allocation2 + $0x30] sm:$0xf] %vm1136, %v1116
          %1150 = vst.msk [vmem:[#allocation2 + $0x34] sm:$0xf] %vm1136, %v1117
          %1151 = vst.msk [vmem:[#allocation2 + $0x38] sm:$0xf] %vm1136, %v1118
          %1152 = vst.msk [vmem:[#allocation2 + $0x3c] sm:$0xf] %vm1136, %v1119
          %vm1153 = vcmask 7168
          %1154 = vst.msk [vmem:[#allocation3] sm:$0xff] %vm1153, -inf
          %1155 = vst.msk [vmem:[#allocation3 + $0x8] sm:$0xff] %vm1153, -inf
          %1156 = vst.msk [vmem:[#allocation3 + $0x10] sm:$0xff] %vm1153, -inf
          %1157 = vst.msk [vmem:[#allocation3 + $0x18] sm:$0xff] %vm1153, -inf
          %1158 = vst.msk [vmem:[#allocation3 + $0x20] sm:$0xff] %vm1153, -inf
          %1159 = vst.msk [vmem:[#allocation3 + $0x28] sm:$0xff] %vm1153, -inf
          %1160 = vst.msk [vmem:[#allocation3 + $0x30] sm:$0xff] %vm1153, -inf
          %1161 = vst.msk [vmem:[#allocation3 + $0x38] sm:$0xff] %vm1153, -inf
          %1162 = vst.msk [vmem:[#allocation3 + $0x40] sm:$0xff] %vm1153, -inf
          %1163 = vst.msk [vmem:[#allocation3 + $0x48] sm:$0xff] %vm1153, -inf
          %1164 = vst.msk [vmem:[#allocation3 + $0x50] sm:$0xff] %vm1153, -inf
          %1165 = vst.msk [vmem:[#allocation3 + $0x58] sm:$0xff] %vm1153, -inf
          %1166 = vst.msk [vmem:[#allocation3 + $0x60] sm:$0xff] %vm1153, -inf
          %1167 = vst.msk [vmem:[#allocation3 + $0x68] sm:$0xff] %vm1153, -inf
          %1168 = vst.msk [vmem:[#allocation3 + $0x70] sm:$0xff] %vm1153, -inf
          %1169 = vst.msk [vmem:[#allocation3 + $0x78] sm:$0xff] %vm1153, -inf
          %1170 = vst.msk [vmem:[#allocation4] sm:$0xff] %vm1153, 0.0
          %1171 = vst.msk [vmem:[#allocation4 + $0x8] sm:$0xff] %vm1153, 0.0
          %1172 = vst.msk [vmem:[#allocation4 + $0x10] sm:$0xff] %vm1153, 0.0
          %1173 = vst.msk [vmem:[#allocation4 + $0x18] sm:$0xff] %vm1153, 0.0
          %1174 = vst.msk [vmem:[#allocation4 + $0x20] sm:$0xff] %vm1153, 0.0
          %1175 = vst.msk [vmem:[#allocation4 + $0x28] sm:$0xff] %vm1153, 0.0
          %1176 = vst.msk [vmem:[#allocation4 + $0x30] sm:$0xff] %vm1153, 0.0
          %1177 = vst.msk [vmem:[#allocation4 + $0x38] sm:$0xff] %vm1153, 0.0
          %1178 = vst.msk [vmem:[#allocation4 + $0x40] sm:$0xff] %vm1153, 0.0
          %1179 = vst.msk [vmem:[#allocation4 + $0x48] sm:$0xff] %vm1153, 0.0
          %1180 = vst.msk [vmem:[#allocation4 + $0x50] sm:$0xff] %vm1153, 0.0
          %1181 = vst.msk [vmem:[#allocation4 + $0x58] sm:$0xff] %vm1153, 0.0
          %1182 = vst.msk [vmem:[#allocation4 + $0x60] sm:$0xff] %vm1153, 0.0
          %1183 = vst.msk [vmem:[#allocation4 + $0x68] sm:$0xff] %vm1153, 0.0
          %1184 = vst.msk [vmem:[#allocation4 + $0x70] sm:$0xff] %vm1153, 0.0
          %1185 = vst.msk [vmem:[#allocation4 + $0x78] sm:$0xff] %vm1153, 0.0
          %vm1186 = vcmask 130048
          %1187 = vst.msk [vmem:[#allocation5] sm:$0xff] %vm1186, 0.0
          %1188 = vst.msk [vmem:[#allocation5 + $0x8] sm:$0xff] %vm1186, 0.0
          %1189 = vst.msk [vmem:[#allocation5 + $0x10] sm:$0xff] %vm1186, 0.0
          %1190 = vst.msk [vmem:[#allocation5 + $0x18] sm:$0xff] %vm1186, 0.0
          %1191 = vst.msk [vmem:[#allocation5 + $0x20] sm:$0xff] %vm1186, 0.0
          %1192 = vst.msk [vmem:[#allocation5 + $0x28] sm:$0xff] %vm1186, 0.0
          %1193 = vst.msk [vmem:[#allocation5 + $0x30] sm:$0xff] %vm1186, 0.0
          %1194 = vst.msk [vmem:[#allocation5 + $0x38] sm:$0xff] %vm1186, 0.0
          %1195 = vst.msk [vmem:[#allocation5 + $0x40] sm:$0xff] %vm1186, 0.0
          %1196 = vst.msk [vmem:[#allocation5 + $0x48] sm:$0xff] %vm1186, 0.0
          %1197 = vst.msk [vmem:[#allocation5 + $0x50] sm:$0xff] %vm1186, 0.0
          %1198 = vst.msk [vmem:[#allocation5 + $0x58] sm:$0xff] %vm1186, 0.0
          %1199 = vst.msk [vmem:[#allocation5 + $0x60] sm:$0xff] %vm1186, 0.0
          %1200 = vst.msk [vmem:[#allocation5 + $0x68] sm:$0xff] %vm1186, 0.0
          %1201 = vst.msk [vmem:[#allocation5 + $0x70] sm:$0xff] %vm1186, 0.0
          %1202 = vst.msk [vmem:[#allocation5 + $0x78] sm:$0xff] %vm1186, 0.0
        $region68: #{tpu_custom_call.1} parent=43 // pred_fallthru
          _
        %v1203 = vld [vmem:[%s320] sm:$0xf]
        %v1204 = vld [vmem:[#allocation12] sm:$0xff]
        %v1205 = vld [vmem:[#allocation12 + $0x8] sm:$0xff]
        %v1206 = vld [vmem:[#allocation12 + $0x10] sm:$0xff]
        %v1207 = vld [vmem:[#allocation12 + $0x18] sm:$0xff]
        %v1208 = vld [vmem:[#allocation12 + $0x20] sm:$0xff]
        %v1209 = vld [vmem:[#allocation12 + $0x28] sm:$0xff]
        %v1210 = vld [vmem:[#allocation12 + $0x30] sm:$0xff]
        %v1211 = vld [vmem:[#allocation12 + $0x38] sm:$0xff]
        %v1212 = vld [vmem:[#allocation12 + $0x40] sm:$0xff]
        %v1213 = vld [vmem:[#allocation12 + $0x48] sm:$0xff]
        %v1214 = vld [vmem:[#allocation12 + $0x50] sm:$0xff]
        %v1215 = vld [vmem:[#allocation12 + $0x58] sm:$0xff]
        %v1216 = vld [vmem:[#allocation12 + $0x60] sm:$0xff]
        %v1217 = vld [vmem:[#allocation12 + $0x68] sm:$0xff]
        %v1218 = vld [vmem:[#allocation12 + $0x70] sm:$0xff]
        %v1219 = vld [vmem:[#allocation12 + $0x78] sm:$0xff]
        %v1236 = vunpack.c.l.b16 %v1204
        %v1237 = vunpack.c.h.b16 %v1204
        %v1238 = vunpack.c.l.b16 %v1205
        %v1239 = vunpack.c.h.b16 %v1205
        %v1240 = vunpack.c.l.b16 %v1206
        %v1241 = vunpack.c.h.b16 %v1206
        %v1242 = vunpack.c.l.b16 %v1207
        %v1243 = vunpack.c.h.b16 %v1207
        %v1244 = vunpack.c.l.b16 %v1208
        %v1245 = vunpack.c.h.b16 %v1208
        %v1246 = vunpack.c.l.b16 %v1209
        %v1247 = vunpack.c.h.b16 %v1209
        %v1248 = vunpack.c.l.b16 %v1210
        %v1249 = vunpack.c.h.b16 %v1210
        %v1250 = vunpack.c.l.b16 %v1211
        %v1251 = vunpack.c.h.b16 %v1211
        %v1252 = vunpack.c.l.b16 %v1212
        %v1253 = vunpack.c.h.b16 %v1212
        %v1254 = vunpack.c.l.b16 %v1213
        %v1255 = vunpack.c.h.b16 %v1213
        %v1256 = vunpack.c.l.b16 %v1214
        %v1257 = vunpack.c.h.b16 %v1214
        %v1258 = vunpack.c.l.b16 %v1215
        %v1259 = vunpack.c.h.b16 %v1215
        %v1260 = vunpack.c.l.b16 %v1216
        %v1261 = vunpack.c.h.b16 %v1216
        %v1262 = vunpack.c.l.b16 %v1217
        %v1263 = vunpack.c.h.b16 %v1217
        %v1264 = vunpack.c.l.b16 %v1218
        %v1265 = vunpack.c.h.b16 %v1218
        %v1266 = vunpack.c.l.b16 %v1219
        %v1267 = vunpack.c.h.b16 %v1219
        %v1268 = vpack.c.b16 %v1238, %v1236
        %v1269 = vpack.c.b16 %v1239, %v1237
        %v1270 = vpack.c.b16 %v1242, %v1240
        %v1271 = vpack.c.b16 %v1243, %v1241
        %v1272 = vpack.c.b16 %v1246, %v1244
        %v1273 = vpack.c.b16 %v1247, %v1245
        %v1274 = vpack.c.b16 %v1250, %v1248
        %v1275 = vpack.c.b16 %v1251, %v1249
        %v1276 = vpack.c.b16 %v1254, %v1252
        %v1277 = vpack.c.b16 %v1255, %v1253
        %v1278 = vpack.c.b16 %v1258, %v1256
        %v1279 = vpack.c.b16 %v1259, %v1257
        %v1280 = vpack.c.b16 %v1262, %v1260
        %v1281 = vpack.c.b16 %v1263, %v1261
        %v1282 = vpack.c.b16 %v1266, %v1264
        %v1283 = vpack.c.b16 %v1267, %v1265
        %1300 = vmatprep.subr.bf16.mxu0 %v1283
        %1301 = vmatpush1.bf16.msra.mxu0 %v1282
        %1302 = vmatprep.subr.bf16.mxu0 %v1281
        %1303 = vmatpush1.bf16.msra.mxu0 %v1280
        %1304 = vmatprep.subr.bf16.mxu0 %v1279
        %1305 = vmatpush1.bf16.msra.mxu0 %v1278
        %1306 = vmatprep.subr.bf16.mxu0 %v1277
        %1307 = vmatpush1.bf16.msra.mxu0 %v1276
        %1308 = vmatprep.subr.bf16.mxu0 %v1275
        %1309 = vmatpush1.bf16.msra.mxu0 %v1274
        %1310 = vmatprep.subr.bf16.mxu0 %v1273
        %1311 = vmatpush1.bf16.msra.mxu0 %v1272
        %1312 = vmatprep.subr.bf16.mxu0 %v1271
        %1313 = vmatpush1.bf16.msra.mxu0 %v1270
        %1314 = vmatprep.subr.bf16.mxu0 %v1269
        %1315 = vmatpush1.bf16.msra.mxu0 %v1268
        %1316 = vmatprep.subr.bf16.mxu0 0
        %1317 = vmatpush2.bf16.msra.mxu0 0
        %1318 = vmatprep.subr.bf16.mxu0 0
        %1319 = vmatpush2.bf16.msra.mxu0 0
        %1320 = vmatprep.subr.bf16.mxu0 0
        %1321 = vmatpush2.bf16.msra.mxu0 0
        %1322 = vmatprep.subr.bf16.mxu0 0
        %1323 = vmatpush2.bf16.msra.mxu0 0
        %1324 = vmatprep.subr.bf16.mxu0 0
        %1325 = vmatpush2.bf16.msra.mxu0 0
        %1326 = vmatprep.subr.bf16.mxu0 0
        %1327 = vmatpush2.bf16.msra.mxu0 0
        %1328 = vmatprep.subr.bf16.mxu0 0
        %1329 = vmatpush2.bf16.msra.mxu0 0
        %1330 = vmatprep.subr.bf16.mxu0 0
        %1331 = vmatpush2.bf16.msra.mxu0 0
        %1332 = vmatprep.mubr.bf16.mxu0 0
        %1333 = vmatmul.mubr.bf16.gmra.mxu0 %v1203
        %v1334 = vpop.f32.mrf.mxu0
        %v1335 = vadd.f32 0.0, %v1334
        %v1336 = vpop.f32.mrf.mxu0
        %v1337 = vadd.f32 0.0, %v1336
        %v1338 = vpop.f32.mrf.mxu0
        %v1339 = vpop.f32.mrf.mxu0
        %1340 = vdwg.mxu0
        %v1341 = vpack.c.bf16 %v1335, %v1335
        %v1342 = vpack.c.bf16 %v1337, %v1337
        %1344 = vrot.lane.b32.xlu0 %v1341, 112
        %v1345 = vpop.permute.xlu0 %1344
        %1347 = vrot.lane.b32.xlu0 %v1341, 96
        %v1348 = vpop.permute.xlu0 %1347
        %1350 = vrot.lane.b32.xlu0 %v1341, 80
        %v1351 = vpop.permute.xlu0 %1350
        %1353 = vrot.lane.b32.xlu0 %v1341, 64
        %v1354 = vpop.permute.xlu0 %1353
        %1356 = vrot.lane.b32.xlu0 %v1341, 48
        %v1357 = vpop.permute.xlu0 %1356
        %1359 = vrot.lane.b32.xlu0 %v1341, 32
        %v1360 = vpop.permute.xlu0 %1359
        %1362 = vrot.lane.b32.xlu0 %v1341, 16
        %v1363 = vpop.permute.xlu0 %1362
        %v1365 = vcombine.low %v1341, %v1354
        %v1367 = vunpack.c.l.s4 1983009808
        %v1368 = vunpack.c.0.s8 %v1367
        %v1369 = vlaneseq
        %v1370 = vshrl.u32 %v1369, 7
        %v1371 = vsub.s32 %v1368, %v1370
        %v1372 = vrot.slane %v1365, %v1371
        %v1373 = vcombine.low %v1348, %v1360
        %v1375 = vunpack.c.l.s4 1983009808
        %v1376 = vunpack.c.0.s8 %v1375
        %v1377 = vlaneseq
        %v1378 = vshrl.u32 %v1377, 7
        %v1379 = vsub.s32 %v1376, %v1378
        %v1380 = vrot.slane %v1373, %v1379
        %v1381 = vcombine.low %v1372, %v1380
        %v1382 = vcombine.high %v1372, %v1380
        %v1384 = vunpack.c.l.s4 1934713408
        %v1385 = vunpack.c.0.s8 %v1384
        %v1386 = vlaneseq
        %v1387 = vshrl.u32 %v1386, 7
        %v1388 = vsub.s32 %v1385, %v1387
        %v1389 = vrot.slane %v1381, %v1388
        %v1391 = vunpack.c.l.s4 1934713408
        %v1392 = vunpack.c.0.s8 %v1391
        %v1393 = vlaneseq
        %v1394 = vshrl.u32 %v1393, 7
        %v1395 = vsub.s32 %v1392, %v1394
        %v1396 = vrot.slane %v1382, %v1395
        %v1397 = vcombine.high %v1389, 0
        %v1398 = vcombine.high %v1396, 0
        %v1399 = vcombine.low %v1345, %v1357
        %v1401 = vunpack.c.l.s4 1983009808
        %v1402 = vunpack.c.0.s8 %v1401
        %v1403 = vlaneseq
        %v1404 = vshrl.u32 %v1403, 7
        %v1405 = vsub.s32 %v1402, %v1404
        %v1406 = vrot.slane %v1399, %v1405
        %v1407 = vcombine.low %v1351, %v1363
        %v1409 = vunpack.c.l.s4 1983009808
        %v1410 = vunpack.c.0.s8 %v1409
        %v1411 = vlaneseq
        %v1412 = vshrl.u32 %v1411, 7
        %v1413 = vsub.s32 %v1410, %v1412
        %v1414 = vrot.slane %v1407, %v1413
        %v1415 = vcombine.low %v1406, %v1414
        %v1416 = vcombine.high %v1406, %v1414
        %v1418 = vunpack.c.l.s4 1934713408
        %v1419 = vunpack.c.0.s8 %v1418
        %v1420 = vlaneseq
        %v1421 = vshrl.u32 %v1420, 7
        %v1422 = vsub.s32 %v1419, %v1421
        %v1423 = vrot.slane %v1415, %v1422
        %v1425 = vunpack.c.l.s4 1934713408
        %v1426 = vunpack.c.0.s8 %v1425
        %v1427 = vlaneseq
        %v1428 = vshrl.u32 %v1427, 7
        %v1429 = vsub.s32 %v1426, %v1428
        %v1430 = vrot.slane %v1416, %v1429
        %v1431 = vcombine.high %v1423, 0
        %v1432 = vcombine.high %v1430, 0
        %v1435 = vpack.i.b16 %v1423, %v1389
        %v1437 = vshrl.u32 %v1389, 16
        %v1438 = vshrl.u32 %v1423, 16
        %v1439 = vpack.i.b16 %v1438, %v1437
        %v1443 = vpack.i.b16 %v1431, %v1397
        %v1445 = vshrl.u32 %v1397, 16
        %v1446 = vshrl.u32 %v1431, 16
        %v1447 = vpack.i.b16 %v1446, %v1445
        %v1451 = vpack.i.b16 %v1430, %v1396
        %v1453 = vshrl.u32 %v1396, 16
        %v1454 = vshrl.u32 %v1430, 16
        %v1455 = vpack.i.b16 %v1454, %v1453
        %v1459 = vpack.i.b16 %v1432, %v1398
        %v1461 = vshrl.u32 %v1398, 16
        %v1462 = vshrl.u32 %v1432, 16
        %v1463 = vpack.i.b16 %v1462, %v1461
        %v1465 = vcombine.low %v1435, %v1451
        %v1467 = vunpack.c.l.s4 1983009808
        %v1468 = vunpack.c.0.s8 %v1467
        %v1469 = vlaneseq
        %v1470 = vshrl.u32 %v1469, 7
        %v1471 = vsub.s32 %v1468, %v1470
        %v1472 = vrot.slane %v1465, %v1471
        %v1473 = vcombine.low %v1443, %v1459
        %v1475 = vunpack.c.l.s4 1983009808
        %v1476 = vunpack.c.0.s8 %v1475
        %v1477 = vlaneseq
        %v1478 = vshrl.u32 %v1477, 7
        %v1479 = vsub.s32 %v1476, %v1478
        %v1480 = vrot.slane %v1473, %v1479
        %v1481 = vcombine.low %v1472, %v1480
        %v1482 = vcombine.high %v1472, %v1480
        %v1484 = vunpack.c.l.s4 1934713408
        %v1485 = vunpack.c.0.s8 %v1484
        %v1486 = vlaneseq
        %v1487 = vshrl.u32 %v1486, 7
        %v1488 = vsub.s32 %v1485, %v1487
        %v1489 = vrot.slane %v1481, %v1488
        %v1491 = vunpack.c.l.s4 1934713408
        %v1492 = vunpack.c.0.s8 %v1491
        %v1493 = vlaneseq
        %v1494 = vshrl.u32 %v1493, 7
        %v1495 = vsub.s32 %v1492, %v1494
        %v1496 = vrot.slane %v1482, %v1495
        %v1497 = vcombine.high %v1489, 0
        %v1498 = vcombine.high %v1496, 0
        %v1499 = vcombine.low %v1439, %v1455
        %v1501 = vunpack.c.l.s4 1983009808
        %v1502 = vunpack.c.0.s8 %v1501
        %v1503 = vlaneseq
        %v1504 = vshrl.u32 %v1503, 7
        %v1505 = vsub.s32 %v1502, %v1504
        %v1506 = vrot.slane %v1499, %v1505
        %v1507 = vcombine.low %v1447, %v1463
        %v1509 = vunpack.c.l.s4 1983009808
        %v1510 = vunpack.c.0.s8 %v1509
        %v1511 = vlaneseq
        %v1512 = vshrl.u32 %v1511, 7
        %v1513 = vsub.s32 %v1510, %v1512
        %v1514 = vrot.slane %v1507, %v1513
        %v1515 = vcombine.low %v1506, %v1514
        %v1516 = vcombine.high %v1506, %v1514
        %v1518 = vunpack.c.l.s4 1934713408
        %v1519 = vunpack.c.0.s8 %v1518
        %v1520 = vlaneseq
        %v1521 = vshrl.u32 %v1520, 7
        %v1522 = vsub.s32 %v1519, %v1521
        %v1523 = vrot.slane %v1515, %v1522
        %v1525 = vunpack.c.l.s4 1934713408
        %v1526 = vunpack.c.0.s8 %v1525
        %v1527 = vlaneseq
        %v1528 = vshrl.u32 %v1527, 7
        %v1529 = vsub.s32 %v1526, %v1528
        %v1530 = vrot.slane %v1516, %v1529
        %v1531 = vcombine.high %v1523, 0
        %v1532 = vcombine.high %v1530, 0
        %v1535 = vpack.i.b16 %v1523, %v1489
        %v1536 = vshrl.u32 %v1489, 16
        %v1537 = vshrl.u32 %v1523, 16
        %v1538 = vpack.i.b16 %v1537, %v1536
        %v1541 = vpack.i.b16 %v1531, %v1497
        %v1542 = vshrl.u32 %v1497, 16
        %v1543 = vshrl.u32 %v1531, 16
        %v1544 = vpack.i.b16 %v1543, %v1542
        %v1547 = vpack.i.b16 %v1530, %v1496
        %v1548 = vshrl.u32 %v1496, 16
        %v1549 = vshrl.u32 %v1530, 16
        %v1550 = vpack.i.b16 %v1549, %v1548
        %v1553 = vpack.i.b16 %v1532, %v1498
        %v1554 = vshrl.u32 %v1498, 16
        %v1555 = vshrl.u32 %v1532, 16
        %v1556 = vpack.i.b16 %v1555, %v1554
        %1558 = vrot.lane.b32.xlu0 %v1342, 112
        %v1559 = vpop.permute.xlu0 %1558
        %1561 = vrot.lane.b32.xlu0 %v1342, 96
        %v1562 = vpop.permute.xlu0 %1561
        %1564 = vrot.lane.b32.xlu0 %v1342, 80
        %v1565 = vpop.permute.xlu0 %1564
        %1567 = vrot.lane.b32.xlu0 %v1342, 64
        %v1568 = vpop.permute.xlu0 %1567
        %1570 = vrot.lane.b32.xlu0 %v1342, 48
        %v1571 = vpop.permute.xlu0 %1570
        %1573 = vrot.lane.b32.xlu0 %v1342, 32
        %v1574 = vpop.permute.xlu0 %1573
        %1576 = vrot.lane.b32.xlu0 %v1342, 16
        %v1577 = vpop.permute.xlu0 %1576
        %v1579 = vcombine.low %v1342, %v1568
        %v1581 = vunpack.c.l.s4 1983009808
        %v1582 = vunpack.c.0.s8 %v1581
        %v1583 = vlaneseq
        %v1584 = vshrl.u32 %v1583, 7
        %v1585 = vsub.s32 %v1582, %v1584
        %v1586 = vrot.slane %v1579, %v1585
        %v1587 = vcombine.low %v1562, %v1574
        %v1589 = vunpack.c.l.s4 1983009808
        %v1590 = vunpack.c.0.s8 %v1589
        %v1591 = vlaneseq
        %v1592 = vshrl.u32 %v1591, 7
        %v1593 = vsub.s32 %v1590, %v1592
        %v1594 = vrot.slane %v1587, %v1593
        %v1595 = vcombine.low %v1586, %v1594
        %v1596 = vcombine.high %v1586, %v1594
        %v1598 = vunpack.c.l.s4 1934713408
        %v1599 = vunpack.c.0.s8 %v1598
        %v1600 = vlaneseq
        %v1601 = vshrl.u32 %v1600, 7
        %v1602 = vsub.s32 %v1599, %v1601
        %v1603 = vrot.slane %v1595, %v1602
        %v1605 = vunpack.c.l.s4 1934713408
        %v1606 = vunpack.c.0.s8 %v1605
        %v1607 = vlaneseq
        %v1608 = vshrl.u32 %v1607, 7
        %v1609 = vsub.s32 %v1606, %v1608
        %v1610 = vrot.slane %v1596, %v1609
        %v1611 = vcombine.high %v1603, 0
        %v1612 = vcombine.high %v1610, 0
        %v1613 = vcombine.low %v1559, %v1571
        %v1615 = vunpack.c.l.s4 1983009808
        %v1616 = vunpack.c.0.s8 %v1615
        %v1617 = vlaneseq
        %v1618 = vshrl.u32 %v1617, 7
        %v1619 = vsub.s32 %v1616, %v1618
        %v1620 = vrot.slane %v1613, %v1619
        %v1621 = vcombine.low %v1565, %v1577
        %v1623 = vunpack.c.l.s4 1983009808
        %v1624 = vunpack.c.0.s8 %v1623
        %v1625 = vlaneseq
        %v1626 = vshrl.u32 %v1625, 7
        %v1627 = vsub.s32 %v1624, %v1626
        %v1628 = vrot.slane %v1621, %v1627
        %v1629 = vcombine.low %v1620, %v1628
        %v1630 = vcombine.high %v1620, %v1628
        %v1632 = vunpack.c.l.s4 1934713408
        %v1633 = vunpack.c.0.s8 %v1632
        %v1634 = vlaneseq
        %v1635 = vshrl.u32 %v1634, 7
        %v1636 = vsub.s32 %v1633, %v1635
        %v1637 = vrot.slane %v1629, %v1636
        %v1639 = vunpack.c.l.s4 1934713408
        %v1640 = vunpack.c.0.s8 %v1639
        %v1641 = vlaneseq
        %v1642 = vshrl.u32 %v1641, 7
        %v1643 = vsub.s32 %v1640, %v1642
        %v1644 = vrot.slane %v1630, %v1643
        %v1645 = vcombine.high %v1637, 0
        %v1646 = vcombine.high %v1644, 0
        %v1649 = vpack.i.b16 %v1637, %v1603
        %v1651 = vshrl.u32 %v1603, 16
        %v1652 = vshrl.u32 %v1637, 16
        %v1653 = vpack.i.b16 %v1652, %v1651
        %v1657 = vpack.i.b16 %v1645, %v1611
        %v1659 = vshrl.u32 %v1611, 16
        %v1660 = vshrl.u32 %v1645, 16
        %v1661 = vpack.i.b16 %v1660, %v1659
        %v1665 = vpack.i.b16 %v1644, %v1610
        %v1667 = vshrl.u32 %v1610, 16
        %v1668 = vshrl.u32 %v1644, 16
        %v1669 = vpack.i.b16 %v1668, %v1667
        %v1673 = vpack.i.b16 %v1646, %v1612
        %v1675 = vshrl.u32 %v1612, 16
        %v1676 = vshrl.u32 %v1646, 16
        %v1677 = vpack.i.b16 %v1676, %v1675
        %v1679 = vcombine.low %v1649, %v1665
        %v1681 = vunpack.c.l.s4 1983009808
        %v1682 = vunpack.c.0.s8 %v1681
        %v1683 = vlaneseq
        %v1684 = vshrl.u32 %v1683, 7
        %v1685 = vsub.s32 %v1682, %v1684
        %v1686 = vrot.slane %v1679, %v1685
        %v1687 = vcombine.low %v1657, %v1673
        %v1689 = vunpack.c.l.s4 1983009808
        %v1690 = vunpack.c.0.s8 %v1689
        %v1691 = vlaneseq
        %v1692 = vshrl.u32 %v1691, 7
        %v1693 = vsub.s32 %v1690, %v1692
        %v1694 = vrot.slane %v1687, %v1693
        %v1695 = vcombine.low %v1686, %v1694
        %v1696 = vcombine.high %v1686, %v1694
        %v1698 = vunpack.c.l.s4 1934713408
        %v1699 = vunpack.c.0.s8 %v1698
        %v1700 = vlaneseq
        %v1701 = vshrl.u32 %v1700, 7
        %v1702 = vsub.s32 %v1699, %v1701
        %v1703 = vrot.slane %v1695, %v1702
        %v1705 = vunpack.c.l.s4 1934713408
        %v1706 = vunpack.c.0.s8 %v1705
        %v1707 = vlaneseq
        %v1708 = vshrl.u32 %v1707, 7
        %v1709 = vsub.s32 %v1706, %v1708
        %v1710 = vrot.slane %v1696, %v1709
        %v1711 = vcombine.high %v1703, 0
        %v1712 = vcombine.high %v1710, 0
        %v1713 = vcombine.low %v1653, %v1669
        %v1715 = vunpack.c.l.s4 1983009808
        %v1716 = vunpack.c.0.s8 %v1715
        %v1717 = vlaneseq
        %v1718 = vshrl.u32 %v1717, 7
        %v1719 = vsub.s32 %v1716, %v1718
        %v1720 = vrot.slane %v1713, %v1719
        %v1721 = vcombine.low %v1661, %v1677
        %v1723 = vunpack.c.l.s4 1983009808
        %v1724 = vunpack.c.0.s8 %v1723
        %v1725 = vlaneseq
        %v1726 = vshrl.u32 %v1725, 7
        %v1727 = vsub.s32 %v1724, %v1726
        %v1728 = vrot.slane %v1721, %v1727
        %v1729 = vcombine.low %v1720, %v1728
        %v1730 = vcombine.high %v1720, %v1728
        %v1732 = vunpack.c.l.s4 1934713408
        %v1733 = vunpack.c.0.s8 %v1732
        %v1734 = vlaneseq
        %v1735 = vshrl.u32 %v1734, 7
        %v1736 = vsub.s32 %v1733, %v1735
        %v1737 = vrot.slane %v1729, %v1736
        %v1739 = vunpack.c.l.s4 1934713408
        %v1740 = vunpack.c.0.s8 %v1739
        %v1741 = vlaneseq
        %v1742 = vshrl.u32 %v1741, 7
        %v1743 = vsub.s32 %v1740, %v1742
        %v1744 = vrot.slane %v1730, %v1743
        %v1745 = vcombine.high %v1737, 0
        %v1746 = vcombine.high %v1744, 0
        %v1749 = vpack.i.b16 %v1737, %v1703
        %v1750 = vshrl.u32 %v1703, 16
        %v1751 = vshrl.u32 %v1737, 16
        %v1752 = vpack.i.b16 %v1751, %v1750
        %v1755 = vpack.i.b16 %v1745, %v1711
        %v1756 = vshrl.u32 %v1711, 16
        %v1757 = vshrl.u32 %v1745, 16
        %v1758 = vpack.i.b16 %v1757, %v1756
        %v1761 = vpack.i.b16 %v1744, %v1710
        %v1762 = vshrl.u32 %v1710, 16
        %v1763 = vshrl.u32 %v1744, 16
        %v1764 = vpack.i.b16 %v1763, %v1762
        %v1767 = vpack.i.b16 %v1746, %v1712
        %v1768 = vshrl.u32 %v1712, 16
        %v1769 = vshrl.u32 %v1746, 16
        %v1770 = vpack.i.b16 %v1769, %v1768
        %v1771 = vld [vmem:[#allocation2] sm:$0xf]
        %v1772 = vld [vmem:[#allocation2 + $0x4] sm:$0xf]
        %v1773 = vld [vmem:[#allocation2 + $0x8] sm:$0xf]
        %v1774 = vld [vmem:[#allocation2 + $0xc] sm:$0xf]
        %v1775 = vld [vmem:[#allocation2 + $0x10] sm:$0xf]
        %v1776 = vld [vmem:[#allocation2 + $0x14] sm:$0xf]
        %v1777 = vld [vmem:[#allocation2 + $0x18] sm:$0xf]
        %v1778 = vld [vmem:[#allocation2 + $0x1c] sm:$0xf]
        %v1779 = vld [vmem:[#allocation2 + $0x20] sm:$0xf]
        %v1780 = vld [vmem:[#allocation2 + $0x24] sm:$0xf]
        %v1781 = vld [vmem:[#allocation2 + $0x28] sm:$0xf]
        %v1782 = vld [vmem:[#allocation2 + $0x2c] sm:$0xf]
        %v1783 = vld [vmem:[#allocation2 + $0x30] sm:$0xf]
        %v1784 = vld [vmem:[#allocation2 + $0x34] sm:$0xf]
        %v1785 = vld [vmem:[#allocation2 + $0x38] sm:$0xf]
        %v1786 = vld [vmem:[#allocation2 + $0x3c] sm:$0xf]
        %v1789 = vunpack.c.l.b16 %v1771
        %v1790 = vunpack.c.l.b16 %v1772
        %v1791 = vpack.c.b16 %v1790, %v1789
        %vm1792 = vcmask 130048
        %v1794 = vsel %vm1792, %v1791, 0
        %v1797 = vsel %vm1792, %v1535, 0
        %1799 = vmatprep.subr.bf16.mxu0 0
        %1800 = vmatpush1.bf16.xpose.msra.mxu0 0
        %1801 = vmatprep.subr.bf16.mxu0 0
        %1802 = vmatpush1.bf16.xpose.msra.mxu0 0
        %1803 = vmatprep.subr.bf16.mxu0 0
        %1804 = vmatpush1.bf16.xpose.msra.mxu0 0
        %1805 = vmatprep.subr.bf16.mxu0 0
        %1806 = vmatpush1.bf16.xpose.msra.mxu0 0
        %1807 = vmatprep.subr.bf16.mxu0 0
        %1808 = vmatpush1.bf16.xpose.msra.mxu0 0
        %1809 = vmatprep.subr.bf16.mxu0 0
        %1810 = vmatpush1.bf16.xpose.msra.mxu0 0
        %1811 = vmatprep.subr.bf16.mxu0 0
        %1812 = vmatpush1.bf16.xpose.msra.mxu0 0
        %1813 = vmatprep.subr.bf16.mxu0 0
        %1814 = vmatpush1.bf16.xpose.msra.mxu0 %v1797
        %1815 = vmatprep.subr.bf16.mxu0 0
        %1816 = vmatpush2.bf16.xpose.msra.mxu0 0
        %1817 = vmatprep.subr.bf16.mxu0 0
        %1818 = vmatpush2.bf16.xpose.msra.mxu0 0
        %1819 = vmatprep.subr.bf16.mxu0 0
        %1820 = vmatpush2.bf16.xpose.msra.mxu0 0
        %1821 = vmatprep.subr.bf16.mxu0 0
        %1822 = vmatpush2.bf16.xpose.msra.mxu0 0
        %1823 = vmatprep.subr.bf16.mxu0 0
        %1824 = vmatpush2.bf16.xpose.msra.mxu0 0
        %1825 = vmatprep.subr.bf16.mxu0 0
        %1826 = vmatpush2.bf16.xpose.msra.mxu0 0
        %1827 = vmatprep.subr.bf16.mxu0 0
        %1828 = vmatpush2.bf16.xpose.msra.mxu0 0
        %1829 = vmatprep.subr.bf16.mxu0 0
        %1830 = vmatpush2.bf16.xpose.msra.mxu0 0
        %1831 = vmatprep.mubr.bf16.mxu0 0
        %1832 = vmatmul.mubr.bf16.gmra.mxu0 %v1794
        %v1833 = vpop.f32.mrf.mxu0
        %v1834 = vadd.f32 0.0, %v1833
        %v1835 = vpop.f32.mrf.mxu0
        %v1836 = vpop.f32.mrf.mxu0
        %v1837 = vadd.f32 0.0, %v1836
        %v1838 = vpop.f32.mrf.mxu0
        %1839 = vdwg.mxu0
        %v1842 = vunpack.c.l.b16 %v1773
        %v1843 = vunpack.c.l.b16 %v1774
        %v1844 = vpack.c.b16 %v1843, %v1842
        %v1846 = vsel %vm1792, %v1844, 0
        %v1849 = vsel %vm1792, %v1538, 0
        %1851 = vmatprep.subr.bf16.mxu0 0
        %1852 = vmatpush1.bf16.xpose.msra.mxu0 0
        %1853 = vmatprep.subr.bf16.mxu0 0
        %1854 = vmatpush1.bf16.xpose.msra.mxu0 0
        %1855 = vmatprep.subr.bf16.mxu0 0
        %1856 = vmatpush1.bf16.xpose.msra.mxu0 0
        %1857 = vmatprep.subr.bf16.mxu0 0
        %1858 = vmatpush1.bf16.xpose.msra.mxu0 0
        %1859 = vmatprep.subr.bf16.mxu0 0
        %1860 = vmatpush1.bf16.xpose.msra.mxu0 0
        %1861 = vmatprep.subr.bf16.mxu0 0
        %1862 = vmatpush1.bf16.xpose.msra.mxu0 0
        %1863 = vmatprep.subr.bf16.mxu0 0
        %1864 = vmatpush1.bf16.xpose.msra.mxu0 0
        %1865 = vmatprep.subr.bf16.mxu0 0
        %1866 = vmatpush1.bf16.xpose.msra.mxu0 %v1849
        %1867 = vmatprep.subr.bf16.mxu0 0
        %1868 = vmatpush2.bf16.xpose.msra.mxu0 0
        %1869 = vmatprep.subr.bf16.mxu0 0
        %1870 = vmatpush2.bf16.xpose.msra.mxu0 0
        %1871 = vmatprep.subr.bf16.mxu0 0
        %1872 = vmatpush2.bf16.xpose.msra.mxu0 0
        %1873 = vmatprep.subr.bf16.mxu0 0
        %1874 = vmatpush2.bf16.xpose.msra.mxu0 0
        %1875 = vmatprep.subr.bf16.mxu0 0
        %1876 = vmatpush2.bf16.xpose.msra.mxu0 0
        %1877 = vmatprep.subr.bf16.mxu0 0
        %1878 = vmatpush2.bf16.xpose.msra.mxu0 0
        %1879 = vmatprep.subr.bf16.mxu0 0
        %1880 = vmatpush2.bf16.xpose.msra.mxu0 0
        %1881 = vmatprep.subr.bf16.mxu0 0
        %1882 = vmatpush2.bf16.xpose.msra.mxu0 0
        %1883 = vmatprep.mubr.bf16.mxu0 0
        %1884 = vmatmul.mubr.bf16.gmra.mxu0 %v1846
        %v1885 = vpop.f32.mrf.mxu0
        %v1886 = vadd.f32 0.0, %v1885
        %v1887 = vpop.f32.mrf.mxu0
        %v1888 = vpop.f32.mrf.mxu0
        %v1889 = vadd.f32 0.0, %v1888
        %v1890 = vpop.f32.mrf.mxu0
        %1891 = vdwg.mxu0
        %v1894 = vunpack.c.l.b16 %v1775
        %v1895 = vunpack.c.l.b16 %v1776
        %v1896 = vpack.c.b16 %v1895, %v1894
        %v1898 = vsel %vm1792, %v1896, 0
        %v1901 = vsel %vm1792, %v1541, 0
        %1903 = vmatprep.subr.bf16.mxu0 0
        %1904 = vmatpush1.bf16.xpose.msra.mxu0 0
        %1905 = vmatprep.subr.bf16.mxu0 0
        %1906 = vmatpush1.bf16.xpose.msra.mxu0 0
        %1907 = vmatprep.subr.bf16.mxu0 0
        %1908 = vmatpush1.bf16.xpose.msra.mxu0 0
        %1909 = vmatprep.subr.bf16.mxu0 0
        %1910 = vmatpush1.bf16.xpose.msra.mxu0 0
        %1911 = vmatprep.subr.bf16.mxu0 0
        %1912 = vmatpush1.bf16.xpose.msra.mxu0 0
        %1913 = vmatprep.subr.bf16.mxu0 0
        %1914 = vmatpush1.bf16.xpose.msra.mxu0 0
        %1915 = vmatprep.subr.bf16.mxu0 0
        %1916 = vmatpush1.bf16.xpose.msra.mxu0 0
        %1917 = vmatprep.subr.bf16.mxu0 0
        %1918 = vmatpush1.bf16.xpose.msra.mxu0 %v1901
        %1919 = vmatprep.subr.bf16.mxu0 0
        %1920 = vmatpush2.bf16.xpose.msra.mxu0 0
        %1921 = vmatprep.subr.bf16.mxu0 0
        %1922 = vmatpush2.bf16.xpose.msra.mxu0 0
        %1923 = vmatprep.subr.bf16.mxu0 0
        %1924 = vmatpush2.bf16.xpose.msra.mxu0 0
        %1925 = vmatprep.subr.bf16.mxu0 0
        %1926 = vmatpush2.bf16.xpose.msra.mxu0 0
        %1927 = vmatprep.subr.bf16.mxu0 0
        %1928 = vmatpush2.bf16.xpose.msra.mxu0 0
        %1929 = vmatprep.subr.bf16.mxu0 0
        %1930 = vmatpush2.bf16.xpose.msra.mxu0 0
        %1931 = vmatprep.subr.bf16.mxu0 0
        %1932 = vmatpush2.bf16.xpose.msra.mxu0 0
        %1933 = vmatprep.subr.bf16.mxu0 0
        %1934 = vmatpush2.bf16.xpose.msra.mxu0 0
        %1935 = vmatprep.mubr.bf16.mxu0 0
        %1936 = vmatmul.mubr.bf16.gmra.mxu0 %v1898
        %v1937 = vpop.f32.mrf.mxu0
        %v1938 = vadd.f32 0.0, %v1937
        %v1939 = vpop.f32.mrf.mxu0
        %v1940 = vpop.f32.mrf.mxu0
        %v1941 = vadd.f32 0.0, %v1940
        %v1942 = vpop.f32.mrf.mxu0
        %1943 = vdwg.mxu0
        %v1946 = vunpack.c.l.b16 %v1777
        %v1947 = vunpack.c.l.b16 %v1778
        %v1948 = vpack.c.b16 %v1947, %v1946
        %v1950 = vsel %vm1792, %v1948, 0
        %v1953 = vsel %vm1792, %v1544, 0
        %1955 = vmatprep.subr.bf16.mxu0 0
        %1956 = vmatpush1.bf16.xpose.msra.mxu0 0
        %1957 = vmatprep.subr.bf16.mxu0 0
        %1958 = vmatpush1.bf16.xpose.msra.mxu0 0
        %1959 = vmatprep.subr.bf16.mxu0 0
        %1960 = vmatpush1.bf16.xpose.msra.mxu0 0
        %1961 = vmatprep.subr.bf16.mxu0 0
        %1962 = vmatpush1.bf16.xpose.msra.mxu0 0
        %1963 = vmatprep.subr.bf16.mxu0 0
        %1964 = vmatpush1.bf16.xpose.msra.mxu0 0
        %1965 = vmatprep.subr.bf16.mxu0 0
        %1966 = vmatpush1.bf16.xpose.msra.mxu0 0
        %1967 = vmatprep.subr.bf16.mxu0 0
        %1968 = vmatpush1.bf16.xpose.msra.mxu0 0
        %1969 = vmatprep.subr.bf16.mxu0 0
        %1970 = vmatpush1.bf16.xpose.msra.mxu0 %v1953
        %1971 = vmatprep.subr.bf16.mxu0 0
        %1972 = vmatpush2.bf16.xpose.msra.mxu0 0
        %1973 = vmatprep.subr.bf16.mxu0 0
        %1974 = vmatpush2.bf16.xpose.msra.mxu0 0
        %1975 = vmatprep.subr.bf16.mxu0 0
        %1976 = vmatpush2.bf16.xpose.msra.mxu0 0
        %1977 = vmatprep.subr.bf16.mxu0 0
        %1978 = vmatpush2.bf16.xpose.msra.mxu0 0
        %1979 = vmatprep.subr.bf16.mxu0 0
        %1980 = vmatpush2.bf16.xpose.msra.mxu0 0
        %1981 = vmatprep.subr.bf16.mxu0 0
        %1982 = vmatpush2.bf16.xpose.msra.mxu0 0
        %1983 = vmatprep.subr.bf16.mxu0 0
        %1984 = vmatpush2.bf16.xpose.msra.mxu0 0
        %1985 = vmatprep.subr.bf16.mxu0 0
        %1986 = vmatpush2.bf16.xpose.msra.mxu0 0
        %1987 = vmatprep.mubr.bf16.mxu0 0
        %1988 = vmatmul.mubr.bf16.gmra.mxu0 %v1950
        %v1989 = vpop.f32.mrf.mxu0
        %v1990 = vadd.f32 0.0, %v1989
        %v1991 = vpop.f32.mrf.mxu0
        %v1992 = vpop.f32.mrf.mxu0
        %v1993 = vadd.f32 0.0, %v1992
        %v1994 = vpop.f32.mrf.mxu0
        %1995 = vdwg.mxu0
        %v1998 = vunpack.c.l.b16 %v1779
        %v1999 = vunpack.c.l.b16 %v1780
        %v2000 = vpack.c.b16 %v1999, %v1998
        %v2002 = vsel %vm1792, %v2000, 0
        %v2005 = vsel %vm1792, %v1547, 0
        %2007 = vmatprep.subr.bf16.mxu0 0
        %2008 = vmatpush1.bf16.xpose.msra.mxu0 0
        %2009 = vmatprep.subr.bf16.mxu0 0
        %2010 = vmatpush1.bf16.xpose.msra.mxu0 0
        %2011 = vmatprep.subr.bf16.mxu0 0
        %2012 = vmatpush1.bf16.xpose.msra.mxu0 0
        %2013 = vmatprep.subr.bf16.mxu0 0
        %2014 = vmatpush1.bf16.xpose.msra.mxu0 0
        %2015 = vmatprep.subr.bf16.mxu0 0
        %2016 = vmatpush1.bf16.xpose.msra.mxu0 0
        %2017 = vmatprep.subr.bf16.mxu0 0
        %2018 = vmatpush1.bf16.xpose.msra.mxu0 0
        %2019 = vmatprep.subr.bf16.mxu0 0
        %2020 = vmatpush1.bf16.xpose.msra.mxu0 0
        %2021 = vmatprep.subr.bf16.mxu0 0
        %2022 = vmatpush1.bf16.xpose.msra.mxu0 %v2005
        %2023 = vmatprep.subr.bf16.mxu0 0
        %2024 = vmatpush2.bf16.xpose.msra.mxu0 0
        %2025 = vmatprep.subr.bf16.mxu0 0
        %2026 = vmatpush2.bf16.xpose.msra.mxu0 0
        %2027 = vmatprep.subr.bf16.mxu0 0
        %2028 = vmatpush2.bf16.xpose.msra.mxu0 0
        %2029 = vmatprep.subr.bf16.mxu0 0
        %2030 = vmatpush2.bf16.xpose.msra.mxu0 0
        %2031 = vmatprep.subr.bf16.mxu0 0
        %2032 = vmatpush2.bf16.xpose.msra.mxu0 0
        %2033 = vmatprep.subr.bf16.mxu0 0
        %2034 = vmatpush2.bf16.xpose.msra.mxu0 0
        %2035 = vmatprep.subr.bf16.mxu0 0
        %2036 = vmatpush2.bf16.xpose.msra.mxu0 0
        %2037 = vmatprep.subr.bf16.mxu0 0
        %2038 = vmatpush2.bf16.xpose.msra.mxu0 0
        %2039 = vmatprep.mubr.bf16.mxu0 0
        %2040 = vmatmul.mubr.bf16.gmra.mxu0 %v2002
        %v2041 = vpop.f32.mrf.mxu0
        %v2042 = vadd.f32 0.0, %v2041
        %v2043 = vpop.f32.mrf.mxu0
        %v2044 = vpop.f32.mrf.mxu0
        %v2045 = vadd.f32 0.0, %v2044
        %v2046 = vpop.f32.mrf.mxu0
        %2047 = vdwg.mxu0
        %v2050 = vunpack.c.l.b16 %v1781
        %v2051 = vunpack.c.l.b16 %v1782
        %v2052 = vpack.c.b16 %v2051, %v2050
        %v2054 = vsel %vm1792, %v2052, 0
        %v2057 = vsel %vm1792, %v1550, 0
        %2059 = vmatprep.subr.bf16.mxu0 0
        %2060 = vmatpush1.bf16.xpose.msra.mxu0 0
        %2061 = vmatprep.subr.bf16.mxu0 0
        %2062 = vmatpush1.bf16.xpose.msra.mxu0 0
        %2063 = vmatprep.subr.bf16.mxu0 0
        %2064 = vmatpush1.bf16.xpose.msra.mxu0 0
        %2065 = vmatprep.subr.bf16.mxu0 0
        %2066 = vmatpush1.bf16.xpose.msra.mxu0 0
        %2067 = vmatprep.subr.bf16.mxu0 0
        %2068 = vmatpush1.bf16.xpose.msra.mxu0 0
        %2069 = vmatprep.subr.bf16.mxu0 0
        %2070 = vmatpush1.bf16.xpose.msra.mxu0 0
        %2071 = vmatprep.subr.bf16.mxu0 0
        %2072 = vmatpush1.bf16.xpose.msra.mxu0 0
        %2073 = vmatprep.subr.bf16.mxu0 0
        %2074 = vmatpush1.bf16.xpose.msra.mxu0 %v2057
        %2075 = vmatprep.subr.bf16.mxu0 0
        %2076 = vmatpush2.bf16.xpose.msra.mxu0 0
        %2077 = vmatprep.subr.bf16.mxu0 0
        %2078 = vmatpush2.bf16.xpose.msra.mxu0 0
        %2079 = vmatprep.subr.bf16.mxu0 0
        %2080 = vmatpush2.bf16.xpose.msra.mxu0 0
        %2081 = vmatprep.subr.bf16.mxu0 0
        %2082 = vmatpush2.bf16.xpose.msra.mxu0 0
        %2083 = vmatprep.subr.bf16.mxu0 0
        %2084 = vmatpush2.bf16.xpose.msra.mxu0 0
        %2085 = vmatprep.subr.bf16.mxu0 0
        %2086 = vmatpush2.bf16.xpose.msra.mxu0 0
        %2087 = vmatprep.subr.bf16.mxu0 0
        %2088 = vmatpush2.bf16.xpose.msra.mxu0 0
        %2089 = vmatprep.subr.bf16.mxu0 0
        %2090 = vmatpush2.bf16.xpose.msra.mxu0 0
        %2091 = vmatprep.mubr.bf16.mxu0 0
        %2092 = vmatmul.mubr.bf16.gmra.mxu0 %v2054
        %v2093 = vpop.f32.mrf.mxu0
        %v2094 = vadd.f32 0.0, %v2093
        %v2095 = vpop.f32.mrf.mxu0
        %v2096 = vpop.f32.mrf.mxu0
        %v2097 = vadd.f32 0.0, %v2096
        %v2098 = vpop.f32.mrf.mxu0
        %2099 = vdwg.mxu0
        %v2102 = vunpack.c.l.b16 %v1783
        %v2103 = vunpack.c.l.b16 %v1784
        %v2104 = vpack.c.b16 %v2103, %v2102
        %v2106 = vsel %vm1792, %v2104, 0
        %v2109 = vsel %vm1792, %v1553, 0
        %2111 = vmatprep.subr.bf16.mxu0 0
        %2112 = vmatpush1.bf16.xpose.msra.mxu0 0
        %2113 = vmatprep.subr.bf16.mxu0 0
        %2114 = vmatpush1.bf16.xpose.msra.mxu0 0
        %2115 = vmatprep.subr.bf16.mxu0 0
        %2116 = vmatpush1.bf16.xpose.msra.mxu0 0
        %2117 = vmatprep.subr.bf16.mxu0 0
        %2118 = vmatpush1.bf16.xpose.msra.mxu0 0
        %2119 = vmatprep.subr.bf16.mxu0 0
        %2120 = vmatpush1.bf16.xpose.msra.mxu0 0
        %2121 = vmatprep.subr.bf16.mxu0 0
        %2122 = vmatpush1.bf16.xpose.msra.mxu0 0
        %2123 = vmatprep.subr.bf16.mxu0 0
        %2124 = vmatpush1.bf16.xpose.msra.mxu0 0
        %2125 = vmatprep.subr.bf16.mxu0 0
        %2126 = vmatpush1.bf16.xpose.msra.mxu0 %v2109
        %2127 = vmatprep.subr.bf16.mxu0 0
        %2128 = vmatpush2.bf16.xpose.msra.mxu0 0
        %2129 = vmatprep.subr.bf16.mxu0 0
        %2130 = vmatpush2.bf16.xpose.msra.mxu0 0
        %2131 = vmatprep.subr.bf16.mxu0 0
        %2132 = vmatpush2.bf16.xpose.msra.mxu0 0
        %2133 = vmatprep.subr.bf16.mxu0 0
        %2134 = vmatpush2.bf16.xpose.msra.mxu0 0
        %2135 = vmatprep.subr.bf16.mxu0 0
        %2136 = vmatpush2.bf16.xpose.msra.mxu0 0
        %2137 = vmatprep.subr.bf16.mxu0 0
        %2138 = vmatpush2.bf16.xpose.msra.mxu0 0
        %2139 = vmatprep.subr.bf16.mxu0 0
        %2140 = vmatpush2.bf16.xpose.msra.mxu0 0
        %2141 = vmatprep.subr.bf16.mxu0 0
        %2142 = vmatpush2.bf16.xpose.msra.mxu0 0
        %2143 = vmatprep.mubr.bf16.mxu0 0
        %2144 = vmatmul.mubr.bf16.gmra.mxu0 %v2106
        %v2145 = vpop.f32.mrf.mxu0
        %v2146 = vadd.f32 0.0, %v2145
        %v2147 = vpop.f32.mrf.mxu0
        %v2148 = vpop.f32.mrf.mxu0
        %v2149 = vadd.f32 0.0, %v2148
        %v2150 = vpop.f32.mrf.mxu0
        %2151 = vdwg.mxu0
        %v2154 = vunpack.c.l.b16 %v1785
        %v2155 = vunpack.c.l.b16 %v1786
        %v2156 = vpack.c.b16 %v2155, %v2154
        %v2158 = vsel %vm1792, %v2156, 0
        %v2161 = vsel %vm1792, %v1556, 0
        %2163 = vmatprep.subr.bf16.mxu0 0
        %2164 = vmatpush1.bf16.xpose.msra.mxu0 0
        %2165 = vmatprep.subr.bf16.mxu0 0
        %2166 = vmatpush1.bf16.xpose.msra.mxu0 0
        %2167 = vmatprep.subr.bf16.mxu0 0
        %2168 = vmatpush1.bf16.xpose.msra.mxu0 0
        %2169 = vmatprep.subr.bf16.mxu0 0
        %2170 = vmatpush1.bf16.xpose.msra.mxu0 0
        %2171 = vmatprep.subr.bf16.mxu0 0
        %2172 = vmatpush1.bf16.xpose.msra.mxu0 0
        %2173 = vmatprep.subr.bf16.mxu0 0
        %2174 = vmatpush1.bf16.xpose.msra.mxu0 0
        %2175 = vmatprep.subr.bf16.mxu0 0
        %2176 = vmatpush1.bf16.xpose.msra.mxu0 0
        %2177 = vmatprep.subr.bf16.mxu0 0
        %2178 = vmatpush1.bf16.xpose.msra.mxu0 %v2161
        %2179 = vmatprep.subr.bf16.mxu0 0
        %2180 = vmatpush2.bf16.xpose.msra.mxu0 0
        %2181 = vmatprep.subr.bf16.mxu0 0
        %2182 = vmatpush2.bf16.xpose.msra.mxu0 0
        %2183 = vmatprep.subr.bf16.mxu0 0
        %2184 = vmatpush2.bf16.xpose.msra.mxu0 0
        %2185 = vmatprep.subr.bf16.mxu0 0
        %2186 = vmatpush2.bf16.xpose.msra.mxu0 0
        %2187 = vmatprep.subr.bf16.mxu0 0
        %2188 = vmatpush2.bf16.xpose.msra.mxu0 0
        %2189 = vmatprep.subr.bf16.mxu0 0
        %2190 = vmatpush2.bf16.xpose.msra.mxu0 0
        %2191 = vmatprep.subr.bf16.mxu0 0
        %2192 = vmatpush2.bf16.xpose.msra.mxu0 0
        %2193 = vmatprep.subr.bf16.mxu0 0
        %2194 = vmatpush2.bf16.xpose.msra.mxu0 0
        %2195 = vmatprep.mubr.bf16.mxu0 0
        %2196 = vmatmul.mubr.bf16.gmra.mxu0 %v2158
        %v2197 = vpop.f32.mrf.mxu0
        %v2198 = vadd.f32 0.0, %v2197
        %v2199 = vpop.f32.mrf.mxu0
        %v2200 = vpop.f32.mrf.mxu0
        %v2201 = vadd.f32 0.0, %v2200
        %v2202 = vpop.f32.mrf.mxu0
        %2203 = vdwg.mxu0
        %v2204 = vld [vmem:[#allocation3] sm:$0xff]
        %v2205 = vld [vmem:[#allocation3 + $0x8] sm:$0xff]
        %v2206 = vld [vmem:[#allocation3 + $0x10] sm:$0xff]
        %v2207 = vld [vmem:[#allocation3 + $0x18] sm:$0xff]
        %v2208 = vld [vmem:[#allocation3 + $0x20] sm:$0xff]
        %v2209 = vld [vmem:[#allocation3 + $0x28] sm:$0xff]
        %v2210 = vld [vmem:[#allocation3 + $0x30] sm:$0xff]
        %v2211 = vld [vmem:[#allocation3 + $0x38] sm:$0xff]
        %v2212 = vld [vmem:[#allocation3 + $0x40] sm:$0xff]
        %v2213 = vld [vmem:[#allocation3 + $0x48] sm:$0xff]
        %v2214 = vld [vmem:[#allocation3 + $0x50] sm:$0xff]
        %v2215 = vld [vmem:[#allocation3 + $0x58] sm:$0xff]
        %v2216 = vld [vmem:[#allocation3 + $0x60] sm:$0xff]
        %v2217 = vld [vmem:[#allocation3 + $0x68] sm:$0xff]
        %v2218 = vld [vmem:[#allocation3 + $0x70] sm:$0xff]
        %v2219 = vld [vmem:[#allocation3 + $0x78] sm:$0xff]
        %vm2220 = vcmask 64512
        %v2221 = vsel %vm2220, %v1834, -inf
        %2222 = vmax.xlane.f32.xlu0 %v2221
        %v2223 = vpop.xlane.xlu0 %2222
        %v2224 = vsel %vm2220, %v1837, -inf
        %2225 = vmax.xlane.f32.xlu0 %v2224
        %v2226 = vpop.xlane.xlu0 %2225
        %v2227 = vsel %vm2220, %v1886, -inf
        %2228 = vmax.xlane.f32.xlu0 %v2227
        %v2229 = vpop.xlane.xlu0 %2228
        %v2230 = vsel %vm2220, %v1889, -inf
        %2231 = vmax.xlane.f32.xlu0 %v2230
        %v2232 = vpop.xlane.xlu0 %2231
        %v2233 = vsel %vm2220, %v1938, -inf
        %2234 = vmax.xlane.f32.xlu0 %v2233
        %v2235 = vpop.xlane.xlu0 %2234
        %v2236 = vsel %vm2220, %v1941, -inf
        %2237 = vmax.xlane.f32.xlu0 %v2236
        %v2238 = vpop.xlane.xlu0 %2237
        %v2239 = vsel %vm2220, %v1990, -inf
        %2240 = vmax.xlane.f32.xlu0 %v2239
        %v2241 = vpop.xlane.xlu0 %2240
        %v2242 = vsel %vm2220, %v1993, -inf
        %2243 = vmax.xlane.f32.xlu0 %v2242
        %v2244 = vpop.xlane.xlu0 %2243
        %v2245 = vsel %vm2220, %v2042, -inf
        %2246 = vmax.xlane.f32.xlu0 %v2245
        %v2247 = vpop.xlane.xlu0 %2246
        %v2248 = vsel %vm2220, %v2045, -inf
        %2249 = vmax.xlane.f32.xlu0 %v2248
        %v2250 = vpop.xlane.xlu0 %2249
        %v2251 = vsel %vm2220, %v2094, -inf
        %2252 = vmax.xlane.f32.xlu0 %v2251
        %v2253 = vpop.xlane.xlu0 %2252
        %v2254 = vsel %vm2220, %v2097, -inf
        %2255 = vmax.xlane.f32.xlu0 %v2254
        %v2256 = vpop.xlane.xlu0 %2255
        %v2257 = vsel %vm2220, %v2146, -inf
        %2258 = vmax.xlane.f32.xlu0 %v2257
        %v2259 = vpop.xlane.xlu0 %2258
        %v2260 = vsel %vm2220, %v2149, -inf
        %2261 = vmax.xlane.f32.xlu0 %v2260
        %v2262 = vpop.xlane.xlu0 %2261
        %v2263 = vsel %vm2220, %v2198, -inf
        %2264 = vmax.xlane.f32.xlu0 %v2263
        %v2265 = vpop.xlane.xlu0 %2264
        %v2266 = vsel %vm2220, %v2201, -inf
        %2267 = vmax.xlane.f32.xlu0 %v2266
        %v2268 = vpop.xlane.xlu0 %2267
        %v2269 = vmax.f32 %v2204, %v2223
        %v2270 = vmax.f32 %v2205, %v2226
        %v2271 = vmax.f32 %v2206, %v2229
        %v2272 = vmax.f32 %v2207, %v2232
        %v2273 = vmax.f32 %v2208, %v2235
        %v2274 = vmax.f32 %v2209, %v2238
        %v2275 = vmax.f32 %v2210, %v2241
        %v2276 = vmax.f32 %v2211, %v2244
        %v2277 = vmax.f32 %v2212, %v2247
        %v2278 = vmax.f32 %v2213, %v2250
        %v2279 = vmax.f32 %v2214, %v2253
        %v2280 = vmax.f32 %v2215, %v2256
        %v2281 = vmax.f32 %v2216, %v2259
        %v2282 = vmax.f32 %v2217, %v2262
        %v2283 = vmax.f32 %v2218, %v2265
        %v2284 = vmax.f32 %v2219, %v2268
        %v2285 = vsub.f32 %v2204, %v2269
        %v2286 = vsub.f32 %v2205, %v2270
        %v2287 = vsub.f32 %v2206, %v2271
        %v2288 = vsub.f32 %v2207, %v2272
        %v2289 = vsub.f32 %v2208, %v2273
        %v2290 = vsub.f32 %v2209, %v2274
        %v2291 = vsub.f32 %v2210, %v2275
        %v2292 = vsub.f32 %v2211, %v2276
        %v2293 = vsub.f32 %v2212, %v2277
        %v2294 = vsub.f32 %v2213, %v2278
        %v2295 = vsub.f32 %v2214, %v2279
        %v2296 = vsub.f32 %v2215, %v2280
        %v2297 = vsub.f32 %v2216, %v2281
        %v2298 = vsub.f32 %v2217, %v2282
        %v2299 = vsub.f32 %v2218, %v2283
        %v2300 = vsub.f32 %v2219, %v2284
        %v2301 = vmul.f32 %v2285, 1.442695
        %v2302 = vpow.pop %v2301
        %v2303 = vmul.f32 %v2286, 1.442695
        %v2304 = vpow.pop %v2303
        %v2305 = vmul.f32 %v2287, 1.442695
        %v2306 = vpow.pop %v2305
        %v2307 = vmul.f32 %v2288, 1.442695
        %v2308 = vpow.pop %v2307
        %v2309 = vmul.f32 %v2289, 1.442695
        %v2310 = vpow.pop %v2309
        %v2311 = vmul.f32 %v2290, 1.442695
        %v2312 = vpow.pop %v2311
        %v2313 = vmul.f32 %v2291, 1.442695
        %v2314 = vpow.pop %v2313
        %v2315 = vmul.f32 %v2292, 1.442695
        %v2316 = vpow.pop %v2315
        %v2317 = vmul.f32 %v2293, 1.442695
        %v2318 = vpow.pop %v2317
        %v2319 = vmul.f32 %v2294, 1.442695
        %v2320 = vpow.pop %v2319
        %v2321 = vmul.f32 %v2295, 1.442695
        %v2322 = vpow.pop %v2321
        %v2323 = vmul.f32 %v2296, 1.442695
        %v2324 = vpow.pop %v2323
        %v2325 = vmul.f32 %v2297, 1.442695
        %v2326 = vpow.pop %v2325
        %v2327 = vmul.f32 %v2298, 1.442695
        %v2328 = vpow.pop %v2327
        %v2329 = vmul.f32 %v2299, 1.442695
        %v2330 = vpow.pop %v2329
        %v2331 = vmul.f32 %v2300, 1.442695
        %v2332 = vpow.pop %v2331
        %2334 = vset.pattern.permute.xlu0 0
        %2335 = vperm.xlu0 %2334, %v2269
        %v2336 = vpop.permute.xlu0 %2335
        %2339 = vset.pattern.permute.xlu0 0
        %2340 = vperm.xlu0 %2339, %v2270
        %v2341 = vpop.permute.xlu0 %2340
        %2344 = vset.pattern.permute.xlu0 0
        %2345 = vperm.xlu0 %2344, %v2271
        %v2346 = vpop.permute.xlu0 %2345
        %2349 = vset.pattern.permute.xlu0 0
        %2350 = vperm.xlu0 %2349, %v2272
        %v2351 = vpop.permute.xlu0 %2350
        %2354 = vset.pattern.permute.xlu0 0
        %2355 = vperm.xlu0 %2354, %v2273
        %v2356 = vpop.permute.xlu0 %2355
        %2359 = vset.pattern.permute.xlu0 0
        %2360 = vperm.xlu0 %2359, %v2274
        %v2361 = vpop.permute.xlu0 %2360
        %2364 = vset.pattern.permute.xlu0 0
        %2365 = vperm.xlu0 %2364, %v2275
        %v2366 = vpop.permute.xlu0 %2365
        %2369 = vset.pattern.permute.xlu0 0
        %2370 = vperm.xlu0 %2369, %v2276
        %v2371 = vpop.permute.xlu0 %2370
        %2374 = vset.pattern.permute.xlu0 0
        %2375 = vperm.xlu0 %2374, %v2277
        %v2376 = vpop.permute.xlu0 %2375
        %2379 = vset.pattern.permute.xlu0 0
        %2380 = vperm.xlu0 %2379, %v2278
        %v2381 = vpop.permute.xlu0 %2380
        %2384 = vset.pattern.permute.xlu0 0
        %2385 = vperm.xlu0 %2384, %v2279
        %v2386 = vpop.permute.xlu0 %2385
        %2389 = vset.pattern.permute.xlu0 0
        %2390 = vperm.xlu0 %2389, %v2280
        %v2391 = vpop.permute.xlu0 %2390
        %2394 = vset.pattern.permute.xlu0 0
        %2395 = vperm.xlu0 %2394, %v2281
        %v2396 = vpop.permute.xlu0 %2395
        %2399 = vset.pattern.permute.xlu0 0
        %2400 = vperm.xlu0 %2399, %v2282
        %v2401 = vpop.permute.xlu0 %2400
        %2404 = vset.pattern.permute.xlu0 0
        %2405 = vperm.xlu0 %2404, %v2283
        %v2406 = vpop.permute.xlu0 %2405
        %2409 = vset.pattern.permute.xlu0 0
        %2410 = vperm.xlu0 %2409, %v2284
        %v2411 = vpop.permute.xlu0 %2410
        %v2413 = vsub.f32 %v1834, %v2336
        %v2414 = vsub.f32 %v1837, %v2341
        %v2415 = vsub.f32 %v1886, %v2346
        %v2416 = vsub.f32 %v1889, %v2351
        %v2417 = vsub.f32 %v1938, %v2356
        %v2418 = vsub.f32 %v1941, %v2361
        %v2419 = vsub.f32 %v1990, %v2366
        %v2420 = vsub.f32 %v1993, %v2371
        %v2421 = vsub.f32 %v2042, %v2376
        %v2422 = vsub.f32 %v2045, %v2381
        %v2423 = vsub.f32 %v2094, %v2386
        %v2424 = vsub.f32 %v2097, %v2391
        %v2425 = vsub.f32 %v2146, %v2396
        %v2426 = vsub.f32 %v2149, %v2401
        %v2427 = vsub.f32 %v2198, %v2406
        %v2428 = vsub.f32 %v2201, %v2411
        %v2429 = vmul.f32 %v2413, 1.442695
        %v2430 = vpow.pop %v2429
        %v2431 = vmul.f32 %v2414, 1.442695
        %v2432 = vpow.pop %v2431
        %v2433 = vmul.f32 %v2415, 1.442695
        %v2434 = vpow.pop %v2433
        %v2435 = vmul.f32 %v2416, 1.442695
        %v2436 = vpow.pop %v2435
        %v2437 = vmul.f32 %v2417, 1.442695
        %v2438 = vpow.pop %v2437
        %v2439 = vmul.f32 %v2418, 1.442695
        %v2440 = vpow.pop %v2439
        %v2441 = vmul.f32 %v2419, 1.442695
        %v2442 = vpow.pop %v2441
        %v2443 = vmul.f32 %v2420, 1.442695
        %v2444 = vpow.pop %v2443
        %v2445 = vmul.f32 %v2421, 1.442695
        %v2446 = vpow.pop %v2445
        %v2447 = vmul.f32 %v2422, 1.442695
        %v2448 = vpow.pop %v2447
        %v2449 = vmul.f32 %v2423, 1.442695
        %v2450 = vpow.pop %v2449
        %v2451 = vmul.f32 %v2424, 1.442695
        %v2452 = vpow.pop %v2451
        %v2453 = vmul.f32 %v2425, 1.442695
        %v2454 = vpow.pop %v2453
        %v2455 = vmul.f32 %v2426, 1.442695
        %v2456 = vpow.pop %v2455
        %v2457 = vmul.f32 %v2427, 1.442695
        %v2458 = vpow.pop %v2457
        %v2459 = vmul.f32 %v2428, 1.442695
        %v2460 = vpow.pop %v2459
        %v2461 = vld [vmem:[#allocation4] sm:$0xff]
        %v2462 = vld [vmem:[#allocation4 + $0x8] sm:$0xff]
        %v2463 = vld [vmem:[#allocation4 + $0x10] sm:$0xff]
        %v2464 = vld [vmem:[#allocation4 + $0x18] sm:$0xff]
        %v2465 = vld [vmem:[#allocation4 + $0x20] sm:$0xff]
        %v2466 = vld [vmem:[#allocation4 + $0x28] sm:$0xff]
        %v2467 = vld [vmem:[#allocation4 + $0x30] sm:$0xff]
        %v2468 = vld [vmem:[#allocation4 + $0x38] sm:$0xff]
        %v2469 = vld [vmem:[#allocation4 + $0x40] sm:$0xff]
        %v2470 = vld [vmem:[#allocation4 + $0x48] sm:$0xff]
        %v2471 = vld [vmem:[#allocation4 + $0x50] sm:$0xff]
        %v2472 = vld [vmem:[#allocation4 + $0x58] sm:$0xff]
        %v2473 = vld [vmem:[#allocation4 + $0x60] sm:$0xff]
        %v2474 = vld [vmem:[#allocation4 + $0x68] sm:$0xff]
        %v2475 = vld [vmem:[#allocation4 + $0x70] sm:$0xff]
        %v2476 = vld [vmem:[#allocation4 + $0x78] sm:$0xff]
        %v2477 = vmul.f32 %v2302, %v2461
        %v2478 = vmul.f32 %v2304, %v2462
        %v2479 = vmul.f32 %v2306, %v2463
        %v2480 = vmul.f32 %v2308, %v2464
        %v2481 = vmul.f32 %v2310, %v2465
        %v2482 = vmul.f32 %v2312, %v2466
        %v2483 = vmul.f32 %v2314, %v2467
        %v2484 = vmul.f32 %v2316, %v2468
        %v2485 = vmul.f32 %v2318, %v2469
        %v2486 = vmul.f32 %v2320, %v2470
        %v2487 = vmul.f32 %v2322, %v2471
        %v2488 = vmul.f32 %v2324, %v2472
        %v2489 = vmul.f32 %v2326, %v2473
        %v2490 = vmul.f32 %v2328, %v2474
        %v2491 = vmul.f32 %v2330, %v2475
        %v2492 = vmul.f32 %v2332, %v2476
        %v2493 = vsel %vm2220, %v2430, 0.0
        %2494 = vadd.xlane.f32.xlu0 %v2493
        %v2495 = vpop.xlane.xlu0 %2494
        %v2496 = vsel %vm2220, %v2432, 0.0
        %2497 = vadd.xlane.f32.xlu0 %v2496
        %v2498 = vpop.xlane.xlu0 %2497
        %v2499 = vsel %vm2220, %v2434, 0.0
        %2500 = vadd.xlane.f32.xlu0 %v2499
        %v2501 = vpop.xlane.xlu0 %2500
        %v2502 = vsel %vm2220, %v2436, 0.0
        %2503 = vadd.xlane.f32.xlu0 %v2502
        %v2504 = vpop.xlane.xlu0 %2503
        %v2505 = vsel %vm2220, %v2438, 0.0
        %2506 = vadd.xlane.f32.xlu0 %v2505
        %v2507 = vpop.xlane.xlu0 %2506
        %v2508 = vsel %vm2220, %v2440, 0.0
        %2509 = vadd.xlane.f32.xlu0 %v2508
        %v2510 = vpop.xlane.xlu0 %2509
        %v2511 = vsel %vm2220, %v2442, 0.0
        %2512 = vadd.xlane.f32.xlu0 %v2511
        %v2513 = vpop.xlane.xlu0 %2512
        %v2514 = vsel %vm2220, %v2444, 0.0
        %2515 = vadd.xlane.f32.xlu0 %v2514
        %v2516 = vpop.xlane.xlu0 %2515
        %v2517 = vsel %vm2220, %v2446, 0.0
        %2518 = vadd.xlane.f32.xlu0 %v2517
        %v2519 = vpop.xlane.xlu0 %2518
        %v2520 = vsel %vm2220, %v2448, 0.0
        %2521 = vadd.xlane.f32.xlu0 %v2520
        %v2522 = vpop.xlane.xlu0 %2521
        %v2523 = vsel %vm2220, %v2450, 0.0
        %2524 = vadd.xlane.f32.xlu0 %v2523
        %v2525 = vpop.xlane.xlu0 %2524
        %v2526 = vsel %vm2220, %v2452, 0.0
        %2527 = vadd.xlane.f32.xlu0 %v2526
        %v2528 = vpop.xlane.xlu0 %2527
        %v2529 = vsel %vm2220, %v2454, 0.0
        %2530 = vadd.xlane.f32.xlu0 %v2529
        %v2531 = vpop.xlane.xlu0 %2530
        %v2532 = vsel %vm2220, %v2456, 0.0
        %2533 = vadd.xlane.f32.xlu0 %v2532
        %v2534 = vpop.xlane.xlu0 %2533
        %v2535 = vsel %vm2220, %v2458, 0.0
        %2536 = vadd.xlane.f32.xlu0 %v2535
        %v2537 = vpop.xlane.xlu0 %2536
        %v2538 = vsel %vm2220, %v2460, 0.0
        %2539 = vadd.xlane.f32.xlu0 %v2538
        %v2540 = vpop.xlane.xlu0 %2539
        %v2541 = vadd.f32 %v2477, %v2495
        %v2542 = vadd.f32 %v2478, %v2498
        %v2543 = vadd.f32 %v2479, %v2501
        %v2544 = vadd.f32 %v2480, %v2504
        %v2545 = vadd.f32 %v2481, %v2507
        %v2546 = vadd.f32 %v2482, %v2510
        %v2547 = vadd.f32 %v2483, %v2513
        %v2548 = vadd.f32 %v2484, %v2516
        %v2549 = vadd.f32 %v2485, %v2519
        %v2550 = vadd.f32 %v2486, %v2522
        %v2551 = vadd.f32 %v2487, %v2525
        %v2552 = vadd.f32 %v2488, %v2528
        %v2553 = vadd.f32 %v2489, %v2531
        %v2554 = vadd.f32 %v2490, %v2534
        %v2555 = vadd.f32 %v2491, %v2537
        %v2556 = vadd.f32 %v2492, %v2540
        %vm2557 = vcmask 7168
        %2558 = vst.msk [vmem:[#allocation4] sm:$0xff] %vm2557, %v2541
        %2559 = vst.msk [vmem:[#allocation4 + $0x8] sm:$0xff] %vm2557, %v2542
        %2560 = vst.msk [vmem:[#allocation4 + $0x10] sm:$0xff] %vm2557, %v2543
        %2561 = vst.msk [vmem:[#allocation4 + $0x18] sm:$0xff] %vm2557, %v2544
        %2562 = vst.msk [vmem:[#allocation4 + $0x20] sm:$0xff] %vm2557, %v2545
        %2563 = vst.msk [vmem:[#allocation4 + $0x28] sm:$0xff] %vm2557, %v2546
        %2564 = vst.msk [vmem:[#allocation4 + $0x30] sm:$0xff] %vm2557, %v2547
        %2565 = vst.msk [vmem:[#allocation4 + $0x38] sm:$0xff] %vm2557, %v2548
        %2566 = vst.msk [vmem:[#allocation4 + $0x40] sm:$0xff] %vm2557, %v2549
        %2567 = vst.msk [vmem:[#allocation4 + $0x48] sm:$0xff] %vm2557, %v2550
        %2568 = vst.msk [vmem:[#allocation4 + $0x50] sm:$0xff] %vm2557, %v2551
        %2569 = vst.msk [vmem:[#allocation4 + $0x58] sm:$0xff] %vm2557, %v2552
        %2570 = vst.msk [vmem:[#allocation4 + $0x60] sm:$0xff] %vm2557, %v2553
        %2571 = vst.msk [vmem:[#allocation4 + $0x68] sm:$0xff] %vm2557, %v2554
        %2572 = vst.msk [vmem:[#allocation4 + $0x70] sm:$0xff] %vm2557, %v2555
        %2573 = vst.msk [vmem:[#allocation4 + $0x78] sm:$0xff] %vm2557, %v2556
        %v2574 = vld [vmem:[#allocation5] sm:$0xff]
        %v2575 = vld [vmem:[#allocation5 + $0x8] sm:$0xff]
        %v2576 = vld [vmem:[#allocation5 + $0x10] sm:$0xff]
        %v2577 = vld [vmem:[#allocation5 + $0x18] sm:$0xff]
        %v2578 = vld [vmem:[#allocation5 + $0x20] sm:$0xff]
        %v2579 = vld [vmem:[#allocation5 + $0x28] sm:$0xff]
        %v2580 = vld [vmem:[#allocation5 + $0x30] sm:$0xff]
        %v2581 = vld [vmem:[#allocation5 + $0x38] sm:$0xff]
        %v2582 = vld [vmem:[#allocation5 + $0x40] sm:$0xff]
        %v2583 = vld [vmem:[#allocation5 + $0x48] sm:$0xff]
        %v2584 = vld [vmem:[#allocation5 + $0x50] sm:$0xff]
        %v2585 = vld [vmem:[#allocation5 + $0x58] sm:$0xff]
        %v2586 = vld [vmem:[#allocation5 + $0x60] sm:$0xff]
        %v2587 = vld [vmem:[#allocation5 + $0x68] sm:$0xff]
        %v2588 = vld [vmem:[#allocation5 + $0x70] sm:$0xff]
        %v2589 = vld [vmem:[#allocation5 + $0x78] sm:$0xff]
        %2591 = vset.pattern.permute.xlu0 0
        %2592 = vperm.xlu0 %2591, %v2302
        %v2593 = vpop.permute.xlu0 %2592
        %2596 = vset.pattern.permute.xlu0 0
        %2597 = vperm.xlu0 %2596, %v2304
        %v2598 = vpop.permute.xlu0 %2597
        %2601 = vset.pattern.permute.xlu0 0
        %2602 = vperm.xlu0 %2601, %v2306
        %v2603 = vpop.permute.xlu0 %2602
        %2606 = vset.pattern.permute.xlu0 0
        %2607 = vperm.xlu0 %2606, %v2308
        %v2608 = vpop.permute.xlu0 %2607
        %2611 = vset.pattern.permute.xlu0 0
        %2612 = vperm.xlu0 %2611, %v2310
        %v2613 = vpop.permute.xlu0 %2612
        %2616 = vset.pattern.permute.xlu0 0
        %2617 = vperm.xlu0 %2616, %v2312
        %v2618 = vpop.permute.xlu0 %2617
        %2621 = vset.pattern.permute.xlu0 0
        %2622 = vperm.xlu0 %2621, %v2314
        %v2623 = vpop.permute.xlu0 %2622
        %2626 = vset.pattern.permute.xlu0 0
        %2627 = vperm.xlu0 %2626, %v2316
        %v2628 = vpop.permute.xlu0 %2627
        %2631 = vset.pattern.permute.xlu0 0
        %2632 = vperm.xlu0 %2631, %v2318
        %v2633 = vpop.permute.xlu0 %2632
        %2636 = vset.pattern.permute.xlu0 0
        %2637 = vperm.xlu0 %2636, %v2320
        %v2638 = vpop.permute.xlu0 %2637
        %2641 = vset.pattern.permute.xlu0 0
        %2642 = vperm.xlu0 %2641, %v2322
        %v2643 = vpop.permute.xlu0 %2642
        %2646 = vset.pattern.permute.xlu0 0
        %2647 = vperm.xlu0 %2646, %v2324
        %v2648 = vpop.permute.xlu0 %2647
        %2651 = vset.pattern.permute.xlu0 0
        %2652 = vperm.xlu0 %2651, %v2326
        %v2653 = vpop.permute.xlu0 %2652
        %2656 = vset.pattern.permute.xlu0 0
        %2657 = vperm.xlu0 %2656, %v2328
        %v2658 = vpop.permute.xlu0 %2657
        %2661 = vset.pattern.permute.xlu0 0
        %2662 = vperm.xlu0 %2661, %v2330
        %v2663 = vpop.permute.xlu0 %2662
        %2666 = vset.pattern.permute.xlu0 0
        %2667 = vperm.xlu0 %2666, %v2332
        %v2668 = vpop.permute.xlu0 %2667
        %v2670 = vmul.f32 %v2593, %v2574
        %v2671 = vmul.f32 %v2598, %v2575
        %v2672 = vmul.f32 %v2603, %v2576
        %v2673 = vmul.f32 %v2608, %v2577
        %v2674 = vmul.f32 %v2613, %v2578
        %v2675 = vmul.f32 %v2618, %v2579
        %v2676 = vmul.f32 %v2623, %v2580
        %v2677 = vmul.f32 %v2628, %v2581
        %v2678 = vmul.f32 %v2633, %v2582
        %v2679 = vmul.f32 %v2638, %v2583
        %v2680 = vmul.f32 %v2643, %v2584
        %v2681 = vmul.f32 %v2648, %v2585
        %v2682 = vmul.f32 %v2653, %v2586
        %v2683 = vmul.f32 %v2658, %v2587
        %v2684 = vmul.f32 %v2663, %v2588
        %v2685 = vmul.f32 %v2668, %v2589
        %v2686 = vpack.c.bf16 %v2432, %v2430
        %v2687 = vpack.c.bf16 %v2436, %v2434
        %v2688 = vpack.c.bf16 %v2440, %v2438
        %v2689 = vpack.c.bf16 %v2444, %v2442
        %v2690 = vpack.c.bf16 %v2448, %v2446
        %v2691 = vpack.c.bf16 %v2452, %v2450
        %v2692 = vpack.c.bf16 %v2456, %v2454
        %v2693 = vpack.c.bf16 %v2460, %v2458
        %v2695 = vsel %vm2220, %v2686, 0
        %vm2697 = vcmask 1043456
        %v2699 = vsel %vm2697, %v1749, 0
        %2701 = vmatprep.subr.bf16.mxu0 0
        %2702 = vmatpush1.bf16.msra.mxu0 0
        %2703 = vmatprep.subr.bf16.mxu0 0
        %2704 = vmatpush1.bf16.msra.mxu0 0
        %2705 = vmatprep.subr.bf16.mxu0 0
        %2706 = vmatpush1.bf16.msra.mxu0 0
        %2707 = vmatprep.subr.bf16.mxu0 0
        %2708 = vmatpush1.bf16.msra.mxu0 0
        %2709 = vmatprep.subr.bf16.mxu0 0
        %2710 = vmatpush1.bf16.msra.mxu0 0
        %2711 = vmatprep.subr.bf16.mxu0 0
        %2712 = vmatpush1.bf16.msra.mxu0 0
        %2713 = vmatprep.subr.bf16.mxu0 0
        %2714 = vmatpush1.bf16.msra.mxu0 0
        %2715 = vmatprep.subr.bf16.mxu0 0
        %2716 = vmatpush1.bf16.msra.mxu0 %v2699
        %2717 = vmatprep.subr.bf16.mxu0 0
        %2718 = vmatpush2.bf16.msra.mxu0 0
        %2719 = vmatprep.subr.bf16.mxu0 0
        %2720 = vmatpush2.bf16.msra.mxu0 0
        %2721 = vmatprep.subr.bf16.mxu0 0
        %2722 = vmatpush2.bf16.msra.mxu0 0
        %2723 = vmatprep.subr.bf16.mxu0 0
        %2724 = vmatpush2.bf16.msra.mxu0 0
        %2725 = vmatprep.subr.bf16.mxu0 0
        %2726 = vmatpush2.bf16.msra.mxu0 0
        %2727 = vmatprep.subr.bf16.mxu0 0
        %2728 = vmatpush2.bf16.msra.mxu0 0
        %2729 = vmatprep.subr.bf16.mxu0 0
        %2730 = vmatpush2.bf16.msra.mxu0 0
        %2731 = vmatprep.subr.bf16.mxu0 0
        %2732 = vmatpush2.bf16.msra.mxu0 0
        %2733 = vmatprep.mubr.bf16.mxu0 0
        %2734 = vmatmul.mubr.bf16.gmra.mxu0 %v2695
        %v2735 = vpop.f32.mrf.mxu0
        %v2736 = vadd.f32 0.0, %v2735
        %v2737 = vpop.f32.mrf.mxu0
        %v2738 = vpop.f32.mrf.mxu0
        %v2739 = vadd.f32 0.0, %v2738
        %v2740 = vpop.f32.mrf.mxu0
        %2741 = vdwg.mxu0
        %v2743 = vsel %vm2220, %v2687, 0
        %v2746 = vsel %vm2697, %v1752, 0
        %2748 = vmatprep.subr.bf16.mxu0 0
        %2749 = vmatpush1.bf16.msra.mxu0 0
        %2750 = vmatprep.subr.bf16.mxu0 0
        %2751 = vmatpush1.bf16.msra.mxu0 0
        %2752 = vmatprep.subr.bf16.mxu0 0
        %2753 = vmatpush1.bf16.msra.mxu0 0
        %2754 = vmatprep.subr.bf16.mxu0 0
        %2755 = vmatpush1.bf16.msra.mxu0 0
        %2756 = vmatprep.subr.bf16.mxu0 0
        %2757 = vmatpush1.bf16.msra.mxu0 0
        %2758 = vmatprep.subr.bf16.mxu0 0
        %2759 = vmatpush1.bf16.msra.mxu0 0
        %2760 = vmatprep.subr.bf16.mxu0 0
        %2761 = vmatpush1.bf16.msra.mxu0 0
        %2762 = vmatprep.subr.bf16.mxu0 0
        %2763 = vmatpush1.bf16.msra.mxu0 %v2746
        %2764 = vmatprep.subr.bf16.mxu0 0
        %2765 = vmatpush2.bf16.msra.mxu0 0
        %2766 = vmatprep.subr.bf16.mxu0 0
        %2767 = vmatpush2.bf16.msra.mxu0 0
        %2768 = vmatprep.subr.bf16.mxu0 0
        %2769 = vmatpush2.bf16.msra.mxu0 0
        %2770 = vmatprep.subr.bf16.mxu0 0
        %2771 = vmatpush2.bf16.msra.mxu0 0
        %2772 = vmatprep.subr.bf16.mxu0 0
        %2773 = vmatpush2.bf16.msra.mxu0 0
        %2774 = vmatprep.subr.bf16.mxu0 0
        %2775 = vmatpush2.bf16.msra.mxu0 0
        %2776 = vmatprep.subr.bf16.mxu0 0
        %2777 = vmatpush2.bf16.msra.mxu0 0
        %2778 = vmatprep.subr.bf16.mxu0 0
        %2779 = vmatpush2.bf16.msra.mxu0 0
        %2780 = vmatprep.mubr.bf16.mxu0 0
        %2781 = vmatmul.mubr.bf16.gmra.mxu0 %v2743
        %v2782 = vpop.f32.mrf.mxu0
        %v2783 = vadd.f32 0.0, %v2782
        %v2784 = vpop.f32.mrf.mxu0
        %v2785 = vpop.f32.mrf.mxu0
        %v2786 = vadd.f32 0.0, %v2785
        %v2787 = vpop.f32.mrf.mxu0
        %2788 = vdwg.mxu0
        %v2790 = vsel %vm2220, %v2688, 0
        %v2793 = vsel %vm2697, %v1755, 0
        %2795 = vmatprep.subr.bf16.mxu0 0
        %2796 = vmatpush1.bf16.msra.mxu0 0
        %2797 = vmatprep.subr.bf16.mxu0 0
        %2798 = vmatpush1.bf16.msra.mxu0 0
        %2799 = vmatprep.subr.bf16.mxu0 0
        %2800 = vmatpush1.bf16.msra.mxu0 0
        %2801 = vmatprep.subr.bf16.mxu0 0
        %2802 = vmatpush1.bf16.msra.mxu0 0
        %2803 = vmatprep.subr.bf16.mxu0 0
        %2804 = vmatpush1.bf16.msra.mxu0 0
        %2805 = vmatprep.subr.bf16.mxu0 0
        %2806 = vmatpush1.bf16.msra.mxu0 0
        %2807 = vmatprep.subr.bf16.mxu0 0
        %2808 = vmatpush1.bf16.msra.mxu0 0
        %2809 = vmatprep.subr.bf16.mxu0 0
        %2810 = vmatpush1.bf16.msra.mxu0 %v2793
        %2811 = vmatprep.subr.bf16.mxu0 0
        %2812 = vmatpush2.bf16.msra.mxu0 0
        %2813 = vmatprep.subr.bf16.mxu0 0
        %2814 = vmatpush2.bf16.msra.mxu0 0
        %2815 = vmatprep.subr.bf16.mxu0 0
        %2816 = vmatpush2.bf16.msra.mxu0 0
        %2817 = vmatprep.subr.bf16.mxu0 0
        %2818 = vmatpush2.bf16.msra.mxu0 0
        %2819 = vmatprep.subr.bf16.mxu0 0
        %2820 = vmatpush2.bf16.msra.mxu0 0
        %2821 = vmatprep.subr.bf16.mxu0 0
        %2822 = vmatpush2.bf16.msra.mxu0 0
        %2823 = vmatprep.subr.bf16.mxu0 0
        %2824 = vmatpush2.bf16.msra.mxu0 0
        %2825 = vmatprep.subr.bf16.mxu0 0
        %2826 = vmatpush2.bf16.msra.mxu0 0
        %2827 = vmatprep.mubr.bf16.mxu0 0
        %2828 = vmatmul.mubr.bf16.gmra.mxu0 %v2790
        %v2829 = vpop.f32.mrf.mxu0
        %v2830 = vadd.f32 0.0, %v2829
        %v2831 = vpop.f32.mrf.mxu0
        %v2832 = vpop.f32.mrf.mxu0
        %v2833 = vadd.f32 0.0, %v2832
        %v2834 = vpop.f32.mrf.mxu0
        %2835 = vdwg.mxu0
        %v2837 = vsel %vm2220, %v2689, 0
        %v2840 = vsel %vm2697, %v1758, 0
        %2842 = vmatprep.subr.bf16.mxu0 0
        %2843 = vmatpush1.bf16.msra.mxu0 0
        %2844 = vmatprep.subr.bf16.mxu0 0
        %2845 = vmatpush1.bf16.msra.mxu0 0
        %2846 = vmatprep.subr.bf16.mxu0 0
        %2847 = vmatpush1.bf16.msra.mxu0 0
        %2848 = vmatprep.subr.bf16.mxu0 0
        %2849 = vmatpush1.bf16.msra.mxu0 0
        %2850 = vmatprep.subr.bf16.mxu0 0
        %2851 = vmatpush1.bf16.msra.mxu0 0
        %2852 = vmatprep.subr.bf16.mxu0 0
        %2853 = vmatpush1.bf16.msra.mxu0 0
        %2854 = vmatprep.subr.bf16.mxu0 0
        %2855 = vmatpush1.bf16.msra.mxu0 0
        %2856 = vmatprep.subr.bf16.mxu0 0
        %2857 = vmatpush1.bf16.msra.mxu0 %v2840
        %2858 = vmatprep.subr.bf16.mxu0 0
        %2859 = vmatpush2.bf16.msra.mxu0 0
        %2860 = vmatprep.subr.bf16.mxu0 0
        %2861 = vmatpush2.bf16.msra.mxu0 0
        %2862 = vmatprep.subr.bf16.mxu0 0
        %2863 = vmatpush2.bf16.msra.mxu0 0
        %2864 = vmatprep.subr.bf16.mxu0 0
        %2865 = vmatpush2.bf16.msra.mxu0 0
        %2866 = vmatprep.subr.bf16.mxu0 0
        %2867 = vmatpush2.bf16.msra.mxu0 0
        %2868 = vmatprep.subr.bf16.mxu0 0
        %2869 = vmatpush2.bf16.msra.mxu0 0
        %2870 = vmatprep.subr.bf16.mxu0 0
        %2871 = vmatpush2.bf16.msra.mxu0 0
        %2872 = vmatprep.subr.bf16.mxu0 0
        %2873 = vmatpush2.bf16.msra.mxu0 0
        %2874 = vmatprep.mubr.bf16.mxu0 0
        %2875 = vmatmul.mubr.bf16.gmra.mxu0 %v2837
        %v2876 = vpop.f32.mrf.mxu0
        %v2877 = vadd.f32 0.0, %v2876
        %v2878 = vpop.f32.mrf.mxu0
        %v2879 = vpop.f32.mrf.mxu0
        %v2880 = vadd.f32 0.0, %v2879
        %v2881 = vpop.f32.mrf.mxu0
        %2882 = vdwg.mxu0
        %v2884 = vsel %vm2220, %v2690, 0
        %v2887 = vsel %vm2697, %v1761, 0
        %2889 = vmatprep.subr.bf16.mxu0 0
        %2890 = vmatpush1.bf16.msra.mxu0 0
        %2891 = vmatprep.subr.bf16.mxu0 0
        %2892 = vmatpush1.bf16.msra.mxu0 0
        %2893 = vmatprep.subr.bf16.mxu0 0
        %2894 = vmatpush1.bf16.msra.mxu0 0
        %2895 = vmatprep.subr.bf16.mxu0 0
        %2896 = vmatpush1.bf16.msra.mxu0 0
        %2897 = vmatprep.subr.bf16.mxu0 0
        %2898 = vmatpush1.bf16.msra.mxu0 0
        %2899 = vmatprep.subr.bf16.mxu0 0
        %2900 = vmatpush1.bf16.msra.mxu0 0
        %2901 = vmatprep.subr.bf16.mxu0 0
        %2902 = vmatpush1.bf16.msra.mxu0 0
        %2903 = vmatprep.subr.bf16.mxu0 0
        %2904 = vmatpush1.bf16.msra.mxu0 %v2887
        %2905 = vmatprep.subr.bf16.mxu0 0
        %2906 = vmatpush2.bf16.msra.mxu0 0
        %2907 = vmatprep.subr.bf16.mxu0 0
        %2908 = vmatpush2.bf16.msra.mxu0 0
        %2909 = vmatprep.subr.bf16.mxu0 0
        %2910 = vmatpush2.bf16.msra.mxu0 0
        %2911 = vmatprep.subr.bf16.mxu0 0
        %2912 = vmatpush2.bf16.msra.mxu0 0
        %2913 = vmatprep.subr.bf16.mxu0 0
        %2914 = vmatpush2.bf16.msra.mxu0 0
        %2915 = vmatprep.subr.bf16.mxu0 0
        %2916 = vmatpush2.bf16.msra.mxu0 0
        %2917 = vmatprep.subr.bf16.mxu0 0
        %2918 = vmatpush2.bf16.msra.mxu0 0
        %2919 = vmatprep.subr.bf16.mxu0 0
        %2920 = vmatpush2.bf16.msra.mxu0 0
        %2921 = vmatprep.mubr.bf16.mxu0 0
        %2922 = vmatmul.mubr.bf16.gmra.mxu0 %v2884
        %v2923 = vpop.f32.mrf.mxu0
        %v2924 = vadd.f32 0.0, %v2923
        %v2925 = vpop.f32.mrf.mxu0
        %v2926 = vpop.f32.mrf.mxu0
        %v2927 = vadd.f32 0.0, %v2926
        %v2928 = vpop.f32.mrf.mxu0
        %2929 = vdwg.mxu0
        %v2931 = vsel %vm2220, %v2691, 0
        %v2934 = vsel %vm2697, %v1764, 0
        %2936 = vmatprep.subr.bf16.mxu0 0
        %2937 = vmatpush1.bf16.msra.mxu0 0
        %2938 = vmatprep.subr.bf16.mxu0 0
        %2939 = vmatpush1.bf16.msra.mxu0 0
        %2940 = vmatprep.subr.bf16.mxu0 0
        %2941 = vmatpush1.bf16.msra.mxu0 0
        %2942 = vmatprep.subr.bf16.mxu0 0
        %2943 = vmatpush1.bf16.msra.mxu0 0
        %2944 = vmatprep.subr.bf16.mxu0 0
        %2945 = vmatpush1.bf16.msra.mxu0 0
        %2946 = vmatprep.subr.bf16.mxu0 0
        %2947 = vmatpush1.bf16.msra.mxu0 0
        %2948 = vmatprep.subr.bf16.mxu0 0
        %2949 = vmatpush1.bf16.msra.mxu0 0
        %2950 = vmatprep.subr.bf16.mxu0 0
        %2951 = vmatpush1.bf16.msra.mxu0 %v2934
        %2952 = vmatprep.subr.bf16.mxu0 0
        %2953 = vmatpush2.bf16.msra.mxu0 0
        %2954 = vmatprep.subr.bf16.mxu0 0
        %2955 = vmatpush2.bf16.msra.mxu0 0
        %2956 = vmatprep.subr.bf16.mxu0 0
        %2957 = vmatpush2.bf16.msra.mxu0 0
        %2958 = vmatprep.subr.bf16.mxu0 0
        %2959 = vmatpush2.bf16.msra.mxu0 0
        %2960 = vmatprep.subr.bf16.mxu0 0
        %2961 = vmatpush2.bf16.msra.mxu0 0
        %2962 = vmatprep.subr.bf16.mxu0 0
        %2963 = vmatpush2.bf16.msra.mxu0 0
        %2964 = vmatprep.subr.bf16.mxu0 0
        %2965 = vmatpush2.bf16.msra.mxu0 0
        %2966 = vmatprep.subr.bf16.mxu0 0
        %2967 = vmatpush2.bf16.msra.mxu0 0
        %2968 = vmatprep.mubr.bf16.mxu0 0
        %2969 = vmatmul.mubr.bf16.gmra.mxu0 %v2931
        %v2970 = vpop.f32.mrf.mxu0
        %v2971 = vadd.f32 0.0, %v2970
        %v2972 = vpop.f32.mrf.mxu0
        %v2973 = vpop.f32.mrf.mxu0
        %v2974 = vadd.f32 0.0, %v2973
        %v2975 = vpop.f32.mrf.mxu0
        %2976 = vdwg.mxu0
        %v2978 = vsel %vm2220, %v2692, 0
        %v2981 = vsel %vm2697, %v1767, 0
        %2983 = vmatprep.subr.bf16.mxu0 0
        %2984 = vmatpush1.bf16.msra.mxu0 0
        %2985 = vmatprep.subr.bf16.mxu0 0
        %2986 = vmatpush1.bf16.msra.mxu0 0
        %2987 = vmatprep.subr.bf16.mxu0 0
        %2988 = vmatpush1.bf16.msra.mxu0 0
        %2989 = vmatprep.subr.bf16.mxu0 0
        %2990 = vmatpush1.bf16.msra.mxu0 0
        %2991 = vmatprep.subr.bf16.mxu0 0
        %2992 = vmatpush1.bf16.msra.mxu0 0
        %2993 = vmatprep.subr.bf16.mxu0 0
        %2994 = vmatpush1.bf16.msra.mxu0 0
        %2995 = vmatprep.subr.bf16.mxu0 0
        %2996 = vmatpush1.bf16.msra.mxu0 0
        %2997 = vmatprep.subr.bf16.mxu0 0
        %2998 = vmatpush1.bf16.msra.mxu0 %v2981
        %2999 = vmatprep.subr.bf16.mxu0 0
        %3000 = vmatpush2.bf16.msra.mxu0 0
        %3001 = vmatprep.subr.bf16.mxu0 0
        %3002 = vmatpush2.bf16.msra.mxu0 0
        %3003 = vmatprep.subr.bf16.mxu0 0
        %3004 = vmatpush2.bf16.msra.mxu0 0
        %3005 = vmatprep.subr.bf16.mxu0 0
        %3006 = vmatpush2.bf16.msra.mxu0 0
        %3007 = vmatprep.subr.bf16.mxu0 0
        %3008 = vmatpush2.bf16.msra.mxu0 0
        %3009 = vmatprep.subr.bf16.mxu0 0
        %3010 = vmatpush2.bf16.msra.mxu0 0
        %3011 = vmatprep.subr.bf16.mxu0 0
        %3012 = vmatpush2.bf16.msra.mxu0 0
        %3013 = vmatprep.subr.bf16.mxu0 0
        %3014 = vmatpush2.bf16.msra.mxu0 0
        %3015 = vmatprep.mubr.bf16.mxu0 0
        %3016 = vmatmul.mubr.bf16.gmra.mxu0 %v2978
        %v3017 = vpop.f32.mrf.mxu0
        %v3018 = vadd.f32 0.0, %v3017
        %v3019 = vpop.f32.mrf.mxu0
        %v3020 = vpop.f32.mrf.mxu0
        %v3021 = vadd.f32 0.0, %v3020
        %v3022 = vpop.f32.mrf.mxu0
        %3023 = vdwg.mxu0
        %v3025 = vsel %vm2220, %v2693, 0
        %v3028 = vsel %vm2697, %v1770, 0
        %3030 = vmatprep.subr.bf16.mxu0 0
        %3031 = vmatpush1.bf16.msra.mxu0 0
        %3032 = vmatprep.subr.bf16.mxu0 0
        %3033 = vmatpush1.bf16.msra.mxu0 0
        %3034 = vmatprep.subr.bf16.mxu0 0
        %3035 = vmatpush1.bf16.msra.mxu0 0
        %3036 = vmatprep.subr.bf16.mxu0 0
        %3037 = vmatpush1.bf16.msra.mxu0 0
        %3038 = vmatprep.subr.bf16.mxu0 0
        %3039 = vmatpush1.bf16.msra.mxu0 0
        %3040 = vmatprep.subr.bf16.mxu0 0
        %3041 = vmatpush1.bf16.msra.mxu0 0
        %3042 = vmatprep.subr.bf16.mxu0 0
        %3043 = vmatpush1.bf16.msra.mxu0 0
        %3044 = vmatprep.subr.bf16.mxu0 0
        %3045 = vmatpush1.bf16.msra.mxu0 %v3028
        %3046 = vmatprep.subr.bf16.mxu0 0
        %3047 = vmatpush2.bf16.msra.mxu0 0
        %3048 = vmatprep.subr.bf16.mxu0 0
        %3049 = vmatpush2.bf16.msra.mxu0 0
        %3050 = vmatprep.subr.bf16.mxu0 0
        %3051 = vmatpush2.bf16.msra.mxu0 0
        %3052 = vmatprep.subr.bf16.mxu0 0
        %3053 = vmatpush2.bf16.msra.mxu0 0
        %3054 = vmatprep.subr.bf16.mxu0 0
        %3055 = vmatpush2.bf16.msra.mxu0 0
        %3056 = vmatprep.subr.bf16.mxu0 0
        %3057 = vmatpush2.bf16.msra.mxu0 0
        %3058 = vmatprep.subr.bf16.mxu0 0
        %3059 = vmatpush2.bf16.msra.mxu0 0
        %3060 = vmatprep.subr.bf16.mxu0 0
        %3061 = vmatpush2.bf16.msra.mxu0 0
        %3062 = vmatprep.mubr.bf16.mxu0 0
        %3063 = vmatmul.mubr.bf16.gmra.mxu0 %v3025
        %v3064 = vpop.f32.mrf.mxu0
        %v3065 = vadd.f32 0.0, %v3064
        %v3066 = vpop.f32.mrf.mxu0
        %v3067 = vpop.f32.mrf.mxu0
        %v3068 = vadd.f32 0.0, %v3067
        %v3069 = vpop.f32.mrf.mxu0
        %3070 = vdwg.mxu0
        %v3071 = vadd.f32 %v2670, %v2736
        %v3072 = vadd.f32 %v2671, %v2739
        %v3073 = vadd.f32 %v2672, %v2783
        %v3074 = vadd.f32 %v2673, %v2786
        %v3075 = vadd.f32 %v2674, %v2830
        %v3076 = vadd.f32 %v2675, %v2833
        %v3077 = vadd.f32 %v2676, %v2877
        %v3078 = vadd.f32 %v2677, %v2880
        %v3079 = vadd.f32 %v2678, %v2924
        %v3080 = vadd.f32 %v2679, %v2927
        %v3081 = vadd.f32 %v2680, %v2971
        %v3082 = vadd.f32 %v2681, %v2974
        %v3083 = vadd.f32 %v2682, %v3018
        %v3084 = vadd.f32 %v2683, %v3021
        %v3085 = vadd.f32 %v2684, %v3065
        %v3086 = vadd.f32 %v2685, %v3068
        %3087 = vst.msk [vmem:[#allocation5] sm:$0xff] %vm1792, %v3071
        %3088 = vst.msk [vmem:[#allocation5 + $0x8] sm:$0xff] %vm1792, %v3072
        %3089 = vst.msk [vmem:[#allocation5 + $0x10] sm:$0xff] %vm1792, %v3073
        %3090 = vst.msk [vmem:[#allocation5 + $0x18] sm:$0xff] %vm1792, %v3074
        %3091 = vst.msk [vmem:[#allocation5 + $0x20] sm:$0xff] %vm1792, %v3075
        %3092 = vst.msk [vmem:[#allocation5 + $0x28] sm:$0xff] %vm1792, %v3076
        %3093 = vst.msk [vmem:[#allocation5 + $0x30] sm:$0xff] %vm1792, %v3077
        %3094 = vst.msk [vmem:[#allocation5 + $0x38] sm:$0xff] %vm1792, %v3078
        %3095 = vst.msk [vmem:[#allocation5 + $0x40] sm:$0xff] %vm1792, %v3079
        %3096 = vst.msk [vmem:[#allocation5 + $0x48] sm:$0xff] %vm1792, %v3080
        %3097 = vst.msk [vmem:[#allocation5 + $0x50] sm:$0xff] %vm1792, %v3081
        %3098 = vst.msk [vmem:[#allocation5 + $0x58] sm:$0xff] %vm1792, %v3082
        %3099 = vst.msk [vmem:[#allocation5 + $0x60] sm:$0xff] %vm1792, %v3083
        %3100 = vst.msk [vmem:[#allocation5 + $0x68] sm:$0xff] %vm1792, %v3084
        %3101 = vst.msk [vmem:[#allocation5 + $0x70] sm:$0xff] %vm1792, %v3085
        %3102 = vst.msk [vmem:[#allocation5 + $0x78] sm:$0xff] %vm1792, %v3086
        %3103 = vst.msk [vmem:[#allocation3] sm:$0xff] %vm2557, %v2269
        %3104 = vst.msk [vmem:[#allocation3 + $0x8] sm:$0xff] %vm2557, %v2270
        %3105 = vst.msk [vmem:[#allocation3 + $0x10] sm:$0xff] %vm2557, %v2271
        %3106 = vst.msk [vmem:[#allocation3 + $0x18] sm:$0xff] %vm2557, %v2272
        %3107 = vst.msk [vmem:[#allocation3 + $0x20] sm:$0xff] %vm2557, %v2273
        %3108 = vst.msk [vmem:[#allocation3 + $0x28] sm:$0xff] %vm2557, %v2274
        %3109 = vst.msk [vmem:[#allocation3 + $0x30] sm:$0xff] %vm2557, %v2275
        %3110 = vst.msk [vmem:[#allocation3 + $0x38] sm:$0xff] %vm2557, %v2276
        %3111 = vst.msk [vmem:[#allocation3 + $0x40] sm:$0xff] %vm2557, %v2277
        %3112 = vst.msk [vmem:[#allocation3 + $0x48] sm:$0xff] %vm2557, %v2278
        %3113 = vst.msk [vmem:[#allocation3 + $0x50] sm:$0xff] %vm2557, %v2279
        %3114 = vst.msk [vmem:[#allocation3 + $0x58] sm:$0xff] %vm2557, %v2280
        %3115 = vst.msk [vmem:[#allocation3 + $0x60] sm:$0xff] %vm2557, %v2281
        %3116 = vst.msk [vmem:[#allocation3 + $0x68] sm:$0xff] %vm2557, %v2282
        %3117 = vst.msk [vmem:[#allocation3 + $0x70] sm:$0xff] %vm2557, %v2283
        %3118 = vst.msk [vmem:[#allocation3 + $0x78] sm:$0xff] %vm2557, %v2284
        %p3119 = scmp.eq.s32.totalorder %s32, 1
        // Predicated region
        $region69: #{tpu_custom_call.1} parent=43 // pred_check
          %p3120 = pneg %p3119
        $region70: #{tpu_custom_call.1} parent=43 // pred_check_branch
          %3122 = sbr.rel (%p3120) target = $region72
        $region71: #{tpu_custom_call.1} parent=43 // pred_region
          %v3123 = vld [vmem:[#allocation5] sm:$0xff]
          %v3124 = vld [vmem:[#allocation5 + $0x8] sm:$0xff]
          %v3125 = vld [vmem:[#allocation5 + $0x10] sm:$0xff]
          %v3126 = vld [vmem:[#allocation5 + $0x18] sm:$0xff]
          %v3127 = vld [vmem:[#allocation5 + $0x20] sm:$0xff]
          %v3128 = vld [vmem:[#allocation5 + $0x28] sm:$0xff]
          %v3129 = vld [vmem:[#allocation5 + $0x30] sm:$0xff]
          %v3130 = vld [vmem:[#allocation5 + $0x38] sm:$0xff]
          %v3131 = vld [vmem:[#allocation5 + $0x40] sm:$0xff]
          %v3132 = vld [vmem:[#allocation5 + $0x48] sm:$0xff]
          %v3133 = vld [vmem:[#allocation5 + $0x50] sm:$0xff]
          %v3134 = vld [vmem:[#allocation5 + $0x58] sm:$0xff]
          %v3135 = vld [vmem:[#allocation5 + $0x60] sm:$0xff]
          %v3136 = vld [vmem:[#allocation5 + $0x68] sm:$0xff]
          %v3137 = vld [vmem:[#allocation5 + $0x70] sm:$0xff]
          %v3138 = vld [vmem:[#allocation5 + $0x78] sm:$0xff]
          %v3139 = vld [vmem:[#allocation4] sm:$0xff]
          %v3140 = vld [vmem:[#allocation4 + $0x8] sm:$0xff]
          %v3141 = vld [vmem:[#allocation4 + $0x10] sm:$0xff]
          %v3142 = vld [vmem:[#allocation4 + $0x18] sm:$0xff]
          %v3143 = vld [vmem:[#allocation4 + $0x20] sm:$0xff]
          %v3144 = vld [vmem:[#allocation4 + $0x28] sm:$0xff]
          %v3145 = vld [vmem:[#allocation4 + $0x30] sm:$0xff]
          %v3146 = vld [vmem:[#allocation4 + $0x38] sm:$0xff]
          %v3147 = vld [vmem:[#allocation4 + $0x40] sm:$0xff]
          %v3148 = vld [vmem:[#allocation4 + $0x48] sm:$0xff]
          %v3149 = vld [vmem:[#allocation4 + $0x50] sm:$0xff]
          %v3150 = vld [vmem:[#allocation4 + $0x58] sm:$0xff]
          %v3151 = vld [vmem:[#allocation4 + $0x60] sm:$0xff]
          %v3152 = vld [vmem:[#allocation4 + $0x68] sm:$0xff]
          %v3153 = vld [vmem:[#allocation4 + $0x70] sm:$0xff]
          %v3154 = vld [vmem:[#allocation4 + $0x78] sm:$0xff]
          %v3155 = vrcp.pop %v3139
          %v3156 = vrcp.pop %v3140
          %v3157 = vrcp.pop %v3141
          %v3158 = vrcp.pop %v3142
          %v3159 = vrcp.pop %v3143
          %v3160 = vrcp.pop %v3144
          %v3161 = vrcp.pop %v3145
          %v3162 = vrcp.pop %v3146
          %v3163 = vrcp.pop %v3147
          %v3164 = vrcp.pop %v3148
          %v3165 = vrcp.pop %v3149
          %v3166 = vrcp.pop %v3150
          %v3167 = vrcp.pop %v3151
          %v3168 = vrcp.pop %v3152
          %v3169 = vrcp.pop %v3153
          %v3170 = vrcp.pop %v3154
          %3172 = vset.pattern.permute.xlu0 0
          %3173 = vperm.xlu0 %3172, %v3155
          %v3174 = vpop.permute.xlu0 %3173
          %3177 = vset.pattern.permute.xlu0 0
          %3178 = vperm.xlu0 %3177, %v3156
          %v3179 = vpop.permute.xlu0 %3178
          %3182 = vset.pattern.permute.xlu0 0
          %3183 = vperm.xlu0 %3182, %v3157
          %v3184 = vpop.permute.xlu0 %3183
          %3187 = vset.pattern.permute.xlu0 0
          %3188 = vperm.xlu0 %3187, %v3158
          %v3189 = vpop.permute.xlu0 %3188
          %3192 = vset.pattern.permute.xlu0 0
          %3193 = vperm.xlu0 %3192, %v3159
          %v3194 = vpop.permute.xlu0 %3193
          %3197 = vset.pattern.permute.xlu0 0
          %3198 = vperm.xlu0 %3197, %v3160
          %v3199 = vpop.permute.xlu0 %3198
          %3202 = vset.pattern.permute.xlu0 0
          %3203 = vperm.xlu0 %3202, %v3161
          %v3204 = vpop.permute.xlu0 %3203
          %3207 = vset.pattern.permute.xlu0 0
          %3208 = vperm.xlu0 %3207, %v3162
          %v3209 = vpop.permute.xlu0 %3208
          %3212 = vset.pattern.permute.xlu0 0
          %3213 = vperm.xlu0 %3212, %v3163
          %v3214 = vpop.permute.xlu0 %3213
          %3217 = vset.pattern.permute.xlu0 0
          %3218 = vperm.xlu0 %3217, %v3164
          %v3219 = vpop.permute.xlu0 %3218
          %3222 = vset.pattern.permute.xlu0 0
          %3223 = vperm.xlu0 %3222, %v3165
          %v3224 = vpop.permute.xlu0 %3223
          %3227 = vset.pattern.permute.xlu0 0
          %3228 = vperm.xlu0 %3227, %v3166
          %v3229 = vpop.permute.xlu0 %3228
          %3232 = vset.pattern.permute.xlu0 0
          %3233 = vperm.xlu0 %3232, %v3167
          %v3234 = vpop.permute.xlu0 %3233
          %3237 = vset.pattern.permute.xlu0 0
          %3238 = vperm.xlu0 %3237, %v3168
          %v3239 = vpop.permute.xlu0 %3238
          %3242 = vset.pattern.permute.xlu0 0
          %3243 = vperm.xlu0 %3242, %v3169
          %v3244 = vpop.permute.xlu0 %3243
          %3247 = vset.pattern.permute.xlu0 0
          %3248 = vperm.xlu0 %3247, %v3170
          %v3249 = vpop.permute.xlu0 %3248
          %v3251 = vmul.f32 %v3123, %v3174
          %v3252 = vmul.f32 %v3124, %v3179
          %v3253 = vmul.f32 %v3125, %v3184
          %v3254 = vmul.f32 %v3126, %v3189
          %v3255 = vmul.f32 %v3127, %v3194
          %v3256 = vmul.f32 %v3128, %v3199
          %v3257 = vmul.f32 %v3129, %v3204
          %v3258 = vmul.f32 %v3130, %v3209
          %v3259 = vmul.f32 %v3131, %v3214
          %v3260 = vmul.f32 %v3132, %v3219
          %v3261 = vmul.f32 %v3133, %v3224
          %v3262 = vmul.f32 %v3134, %v3229
          %v3263 = vmul.f32 %v3135, %v3234
          %v3264 = vmul.f32 %v3136, %v3239
          %v3265 = vmul.f32 %v3137, %v3244
          %v3266 = vmul.f32 %v3138, %v3249
          %v3267 = vcombine.low %v3251, %v3255
          %v3268 = vcombine.high %v3251, %v3255
          %v3270 = vunpack.c.l.s4 1983009808
          %v3271 = vunpack.c.0.s8 %v3270
          %v3272 = vlaneseq
          %v3273 = vshrl.u32 %v3272, 7
          %v3274 = vsub.s32 %v3271, %v3273
          %v3275 = vrot.slane %v3267, %v3274
          %v3277 = vunpack.c.l.s4 1983009808
          %v3278 = vunpack.c.0.s8 %v3277
          %v3279 = vlaneseq
          %v3280 = vshrl.u32 %v3279, 7
          %v3281 = vsub.s32 %v3278, %v3280
          %v3282 = vrot.slane %v3268, %v3281
          %v3283 = vcombine.low %v3253, %v3257
          %v3284 = vcombine.high %v3253, %v3257
          %v3286 = vunpack.c.l.s4 1983009808
          %v3287 = vunpack.c.0.s8 %v3286
          %v3288 = vlaneseq
          %v3289 = vshrl.u32 %v3288, 7
          %v3290 = vsub.s32 %v3287, %v3289
          %v3291 = vrot.slane %v3283, %v3290
          %v3293 = vunpack.c.l.s4 1983009808
          %v3294 = vunpack.c.0.s8 %v3293
          %v3295 = vlaneseq
          %v3296 = vshrl.u32 %v3295, 7
          %v3297 = vsub.s32 %v3294, %v3296
          %v3298 = vrot.slane %v3284, %v3297
          %v3299 = vcombine.low %v3259, %v3263
          %v3300 = vcombine.high %v3259, %v3263
          %v3302 = vunpack.c.l.s4 1983009808
          %v3303 = vunpack.c.0.s8 %v3302
          %v3304 = vlaneseq
          %v3305 = vshrl.u32 %v3304, 7
          %v3306 = vsub.s32 %v3303, %v3305
          %v3307 = vrot.slane %v3299, %v3306
          %v3309 = vunpack.c.l.s4 1983009808
          %v3310 = vunpack.c.0.s8 %v3309
          %v3311 = vlaneseq
          %v3312 = vshrl.u32 %v3311, 7
          %v3313 = vsub.s32 %v3310, %v3312
          %v3314 = vrot.slane %v3300, %v3313
          %v3315 = vcombine.low %v3261, %v3265
          %v3316 = vcombine.high %v3261, %v3265
          %v3318 = vunpack.c.l.s4 1983009808
          %v3319 = vunpack.c.0.s8 %v3318
          %v3320 = vlaneseq
          %v3321 = vshrl.u32 %v3320, 7
          %v3322 = vsub.s32 %v3319, %v3321
          %v3323 = vrot.slane %v3315, %v3322
          %v3325 = vunpack.c.l.s4 1983009808
          %v3326 = vunpack.c.0.s8 %v3325
          %v3327 = vlaneseq
          %v3328 = vshrl.u32 %v3327, 7
          %v3329 = vsub.s32 %v3326, %v3328
          %v3330 = vrot.slane %v3316, %v3329
          %v3331 = vcombine.low %v3275, %v3291
          %v3332 = vcombine.high %v3275, %v3291
          %v3334 = vunpack.c.l.s4 1934713408
          %v3335 = vunpack.c.0.s8 %v3334
          %v3336 = vlaneseq
          %v3337 = vshrl.u32 %v3336, 7
          %v3338 = vsub.s32 %v3335, %v3337
          %v3339 = vrot.slane %v3331, %v3338
          %v3341 = vunpack.c.l.s4 1934713408
          %v3342 = vunpack.c.0.s8 %v3341
          %v3343 = vlaneseq
          %v3344 = vshrl.u32 %v3343, 7
          %v3345 = vsub.s32 %v3342, %v3344
          %v3346 = vrot.slane %v3332, %v3345
          %v3347 = vcombine.low %v3282, %v3298
          %v3348 = vcombine.high %v3282, %v3298
          %v3350 = vunpack.c.l.s4 1934713408
          %v3351 = vunpack.c.0.s8 %v3350
          %v3352 = vlaneseq
          %v3353 = vshrl.u32 %v3352, 7
          %v3354 = vsub.s32 %v3351, %v3353
          %v3355 = vrot.slane %v3347, %v3354
          %v3357 = vunpack.c.l.s4 1934713408
          %v3358 = vunpack.c.0.s8 %v3357
          %v3359 = vlaneseq
          %v3360 = vshrl.u32 %v3359, 7
          %v3361 = vsub.s32 %v3358, %v3360
          %v3362 = vrot.slane %v3348, %v3361
          %v3363 = vcombine.low %v3307, %v3323
          %v3364 = vcombine.high %v3307, %v3323
          %v3366 = vunpack.c.l.s4 1934713408
          %v3367 = vunpack.c.0.s8 %v3366
          %v3368 = vlaneseq
          %v3369 = vshrl.u32 %v3368, 7
          %v3370 = vsub.s32 %v3367, %v3369
          %v3371 = vrot.slane %v3363, %v3370
          %v3373 = vunpack.c.l.s4 1934713408
          %v3374 = vunpack.c.0.s8 %v3373
          %v3375 = vlaneseq
          %v3376 = vshrl.u32 %v3375, 7
          %v3377 = vsub.s32 %v3374, %v3376
          %v3378 = vrot.slane %v3364, %v3377
          %v3379 = vcombine.low %v3314, %v3330
          %v3380 = vcombine.high %v3314, %v3330
          %v3382 = vunpack.c.l.s4 1934713408
          %v3383 = vunpack.c.0.s8 %v3382
          %v3384 = vlaneseq
          %v3385 = vshrl.u32 %v3384, 7
          %v3386 = vsub.s32 %v3383, %v3385
          %v3387 = vrot.slane %v3379, %v3386
          %v3389 = vunpack.c.l.s4 1934713408
          %v3390 = vunpack.c.0.s8 %v3389
          %v3391 = vlaneseq
          %v3392 = vshrl.u32 %v3391, 7
          %v3393 = vsub.s32 %v3390, %v3392
          %v3394 = vrot.slane %v3380, %v3393
          %v3395 = vcombine.low %v3339, %v3371
          %v3396 = vcombine.high %v3339, %v3371
          %v3397 = vcombine.low %v3346, %v3378
          %v3398 = vcombine.high %v3346, %v3378
          %v3399 = vcombine.low %v3355, %v3387
          %v3400 = vcombine.high %v3355, %v3387
          %v3401 = vcombine.low %v3362, %v3394
          %v3402 = vcombine.high %v3362, %v3394
          %v3403 = vcombine.low %v3252, %v3256
          %v3404 = vcombine.high %v3252, %v3256
          %v3406 = vunpack.c.l.s4 1983009808
          %v3407 = vunpack.c.0.s8 %v3406
          %v3408 = vlaneseq
          %v3409 = vshrl.u32 %v3408, 7
          %v3410 = vsub.s32 %v3407, %v3409
          %v3411 = vrot.slane %v3403, %v3410
          %v3413 = vunpack.c.l.s4 1983009808
          %v3414 = vunpack.c.0.s8 %v3413
          %v3415 = vlaneseq
          %v3416 = vshrl.u32 %v3415, 7
          %v3417 = vsub.s32 %v3414, %v3416
          %v3418 = vrot.slane %v3404, %v3417
          %v3419 = vcombine.low %v3254, %v3258
          %v3420 = vcombine.high %v3254, %v3258
          %v3422 = vunpack.c.l.s4 1983009808
          %v3423 = vunpack.c.0.s8 %v3422
          %v3424 = vlaneseq
          %v3425 = vshrl.u32 %v3424, 7
          %v3426 = vsub.s32 %v3423, %v3425
          %v3427 = vrot.slane %v3419, %v3426
          %v3429 = vunpack.c.l.s4 1983009808
          %v3430 = vunpack.c.0.s8 %v3429
          %v3431 = vlaneseq
          %v3432 = vshrl.u32 %v3431, 7
          %v3433 = vsub.s32 %v3430, %v3432
          %v3434 = vrot.slane %v3420, %v3433
          %v3435 = vcombine.low %v3260, %v3264
          %v3436 = vcombine.high %v3260, %v3264
          %v3438 = vunpack.c.l.s4 1983009808
          %v3439 = vunpack.c.0.s8 %v3438
          %v3440 = vlaneseq
          %v3441 = vshrl.u32 %v3440, 7
          %v3442 = vsub.s32 %v3439, %v3441
          %v3443 = vrot.slane %v3435, %v3442
          %v3445 = vunpack.c.l.s4 1983009808
          %v3446 = vunpack.c.0.s8 %v3445
          %v3447 = vlaneseq
          %v3448 = vshrl.u32 %v3447, 7
          %v3449 = vsub.s32 %v3446, %v3448
          %v3450 = vrot.slane %v3436, %v3449
          %v3451 = vcombine.low %v3262, %v3266
          %v3452 = vcombine.high %v3262, %v3266
          %v3454 = vunpack.c.l.s4 1983009808
          %v3455 = vunpack.c.0.s8 %v3454
          %v3456 = vlaneseq
          %v3457 = vshrl.u32 %v3456, 7
          %v3458 = vsub.s32 %v3455, %v3457
          %v3459 = vrot.slane %v3451, %v3458
          %v3461 = vunpack.c.l.s4 1983009808
          %v3462 = vunpack.c.0.s8 %v3461
          %v3463 = vlaneseq
          %v3464 = vshrl.u32 %v3463, 7
          %v3465 = vsub.s32 %v3462, %v3464
          %v3466 = vrot.slane %v3452, %v3465
          %v3467 = vcombine.low %v3411, %v3427
          %v3468 = vcombine.high %v3411, %v3427
          %v3470 = vunpack.c.l.s4 1934713408
          %v3471 = vunpack.c.0.s8 %v3470
          %v3472 = vlaneseq
          %v3473 = vshrl.u32 %v3472, 7
          %v3474 = vsub.s32 %v3471, %v3473
          %v3475 = vrot.slane %v3467, %v3474
          %v3477 = vunpack.c.l.s4 1934713408
          %v3478 = vunpack.c.0.s8 %v3477
          %v3479 = vlaneseq
          %v3480 = vshrl.u32 %v3479, 7
          %v3481 = vsub.s32 %v3478, %v3480
          %v3482 = vrot.slane %v3468, %v3481
          %v3483 = vcombine.low %v3418, %v3434
          %v3484 = vcombine.high %v3418, %v3434
          %v3486 = vunpack.c.l.s4 1934713408
          %v3487 = vunpack.c.0.s8 %v3486
          %v3488 = vlaneseq
          %v3489 = vshrl.u32 %v3488, 7
          %v3490 = vsub.s32 %v3487, %v3489
          %v3491 = vrot.slane %v3483, %v3490
          %v3493 = vunpack.c.l.s4 1934713408
          %v3494 = vunpack.c.0.s8 %v3493
          %v3495 = vlaneseq
          %v3496 = vshrl.u32 %v3495, 7
          %v3497 = vsub.s32 %v3494, %v3496
          %v3498 = vrot.slane %v3484, %v3497
          %v3499 = vcombine.low %v3443, %v3459
          %v3500 = vcombine.high %v3443, %v3459
          %v3502 = vunpack.c.l.s4 1934713408
          %v3503 = vunpack.c.0.s8 %v3502
          %v3504 = vlaneseq
          %v3505 = vshrl.u32 %v3504, 7
          %v3506 = vsub.s32 %v3503, %v3505
          %v3507 = vrot.slane %v3499, %v3506
          %v3509 = vunpack.c.l.s4 1934713408
          %v3510 = vunpack.c.0.s8 %v3509
          %v3511 = vlaneseq
          %v3512 = vshrl.u32 %v3511, 7
          %v3513 = vsub.s32 %v3510, %v3512
          %v3514 = vrot.slane %v3500, %v3513
          %v3515 = vcombine.low %v3450, %v3466
          %v3516 = vcombine.high %v3450, %v3466
          %v3518 = vunpack.c.l.s4 1934713408
          %v3519 = vunpack.c.0.s8 %v3518
          %v3520 = vlaneseq
          %v3521 = vshrl.u32 %v3520, 7
          %v3522 = vsub.s32 %v3519, %v3521
          %v3523 = vrot.slane %v3515, %v3522
          %v3525 = vunpack.c.l.s4 1934713408
          %v3526 = vunpack.c.0.s8 %v3525
          %v3527 = vlaneseq
          %v3528 = vshrl.u32 %v3527, 7
          %v3529 = vsub.s32 %v3526, %v3528
          %v3530 = vrot.slane %v3516, %v3529
          %v3531 = vcombine.low %v3475, %v3507
          %v3532 = vcombine.high %v3475, %v3507
          %v3533 = vcombine.low %v3482, %v3514
          %v3534 = vcombine.high %v3482, %v3514
          %v3535 = vcombine.low %v3491, %v3523
          %v3536 = vcombine.high %v3491, %v3523
          %v3537 = vcombine.low %v3498, %v3530
          %v3538 = vcombine.high %v3498, %v3530
          %v3539 = vcombine.low %v3395, %v3397
          %v3540 = vcombine.high %v3395, %v3397
          %v3542 = vunpack.c.l.s4 1983009808
          %v3543 = vunpack.c.0.s8 %v3542
          %v3544 = vlaneseq
          %v3545 = vshrl.u32 %v3544, 7
          %v3546 = vsub.s32 %v3543, %v3545
          %v3547 = vrot.slane %v3539, %v3546
          %v3549 = vunpack.c.l.s4 1983009808
          %v3550 = vunpack.c.0.s8 %v3549
          %v3551 = vlaneseq
          %v3552 = vshrl.u32 %v3551, 7
          %v3553 = vsub.s32 %v3550, %v3552
          %v3554 = vrot.slane %v3540, %v3553
          %v3555 = vcombine.low %v3396, %v3398
          %v3556 = vcombine.high %v3396, %v3398
          %v3558 = vunpack.c.l.s4 1983009808
          %v3559 = vunpack.c.0.s8 %v3558
          %v3560 = vlaneseq
          %v3561 = vshrl.u32 %v3560, 7
          %v3562 = vsub.s32 %v3559, %v3561
          %v3563 = vrot.slane %v3555, %v3562
          %v3565 = vunpack.c.l.s4 1983009808
          %v3566 = vunpack.c.0.s8 %v3565
          %v3567 = vlaneseq
          %v3568 = vshrl.u32 %v3567, 7
          %v3569 = vsub.s32 %v3566, %v3568
          %v3570 = vrot.slane %v3556, %v3569
          %v3571 = vcombine.low %v3399, %v3401
          %v3572 = vcombine.high %v3399, %v3401
          %v3574 = vunpack.c.l.s4 1983009808
          %v3575 = vunpack.c.0.s8 %v3574
          %v3576 = vlaneseq
          %v3577 = vshrl.u32 %v3576, 7
          %v3578 = vsub.s32 %v3575, %v3577
          %v3579 = vrot.slane %v3571, %v3578
          %v3581 = vunpack.c.l.s4 1983009808
          %v3582 = vunpack.c.0.s8 %v3581
          %v3583 = vlaneseq
          %v3584 = vshrl.u32 %v3583, 7
          %v3585 = vsub.s32 %v3582, %v3584
          %v3586 = vrot.slane %v3572, %v3585
          %v3587 = vcombine.low %v3400, %v3402
          %v3588 = vcombine.high %v3400, %v3402
          %v3590 = vunpack.c.l.s4 1983009808
          %v3591 = vunpack.c.0.s8 %v3590
          %v3592 = vlaneseq
          %v3593 = vshrl.u32 %v3592, 7
          %v3594 = vsub.s32 %v3591, %v3593
          %v3595 = vrot.slane %v3587, %v3594
          %v3597 = vunpack.c.l.s4 1983009808
          %v3598 = vunpack.c.0.s8 %v3597
          %v3599 = vlaneseq
          %v3600 = vshrl.u32 %v3599, 7
          %v3601 = vsub.s32 %v3598, %v3600
          %v3602 = vrot.slane %v3588, %v3601
          %v3603 = vcombine.low %v3547, %v3563
          %v3604 = vcombine.high %v3547, %v3563
          %v3606 = vunpack.c.l.s4 1934713408
          %v3607 = vunpack.c.0.s8 %v3606
          %v3608 = vlaneseq
          %v3609 = vshrl.u32 %v3608, 7
          %v3610 = vsub.s32 %v3607, %v3609
          %v3611 = vrot.slane %v3603, %v3610
          %v3613 = vunpack.c.l.s4 1934713408
          %v3614 = vunpack.c.0.s8 %v3613
          %v3615 = vlaneseq
          %v3616 = vshrl.u32 %v3615, 7
          %v3617 = vsub.s32 %v3614, %v3616
          %v3618 = vrot.slane %v3604, %v3617
          %v3619 = vcombine.low %v3554, %v3570
          %v3620 = vcombine.high %v3554, %v3570
          %v3622 = vunpack.c.l.s4 1934713408
          %v3623 = vunpack.c.0.s8 %v3622
          %v3624 = vlaneseq
          %v3625 = vshrl.u32 %v3624, 7
          %v3626 = vsub.s32 %v3623, %v3625
          %v3627 = vrot.slane %v3619, %v3626
          %v3629 = vunpack.c.l.s4 1934713408
          %v3630 = vunpack.c.0.s8 %v3629
          %v3631 = vlaneseq
          %v3632 = vshrl.u32 %v3631, 7
          %v3633 = vsub.s32 %v3630, %v3632
          %v3634 = vrot.slane %v3620, %v3633
          %v3635 = vcombine.low %v3579, %v3595
          %v3636 = vcombine.high %v3579, %v3595
          %v3638 = vunpack.c.l.s4 1934713408
          %v3639 = vunpack.c.0.s8 %v3638
          %v3640 = vlaneseq
          %v3641 = vshrl.u32 %v3640, 7
          %v3642 = vsub.s32 %v3639, %v3641
          %v3643 = vrot.slane %v3635, %v3642
          %v3645 = vunpack.c.l.s4 1934713408
          %v3646 = vunpack.c.0.s8 %v3645
          %v3647 = vlaneseq
          %v3648 = vshrl.u32 %v3647, 7
          %v3649 = vsub.s32 %v3646, %v3648
          %v3650 = vrot.slane %v3636, %v3649
          %v3651 = vcombine.low %v3586, %v3602
          %v3652 = vcombine.high %v3586, %v3602
          %v3654 = vunpack.c.l.s4 1934713408
          %v3655 = vunpack.c.0.s8 %v3654
          %v3656 = vlaneseq
          %v3657 = vshrl.u32 %v3656, 7
          %v3658 = vsub.s32 %v3655, %v3657
          %v3659 = vrot.slane %v3651, %v3658
          %v3661 = vunpack.c.l.s4 1934713408
          %v3662 = vunpack.c.0.s8 %v3661
          %v3663 = vlaneseq
          %v3664 = vshrl.u32 %v3663, 7
          %v3665 = vsub.s32 %v3662, %v3664
          %v3666 = vrot.slane %v3652, %v3665
          %v3667 = vcombine.low %v3611, %v3643
          %v3668 = vcombine.high %v3611, %v3643
          %v3669 = vcombine.low %v3618, %v3650
          %v3670 = vcombine.high %v3618, %v3650
          %v3671 = vcombine.low %v3627, %v3659
          %v3672 = vcombine.high %v3627, %v3659
          %v3673 = vcombine.low %v3634, %v3666
          %v3674 = vcombine.high %v3634, %v3666
          %v3675 = vcombine.low %v3531, %v3533
          %v3676 = vcombine.high %v3531, %v3533
          %v3678 = vunpack.c.l.s4 1983009808
          %v3679 = vunpack.c.0.s8 %v3678
          %v3680 = vlaneseq
          %v3681 = vshrl.u32 %v3680, 7
          %v3682 = vsub.s32 %v3679, %v3681
          %v3683 = vrot.slane %v3675, %v3682
          %v3685 = vunpack.c.l.s4 1983009808
          %v3686 = vunpack.c.0.s8 %v3685
          %v3687 = vlaneseq
          %v3688 = vshrl.u32 %v3687, 7
          %v3689 = vsub.s32 %v3686, %v3688
          %v3690 = vrot.slane %v3676, %v3689
          %v3691 = vcombine.low %v3532, %v3534
          %v3692 = vcombine.high %v3532, %v3534
          %v3694 = vunpack.c.l.s4 1983009808
          %v3695 = vunpack.c.0.s8 %v3694
          %v3696 = vlaneseq
          %v3697 = vshrl.u32 %v3696, 7
          %v3698 = vsub.s32 %v3695, %v3697
          %v3699 = vrot.slane %v3691, %v3698
          %v3701 = vunpack.c.l.s4 1983009808
          %v3702 = vunpack.c.0.s8 %v3701
          %v3703 = vlaneseq
          %v3704 = vshrl.u32 %v3703, 7
          %v3705 = vsub.s32 %v3702, %v3704
          %v3706 = vrot.slane %v3692, %v3705
          %v3707 = vcombine.low %v3535, %v3537
          %v3708 = vcombine.high %v3535, %v3537
          %v3710 = vunpack.c.l.s4 1983009808
          %v3711 = vunpack.c.0.s8 %v3710
          %v3712 = vlaneseq
          %v3713 = vshrl.u32 %v3712, 7
          %v3714 = vsub.s32 %v3711, %v3713
          %v3715 = vrot.slane %v3707, %v3714
          %v3717 = vunpack.c.l.s4 1983009808
          %v3718 = vunpack.c.0.s8 %v3717
          %v3719 = vlaneseq
          %v3720 = vshrl.u32 %v3719, 7
          %v3721 = vsub.s32 %v3718, %v3720
          %v3722 = vrot.slane %v3708, %v3721
          %v3723 = vcombine.low %v3536, %v3538
          %v3724 = vcombine.high %v3536, %v3538
          %v3726 = vunpack.c.l.s4 1983009808
          %v3727 = vunpack.c.0.s8 %v3726
          %v3728 = vlaneseq
          %v3729 = vshrl.u32 %v3728, 7
          %v3730 = vsub.s32 %v3727, %v3729
          %v3731 = vrot.slane %v3723, %v3730
          %v3733 = vunpack.c.l.s4 1983009808
          %v3734 = vunpack.c.0.s8 %v3733
          %v3735 = vlaneseq
          %v3736 = vshrl.u32 %v3735, 7
          %v3737 = vsub.s32 %v3734, %v3736
          %v3738 = vrot.slane %v3724, %v3737
          %v3739 = vcombine.low %v3683, %v3699
          %v3740 = vcombine.high %v3683, %v3699
          %v3742 = vunpack.c.l.s4 1934713408
          %v3743 = vunpack.c.0.s8 %v3742
          %v3744 = vlaneseq
          %v3745 = vshrl.u32 %v3744, 7
          %v3746 = vsub.s32 %v3743, %v3745
          %v3747 = vrot.slane %v3739, %v3746
          %v3749 = vunpack.c.l.s4 1934713408
          %v3750 = vunpack.c.0.s8 %v3749
          %v3751 = vlaneseq
          %v3752 = vshrl.u32 %v3751, 7
          %v3753 = vsub.s32 %v3750, %v3752
          %v3754 = vrot.slane %v3740, %v3753
          %v3755 = vcombine.low %v3690, %v3706
          %v3756 = vcombine.high %v3690, %v3706
          %v3758 = vunpack.c.l.s4 1934713408
          %v3759 = vunpack.c.0.s8 %v3758
          %v3760 = vlaneseq
          %v3761 = vshrl.u32 %v3760, 7
          %v3762 = vsub.s32 %v3759, %v3761
          %v3763 = vrot.slane %v3755, %v3762
          %v3765 = vunpack.c.l.s4 1934713408
          %v3766 = vunpack.c.0.s8 %v3765
          %v3767 = vlaneseq
          %v3768 = vshrl.u32 %v3767, 7
          %v3769 = vsub.s32 %v3766, %v3768
          %v3770 = vrot.slane %v3756, %v3769
          %v3771 = vcombine.low %v3715, %v3731
          %v3772 = vcombine.high %v3715, %v3731
          %v3774 = vunpack.c.l.s4 1934713408
          %v3775 = vunpack.c.0.s8 %v3774
          %v3776 = vlaneseq
          %v3777 = vshrl.u32 %v3776, 7
          %v3778 = vsub.s32 %v3775, %v3777
          %v3779 = vrot.slane %v3771, %v3778
          %v3781 = vunpack.c.l.s4 1934713408
          %v3782 = vunpack.c.0.s8 %v3781
          %v3783 = vlaneseq
          %v3784 = vshrl.u32 %v3783, 7
          %v3785 = vsub.s32 %v3782, %v3784
          %v3786 = vrot.slane %v3772, %v3785
          %v3787 = vcombine.low %v3722, %v3738
          %v3788 = vcombine.high %v3722, %v3738
          %v3790 = vunpack.c.l.s4 1934713408
          %v3791 = vunpack.c.0.s8 %v3790
          %v3792 = vlaneseq
          %v3793 = vshrl.u32 %v3792, 7
          %v3794 = vsub.s32 %v3791, %v3793
          %v3795 = vrot.slane %v3787, %v3794
          %v3797 = vunpack.c.l.s4 1934713408
          %v3798 = vunpack.c.0.s8 %v3797
          %v3799 = vlaneseq
          %v3800 = vshrl.u32 %v3799, 7
          %v3801 = vsub.s32 %v3798, %v3800
          %v3802 = vrot.slane %v3788, %v3801
          %v3803 = vcombine.low %v3747, %v3779
          %v3804 = vcombine.high %v3747, %v3779
          %v3805 = vcombine.low %v3754, %v3786
          %v3806 = vcombine.high %v3754, %v3786
          %v3807 = vcombine.low %v3763, %v3795
          %v3808 = vcombine.high %v3763, %v3795
          %v3809 = vcombine.low %v3770, %v3802
          %v3810 = vcombine.high %v3770, %v3802
          %3813 = vrot.lane.b32.xlu0 %v3668, 16
          %v3814 = vpop.permute.xlu0 %3813
          %3815 = vrot.lane.b32.xlu0 %v3804, 16
          %v3816 = vpop.permute.xlu0 %3815
          %3821 = vrot.lane.b32.xlu0 %v3669, 32
          %v3822 = vpop.permute.xlu0 %3821
          %3823 = vrot.lane.b32.xlu0 %v3805, 32
          %v3824 = vpop.permute.xlu0 %3823
          %3829 = vrot.lane.b32.xlu0 %v3670, 48
          %v3830 = vpop.permute.xlu0 %3829
          %3831 = vrot.lane.b32.xlu0 %v3806, 48
          %v3832 = vpop.permute.xlu0 %3831
          %3837 = vrot.lane.b32.xlu0 %v3671, 64
          %v3838 = vpop.permute.xlu0 %3837
          %3839 = vrot.lane.b32.xlu0 %v3807, 64
          %v3840 = vpop.permute.xlu0 %3839
          %3845 = vrot.lane.b32.xlu0 %v3672, 80
          %v3846 = vpop.permute.xlu0 %3845
          %3847 = vrot.lane.b32.xlu0 %v3808, 80
          %v3848 = vpop.permute.xlu0 %3847
          %3853 = vrot.lane.b32.xlu0 %v3673, 96
          %v3854 = vpop.permute.xlu0 %3853
          %3855 = vrot.lane.b32.xlu0 %v3809, 96
          %v3856 = vpop.permute.xlu0 %3855
          %3861 = vrot.lane.b32.xlu0 %v3674, 112
          %v3862 = vpop.permute.xlu0 %3861
          %3863 = vrot.lane.b32.xlu0 %v3810, 112
          %v3864 = vpop.permute.xlu0 %3863
          %v3867 = vsel %vm1792, %v3667, %v3814
          %v3868 = vsel %vm1792, %v3803, %v3816
          %vm3869 = vcmask 261120
          %v3870 = vsel %vm3869, %v3867, %v3822
          %v3871 = vsel %vm3869, %v3868, %v3824
          %vm3872 = vcmask 392192
          %v3873 = vsel %vm3872, %v3870, %v3830
          %v3874 = vsel %vm3872, %v3871, %v3832
          %vm3875 = vcmask 523264
          %v3876 = vsel %vm3875, %v3873, %v3838
          %v3877 = vsel %vm3875, %v3874, %v3840
          %vm3878 = vcmask 654336
          %v3879 = vsel %vm3878, %v3876, %v3846
          %v3880 = vsel %vm3878, %v3877, %v3848
          %vm3881 = vcmask 785408
          %v3882 = vsel %vm3881, %v3879, %v3854
          %v3883 = vsel %vm3881, %v3880, %v3856
          %vm3884 = vcmask 916480
          %v3885 = vsel %vm3884, %v3882, %v3862
          %v3886 = vsel %vm3884, %v3883, %v3864
          %v3887 = vpack.c.bf16 %v3886, %v3885
          %v3888 = vld [vmem:[#allocation14] sm:$0xf]
          %v3889 = vld [vmem:[#allocation14 + $0x4] sm:$0xf]
          %v3890 = vld [vmem:[#allocation14 + $0x8] sm:$0xf]
          %v3891 = vld [vmem:[#allocation14 + $0xc] sm:$0xf]
          %v3892 = vld [vmem:[#allocation14 + $0x10] sm:$0xf]
          %v3893 = vld [vmem:[#allocation14 + $0x14] sm:$0xf]
          %v3894 = vld [vmem:[#allocation14 + $0x18] sm:$0xf]
          %v3895 = vld [vmem:[#allocation14 + $0x1c] sm:$0xf]
          %v3896 = vld [vmem:[#allocation14 + $0x20] sm:$0xf]
          %v3897 = vld [vmem:[#allocation14 + $0x24] sm:$0xf]
          %v3898 = vld [vmem:[#allocation14 + $0x28] sm:$0xf]
          %v3899 = vld [vmem:[#allocation14 + $0x2c] sm:$0xf]
          %v3900 = vld [vmem:[#allocation14 + $0x30] sm:$0xf]
          %v3901 = vld [vmem:[#allocation14 + $0x34] sm:$0xf]
          %v3902 = vld [vmem:[#allocation14 + $0x38] sm:$0xf]
          %v3903 = vld [vmem:[#allocation14 + $0x3c] sm:$0xf]
          %v3904 = vld [vmem:[%s5] sm:$0x1]
          %v3905 = vunpack.c.l.bf16 %v3904
          %v3906 = vlaneseq
          %v3907 = vshrl.u32 %v3906, 7
          %v3908 = vsub.s32 0, %v3907
          %v3909 = vrot.slane %v3905, %v3908
          %v3926 = vunpack.c.l.b16 %v3888
          %v3927 = vunpack.c.l.b16 %v3889
          %v3928 = vunpack.c.l.b16 %v3890
          %v3929 = vunpack.c.l.b16 %v3891
          %v3930 = vunpack.c.l.b16 %v3892
          %v3931 = vunpack.c.l.b16 %v3893
          %v3932 = vunpack.c.l.b16 %v3894
          %v3933 = vunpack.c.l.b16 %v3895
          %v3934 = vunpack.c.l.b16 %v3896
          %v3935 = vunpack.c.l.b16 %v3897
          %v3936 = vunpack.c.l.b16 %v3898
          %v3937 = vunpack.c.l.b16 %v3899
          %v3938 = vunpack.c.l.b16 %v3900
          %v3939 = vunpack.c.l.b16 %v3901
          %v3940 = vunpack.c.l.b16 %v3902
          %v3941 = vunpack.c.l.b16 %v3903
          %v3942 = vpack.c.b16 %v3927, %v3926
          %v3943 = vpack.c.b16 %v3929, %v3928
          %v3944 = vpack.c.b16 %v3931, %v3930
          %v3945 = vpack.c.b16 %v3933, %v3932
          %v3946 = vpack.c.b16 %v3935, %v3934
          %v3947 = vpack.c.b16 %v3937, %v3936
          %v3948 = vpack.c.b16 %v3939, %v3938
          %v3949 = vpack.c.b16 %v3941, %v3940
          %3958 = vmatprep.subr.bf16.mxu0 0
          %3959 = vmatpush1.bf16.msra.mxu0 %v3949
          %3960 = vmatprep.subr.bf16.mxu0 0
          %3961 = vmatpush1.bf16.msra.mxu0 %v3948
          %3962 = vmatprep.subr.bf16.mxu0 0
          %3963 = vmatpush1.bf16.msra.mxu0 %v3947
          %3964 = vmatprep.subr.bf16.mxu0 0
          %3965 = vmatpush1.bf16.msra.mxu0 %v3946
          %3966 = vmatprep.subr.bf16.mxu0 0
          %3967 = vmatpush1.bf16.msra.mxu0 %v3945
          %3968 = vmatprep.subr.bf16.mxu0 0
          %3969 = vmatpush1.bf16.msra.mxu0 %v3944
          %3970 = vmatprep.subr.bf16.mxu0 0
          %3971 = vmatpush1.bf16.msra.mxu0 %v3943
          %3972 = vmatprep.subr.bf16.mxu0 0
          %3973 = vmatpush1.bf16.msra.mxu0 %v3942
          %3974 = vmatprep.subr.bf16.mxu0 0
          %3975 = vmatpush2.bf16.msra.mxu0 0
          %3976 = vmatprep.subr.bf16.mxu0 0
          %3977 = vmatpush2.bf16.msra.mxu0 0
          %3978 = vmatprep.subr.bf16.mxu0 0
          %3979 = vmatpush2.bf16.msra.mxu0 0
          %3980 = vmatprep.subr.bf16.mxu0 0
          %3981 = vmatpush2.bf16.msra.mxu0 0
          %3982 = vmatprep.subr.bf16.mxu0 0
          %3983 = vmatpush2.bf16.msra.mxu0 0
          %3984 = vmatprep.subr.bf16.mxu0 0
          %3985 = vmatpush2.bf16.msra.mxu0 0
          %3986 = vmatprep.subr.bf16.mxu0 0
          %3987 = vmatpush2.bf16.msra.mxu0 0
          %3988 = vmatprep.subr.bf16.mxu0 0
          %3989 = vmatpush2.bf16.msra.mxu0 0
          %3990 = vmatprep.mubr.bf16.mxu0 0
          %3991 = vmatmul.mubr.bf16.gmra.mxu0 %v3887
          %v3992 = vpop.f32.mrf.mxu0
          %v3993 = vadd.f32 %v3909, %v3992
          %v3994 = vpop.f32.mrf.mxu0
          %v3995 = vpop.f32.mrf.mxu0
          %v3996 = vadd.f32 %v3909, %v3995
          %v3997 = vpop.f32.mrf.mxu0
          %3998 = vdwg.mxu0
          %v3999 = vpack.c.bf16 %v3996, %v3993
          %v4001 = vunpack.c.l.b16 %v3999
          %v4002 = vunpack.c.h.b16 %v3999
          %v4003 = vpack.c.b16 %v4001, %v4001
          %v4004 = vpack.c.b16 %v4002, %v4002
          %4007 = vst [vmem:[%s365] sm:$0xf] %v4003
          %4008 = vst [vmem:[%s365 + $0x4] sm:$0xf] %v4004
        $region72: #{tpu_custom_call.1} parent=43 // pred_fallthru
          _
        %s4009 = sand.u32 %s185, 1
        %s4010 = scalar_lea.sflag [#allocation8], %s4009
        %s4011 = sand.u32 %s185, 1
        %s4012 = smul.addr %s4011, 8
        %s4013 = scalar_lea.vmem [#allocation15], %s4012
        // Predicated region
        $region73: #{tpu_custom_call.1} parent=43 // pred_check
          %p4014 = pneg %p195
        $region74: #{tpu_custom_call.1} parent=43 // pred_check_branch
          %4016 = sbr.rel (%p4014) target = $region76
        $region75: #{tpu_custom_call.1} parent=43 // pred_region
          %s4018 = ssub.s32 128, 128
          %4019 = vsyncadd %s4010, %s4018
          %s4020 = smul.addr %s31, 2
          %s4021 = smul.addr %s4020, 64
          %s4022 = scalar_lea.hbm %s6, %s4021
          %s4023 = sshll.u32 %s4013, 4
          %s4024 = int_to_ptr.vmem [resolvable:$true] %s4023
          %4029 = dma.vmem_to_hbm [thread:$0]  %s4024, 128, %s4022, %s4010, 64, 64, 4
        $region76: #{tpu_custom_call.1} parent=43 // pred_fallthru
          _
      $region44: #{tpu_custom_call.1} parent=5 // pred_fallthru
        _
      %p4030 = scmp.le.s32.totalorder 2, %s22
      // Predicated region
      $region77: #{tpu_custom_call.1} parent=5 // pred_check
        %p4031 = pneg %p4030
      $region78: #{tpu_custom_call.1} parent=5 // pred_check_branch
        %4033 = sbr.rel (%p4031) target = $region80
      $region79: #{tpu_custom_call.1} parent=5 // pred_region
        %s4034 = ssub.s32 %s22, 2
        // Predicated region
        $region81: #{tpu_custom_call.1} parent=79 // pred_check
          %p4035 = pneg %p201
        $region82: #{tpu_custom_call.1} parent=79 // pred_check_branch
          %4037 = sbr.rel (%p4035) target = $region84
        $region83: #{tpu_custom_call.1} parent=79 // pred_region
          %s4038 = sand.u32 %s186, 1
          %s4039 = scalar_lea.sflag [#allocation8], %s4038
          %s4040 = sand.u32 %s186, 1
          %s4041 = smul.addr %s4040, 8
          %s4042 = scalar_lea.vmem [#allocation15], %s4041
          %4043 = dma.done %s4039, 128
        $region84: #{tpu_custom_call.1} parent=79 // pred_fallthru
          _
      $region80: #{tpu_custom_call.1} parent=5 // pred_fallthru
        _
    $region6: #{tpu_custom_call.1} parent=1 // loop_footer
      %s26 = sadd.s32 1, %s22
    $region7: #{tpu_custom_call.1} parent=1 // loop_footer_branch
      %21 = sbr.rel target = $region3
    $region8: #{tpu_custom_call.1} parent=1 // loop_exit
      _
    %4044 = vsyncpa [#allocation7], 1
    %s4045 = scalar_lea.sflag [#allocation7], 1
    %4046 = vsyncpa %s4045, 1
    %4047 = vsyncpa [#allocation10], 1
    %s4048 = scalar_lea.sflag [#allocation10], 1
    %4049 = vsyncpa %s4048, 1
    %4050 = vsyncpa [#allocation13], 1
    %4051 = vsyncpa [#allocation8], 1
    %s4052 = scalar_lea.sflag [#allocation8], 1
    %4053 = vsyncpa %s4052, 1

</llo_original>
